<compile_context>
chip_gen: v7x
topology: tpu7x:2x2x1
jax: 0.10.0
libtpu: 0.0.40
codegen_flags: <defaults>
</compile_context>

<pallas_src>
import jax
import jax.numpy as jnp
from jax.experimental import pallas as pl
from jax.experimental.pallas import tpu as pltpu


NEG_SLOPE = 0.01  # PyTorch LeakyReLU default


def mlp_kernel(x_ref, w1_ref, b1_ref, w2_ref, b2_ref, o_ref):
    # Cast the activation tile to the weight dtype (bf16 fast path) on the VPU;
    # both matmuls accumulate in f32 on the MXU.
    x = x_ref[...].astype(w1_ref.dtype)
    # First linear: (tb, 1024) @ (1024, 512) -> (tb, 512), f32 accumulate.
    h = jnp.dot(x, w1_ref[...], preferred_element_type=jnp.float32)
    h = h + b1_ref[...]                       # broadcast (1, 512), f32
    # LeakyReLU (slope in (0,1) => max(h, a*h)); f32 on the VPU.
    h = jnp.maximum(h, NEG_SLOPE * h)
    # Second linear: (tb, 512) @ (512, 1024) -> (tb, 1024), f32 accumulate.
    y = jnp.dot(h.astype(w2_ref.dtype), w2_ref[...],
                preferred_element_type=jnp.float32)
    y = y + b2_ref[...]                       # broadcast (1, 1024), f32
    o_ref[...] = y.astype(o_ref.dtype)        # lane-dense (tb, 1024) store


def _round_up(x, m):
    return -(-x // m) * m


def _choose_tb(batch, io_itemsize):
    """Batch tile: even grid of >=2 steps for B>128 (v7x megacore), VMEM-capped."""
    bp = _round_up(batch, 8)                  # sublane-align
    if bp <= 128:
        return bp                             # tiny batch: one small tile
    # VMEM-derived tile cap: activations double-buffered, f32 h intermediate.
    cap = 1024 if io_itemsize <= 2 else 512
    n = max(2, -(-bp // cap))                 # at least 2 grid steps
    n = _round_up(n, 2)                       # even step count (never 1 or 3)
    tb = _round_up(-(-bp // n), 8)
    # Prefer MXU-friendly multiples of 128 when it keeps the same step count.
    tb128 = _round_up(tb, 128)
    if -(-bp // tb128) == n:
        tb = tb128
    return tb


def _vmem_limit_bytes(tb, d_in, d_hid, d_out, io_bytes, w_bytes):
    """Scoped-VMEM budget from the actual footprint (+headroom), capped for v7x."""
    act = 2 * tb * (d_in + d_out) * io_bytes                     # 2x-buffered x/y tiles
    wgt = 2 * ((d_in * d_hid + d_hid * d_out) * w_bytes          # resident w1/w2 (2 bufs)
               + (d_hid + d_out) * 4)                            # biases (f32)
    interm = tb * (d_in * w_bytes + 4 * d_hid                    # x cast, h f32
                   + w_bytes * d_hid + 4 * d_out)                # h cast, y f32
    total = int((act + wgt + interm) * 1.5) + (6 << 20)          # compiler headroom
    return min(64 << 20, _round_up(total, 1 << 20))


def mlp_forward(x, w1, b1, w2, b2, *, tb=None, use_bf16=True):
    """x: [B, 1024] (f32 or bf16). Weights pre-transposed: w1 [1024,512], w2 [512,1024].

    Output dtype follows x's dtype (bf16 in / bf16 out for a bf16 model).
    MXU operands are bf16 with f32 accumulation unless use_bf16=False (debug).
    """
    B, D_in = x.shape
    D_hid = w1.shape[1]
    D_out = w2.shape[1]

    io_dtype = x.dtype
    io_bytes = jnp.dtype(io_dtype).itemsize
    w_dtype = jnp.bfloat16 if use_bf16 else jnp.float32
    w_bytes = jnp.dtype(w_dtype).itemsize

    if tb is None:
        tb = _choose_tb(B, io_bytes)
    tb = min(tb, _round_up(B, 8))

    # bf16 matmul operands (cast once), f32 bias / activation / accumulation.
    w1 = w1.astype(w_dtype)
    w2 = w2.astype(w_dtype)
    b1 = b1.astype(jnp.float32).reshape(1, D_hid)
    b2 = b2.astype(jnp.float32).reshape(1, D_out)

    grid = (pl.cdiv(B, tb),)  # ragged tail handled by Pallas partial blocks
    vmem_limit = _vmem_limit_bytes(tb, D_in, D_hid, D_out, io_bytes, w_bytes)

    return pl.pallas_call(
        mlp_kernel,
        out_shape=jax.ShapeDtypeStruct((B, D_out), io_dtype),
        grid_spec=pltpu.PrefetchScalarGridSpec(
            num_scalar_prefetch=0,
            grid=grid,
            in_specs=[
                pl.BlockSpec((tb, D_in), lambda i: (i, 0)),      # x tile
                pl.BlockSpec((D_in, D_hid), lambda i: (0, 0)),   # w1 (resident)
                pl.BlockSpec((1, D_hid), lambda i: (0, 0)),      # b1
                pl.BlockSpec((D_hid, D_out), lambda i: (0, 0)),  # w2 (resident)
                pl.BlockSpec((1, D_out), lambda i: (0, 0)),      # b2
            ],
            out_specs=pl.BlockSpec((tb, D_out), lambda i: (i, 0)),
        ),
        compiler_params=pltpu.CompilerParams(
            dimension_semantics=("parallel",),
            vmem_limit_bytes=vmem_limit,
        ),
    )(x, w1, b1, w2, b2)


def init_params(key):
    """Deterministic init mimicking nn.Linear's uniform(-1/sqrt(fan_in), ...)."""
    k1, k2, k3, k4 = jax.random.split(key, 4)
    d_in, d_hid, d_out = 1024, 512, 1024
    bound1 = 1.0 / (d_in ** 0.5)
    bound2 = 1.0 / (d_hid ** 0.5)
    # Stored already transposed: [in, out]
    w1 = jax.random.uniform(k1, (d_in, d_hid), jnp.float32, -bound1, bound1)
    b1 = jax.random.uniform(k2, (d_hid,), jnp.float32, -bound1, bound1)
    w2 = jax.random.uniform(k3, (d_hid, d_out), jnp.float32, -bound2, bound2)
    b2 = jax.random.uniform(k4, (d_out,), jnp.float32, -bound2, bound2)
    return w1, b1, w2, b2


def mlp_reference(x, w1, b1, w2, b2):
    h = x @ w1 + b1
    h = jnp.where(h > 0, h, NEG_SLOPE * h)
    return h @ w2 + b2


if __name__ == "__main__":
    key = jax.random.PRNGKey(0)
    kx, kp = jax.random.split(key)
    d_in, d_out = 1024, 1024
    w1, b1, w2, b2 = init_params(kp)

    # 1) Small f32 batch: single tile, exercises the fused path with f32 I/O.
    x = jax.random.normal(kx, (8, d_in), dtype=jnp.float32)
    out = jax.block_until_ready(mlp_forward(x, w1, b1, w2, b2))
    ref = mlp_reference(x, w1, b1, w2, b2)
    assert out.shape == (8, d_out) and out.dtype == jnp.float32
    # bf16 matmul operands (f32 accumulate) -> relaxed tolerance vs f32 reference.
    assert jnp.allclose(out, ref, atol=3e-2, rtol=3e-2), \
        "mismatch vs reference (small f32 batch)"

    # 2) Ragged bf16 batch: bf16 activation I/O, multi-step even parallel grid,
    #    partial last block handled inside the kernel (no pad / slice copies).
    x2 = jax.random.normal(kx, (300, d_in), dtype=jnp.float32).astype(jnp.bfloat16)
    out2 = jax.block_until_ready(mlp_forward(x2, w1, b1, w2, b2))
    ref2 = mlp_reference(x2.astype(jnp.float32), w1, b1, w2, b2)
    assert out2.shape == (300, d_out) and out2.dtype == jnp.bfloat16
    assert jnp.allclose(out2.astype(jnp.float32), ref2, atol=5e-2, rtol=5e-2), \
        "mismatch vs reference (ragged bf16 batch)"

    print("KERNEL_OK")
</pallas_src>

<mosaic_0001>
module attributes {stable_mosaic.version = 11 : i64} {
  func.func @mlp_kernel(%arg0: i32, %arg1: memref<8x1024xf32, #tpu.memory_space<vmem>>, %arg2: memref<1024x512xbf16, #tpu.memory_space<vmem>>, %arg3: memref<1x512xf32, #tpu.memory_space<vmem>>, %arg4: memref<512x1024xbf16, #tpu.memory_space<vmem>>, %arg5: memref<1x1024xf32, #tpu.memory_space<vmem>>, %arg6: memref<8x1024xf32, #tpu.memory_space<vmem>>) attributes {dimension_semantics = [#tpu.dimension_semantics<parallel>], iteration_bounds = array<i64: 1>, scalar_prefetch = 0 : i64, scratch_operands = 0 : i64, tpu.core_type = #tpu.core_type<tc>, window_params = [{transform_indices = @transform_0, window_bounds = array<i64: 8, 1024>}, {pipeline_mode = #tpu.pipeline_mode<synchronous>, transform_indices = @transform_1, window_bounds = array<i64: 1024, 512>}, {pipeline_mode = #tpu.pipeline_mode<synchronous>, transform_indices = @transform_2, window_bounds = array<i64: 1, 512>}, {pipeline_mode = #tpu.pipeline_mode<synchronous>, transform_indices = @transform_3, window_bounds = array<i64: 512, 1024>}, {pipeline_mode = #tpu.pipeline_mode<synchronous>, transform_indices = @transform_4, window_bounds = array<i64: 1, 1024>}, {transform_indices = @transform_5, window_bounds = array<i64: 8, 1024>}]} {
    %c0 = arith.constant 0 : index
    %c0_0 = arith.constant 0 : index
    %0 = vector.load %arg1[%c0, %c0_0] : memref<8x1024xf32, #tpu.memory_space<vmem>>, vector<8x1024xf32>
    %1 = arith.truncf %0 : vector<8x1024xf32> to vector<8x1024xbf16>
    %c0_1 = arith.constant 0 : index
    %c0_2 = arith.constant 0 : index
    %2 = vector.load %arg2[%c0_1, %c0_2] : memref<1024x512xbf16, #tpu.memory_space<vmem>>, vector<1024x512xbf16>
    %cst = arith.constant dense<0.000000e+00> : vector<8x512xf32>
    %3 = tpu.matmul %1, %2, %cst {dimension_numbers = #tpu.dot_dimension_numbers<[1], [0], [0], [1], [0, 0, 1, 1], [], []>} : vector<8x1024xbf16>, vector<1024x512xbf16>, vector<8x512xf32> -> vector<8x512xf32>
    %c0_3 = arith.constant 0 : index
    %c0_4 = arith.constant 0 : index
    %4 = vector.load %arg3[%c0_3, %c0_4] : memref<1x512xf32, #tpu.memory_space<vmem>>, vector<1x512xf32>
    %5 = vector.broadcast %4 : vector<1x512xf32> to vector<8x512xf32>
    %6 = arith.addf %3, %5 : vector<8x512xf32>
    %cst_5 = arith.constant 0.00999999977 : f32
    %7 = vector.broadcast %cst_5 : f32 to vector<8x512xf32>
    %8 = arith.mulf %7, %6 : vector<8x512xf32>
    %9 = arith.maximumf %6, %8 : vector<8x512xf32>
    %10 = arith.truncf %9 : vector<8x512xf32> to vector<8x512xbf16>
    %c0_6 = arith.constant 0 : index
    %c0_7 = arith.constant 0 : index
    %11 = vector.load %arg4[%c0_6, %c0_7] : memref<512x1024xbf16, #tpu.memory_space<vmem>>, vector<512x1024xbf16>
    %cst_8 = arith.constant dense<0.000000e+00> : vector<8x1024xf32>
    %12 = tpu.matmul %10, %11, %cst_8 {dimension_numbers = #tpu.dot_dimension_numbers<[1], [0], [0], [1], [0, 0, 1, 1], [], []>} : vector<8x512xbf16>, vector<512x1024xbf16>, vector<8x1024xf32> -> vector<8x1024xf32>
    %c0_9 = arith.constant 0 : index
    %c0_10 = arith.constant 0 : index
    %13 = vector.load %arg5[%c0_9, %c0_10] : memref<1x1024xf32, #tpu.memory_space<vmem>>, vector<1x1024xf32>
    %14 = vector.broadcast %13 : vector<1x1024xf32> to vector<8x1024xf32>
    %15 = arith.addf %12, %14 : vector<8x1024xf32>
    %c0_11 = arith.constant 0 : index
    %c0_12 = arith.constant 0 : index
    %16 = vector.load %arg6[%c0_11, %c0_12] : memref<8x1024xf32, #tpu.memory_space<vmem>>, vector<8x1024xf32>
    tpu.vector_store %arg6[%c0_11, %c0_12], %15 {strides = array<i32>} : memref<8x1024xf32, #tpu.memory_space<vmem>>, vector<8x1024xf32>,
    return
  }
  func.func @transform_0(%arg0: i32) -> (i32, i32) {
    %c0_i32 = arith.constant 0 : i32
    %c0_i32_0 = arith.constant 0 : i32
    return %arg0, %c0_i32 : i32, i32
  }
  func.func @transform_1(%arg0: i32) -> (i32, i32) {
    %c0_i32 = arith.constant 0 : i32
    %c0_i32_0 = arith.constant 0 : i32
    %c0_i32_1 = arith.constant 0 : i32
    return %c0_i32, %c0_i32_0 : i32, i32
  }
  func.func @transform_2(%arg0: i32) -> (i32, i32) {
    %c0_i32 = arith.constant 0 : i32
    %c0_i32_0 = arith.constant 0 : i32
    %c0_i32_1 = arith.constant 0 : i32
    return %c0_i32, %c0_i32_0 : i32, i32
  }
  func.func @transform_3(%arg0: i32) -> (i32, i32) {
    %c0_i32 = arith.constant 0 : i32
    %c0_i32_0 = arith.constant 0 : i32
    %c0_i32_1 = arith.constant 0 : i32
    return %c0_i32, %c0_i32_0 : i32, i32
  }
  func.func @transform_4(%arg0: i32) -> (i32, i32) {
    %c0_i32 = arith.constant 0 : i32
    %c0_i32_0 = arith.constant 0 : i32
    %c0_i32_1 = arith.constant 0 : i32
    return %c0_i32, %c0_i32_0 : i32, i32
  }
  func.func @transform_5(%arg0: i32) -> (i32, i32) {
    %c0_i32 = arith.constant 0 : i32
    %c0_i32_0 = arith.constant 0 : i32
    return %arg0, %c0_i32 : i32, i32
  }
}

</mosaic_0001>

<llo_original>
// kernel: tpu_custom_call.1
$region0: #{tpu_custom_call.1}
  #allocation0 [shape = 'u32[]', space=smem, size = 0x4, offset = 0x4, fixed_abs, tag = 'smem constant byte address 0x4 - core index']
  #allocation1 [shape = 'u32[144,128]{1,0:T(1,128)}', space=vmem, size = 0x12000, scoped, tag = 'internal scratch']
  %s0 = inlined_call_operand.hbm [shape: f32[8,1024], index: 0, kind: input, shape index: {}]
  %s1 = inlined_call_operand.hbm [shape: bf16[1024,512], index: 1, kind: input, shape index: {}]
  %s2 = inlined_call_operand.vmem [shape: f32[1,512], index: 2, kind: input, shape index: {}]
  %s3 = inlined_call_operand.hbm [shape: bf16[512,1024], index: 3, kind: input, shape index: {}]
  %s4 = inlined_call_operand.vmem [shape: f32[1,1024], index: 4, kind: input, shape index: {}]
  %s5 = inlined_call_operand.hbm [shape: f32[8,1024], index: 5, kind: output, shape index: {}]
  %s6 = sld [smem:[#allocation0]]
  $region42: #{tpu_custom_call.1} parent=0
    _
  %s8 = ssub.s32 1, %s6
  %s9 = scalar_select 0, %s8, %s6
  $region1: #{tpu_custom_call.1} parent=0
    #allocation2 [shape = 'u8[32768]{0}', space=vmem, size = 0x8000, scoped, tag = 'input window, operand 0, single buffered']
    #allocation3 [shape = 's32[1]{0}', space=sflag, size = 0x4, scoped, tag = 'scoped memory for tpu_custom_call.1']
    #allocation4 [shape = 's32[1]{0}', space=sflag, size = 0x4, scoped, tag = 'scoped memory for tpu_custom_call.1']
    #allocation5 [shape = 'u8[1048576]{0}', space=vmem, size = 0x100000, scoped, tag = 'input window, operand 1, single buffered']
    #allocation6 [shape = 's32[1]{0}', space=sflag, size = 0x4, scoped, tag = 'scoped memory for tpu_custom_call.1']
    #allocation7 [shape = 'u8[1048576]{0}', space=vmem, size = 0x100000, scoped, tag = 'input window, operand 3, single buffered']
    #allocation8 [shape = 'u8[32768]{0}', space=vmem, size = 0x8000, scoped, tag = 'output window, operand 0, single buffered']
    %10 = vsyncpa [#allocation3], 0
    %11 = vsyncpa [#allocation6], 0
    %12 = vsyncpa [#allocation4], 0
    // Predicated region
    $region2: #{tpu_custom_call.1} parent=1 // pred_check
      _
    $region3: #{tpu_custom_call.1} parent=1 // pred_check_branch
      %14 = sbr.rel (0) target = $region5
    $region4: #{tpu_custom_call.1} parent=1 // pred_region
      %s16 = ssub.s32 1024, 1024
      %17 = vsyncadd [#allocation3], %s16
      %s19 = sshll.u32 [#allocation2], 4
      %s20 = int_to_ptr.vmem [resolvable:$true] %s19
      %22 = dma.hbm_to_vmem [thread:$0]  %s0, 1024, %s20, [#allocation3]
    $region5: #{tpu_custom_call.1} parent=1 // pred_fallthru
      _
    // Predicated region
    $region6: #{tpu_custom_call.1} parent=1 // pred_check
      _
    $region7: #{tpu_custom_call.1} parent=1 // pred_check_branch
      %24 = sbr.rel (0) target = $region9
    $region8: #{tpu_custom_call.1} parent=1 // pred_region
      %s26 = ssub.s32 32768, 32768
      %27 = vsyncadd [#allocation6], %s26
      %s28 = sshll.u32 [#allocation5], 4
      %s29 = int_to_ptr.vmem [resolvable:$true] %s28
      %34 = dma.hbm_to_vmem [thread:$0]  %s1, 32768, %s29, [#allocation6], 256, 256, 16
    $region9: #{tpu_custom_call.1} parent=1 // pred_fallthru
      _
    // Predicated region
    $region10: #{tpu_custom_call.1} parent=1 // pred_check
      _
    $region11: #{tpu_custom_call.1} parent=1 // pred_check_branch
      %36 = sbr.rel (0) target = $region13
    $region12: #{tpu_custom_call.1} parent=1 // pred_region
      _
    $region13: #{tpu_custom_call.1} parent=1 // pred_fallthru
      _
    // Predicated region
    $region14: #{tpu_custom_call.1} parent=1 // pred_check
      _
    $region15: #{tpu_custom_call.1} parent=1 // pred_check_branch
      %38 = sbr.rel (0) target = $region17
    $region16: #{tpu_custom_call.1} parent=1 // pred_region
      %s40 = ssub.s32 32768, 32768
      %41 = vsyncadd [#allocation6], %s40
      %s42 = sshll.u32 [#allocation7], 4
      %s43 = int_to_ptr.vmem [resolvable:$true] %s42
      %48 = dma.hbm_to_vmem [thread:$0]  %s3, 32768, %s43, [#allocation6], 512, 512, 32
    $region17: #{tpu_custom_call.1} parent=1 // pred_fallthru
      _
    // Predicated region
    $region18: #{tpu_custom_call.1} parent=1 // pred_check
      _
    $region19: #{tpu_custom_call.1} parent=1 // pred_check_branch
      %50 = sbr.rel (0) target = $region21
    $region20: #{tpu_custom_call.1} parent=1 // pred_region
      _
    $region21: #{tpu_custom_call.1} parent=1 // pred_fallthru
      _
    // Predicated region
    $region22: #{tpu_custom_call.1} parent=1 // pred_check
      _
    $region23: #{tpu_custom_call.1} parent=1 // pred_check_branch
      %52 = sbr.rel (0) target = $region25
    $region24: #{tpu_custom_call.1} parent=1 // pred_region
      %53 = dma.done [#allocation3], 1024
    $region25: #{tpu_custom_call.1} parent=1 // pred_fallthru
      _
    // Predicated region
    $region26: #{tpu_custom_call.1} parent=1 // pred_check
      _
    $region27: #{tpu_custom_call.1} parent=1 // pred_check_branch
      %55 = sbr.rel (0) target = $region29
    $region28: #{tpu_custom_call.1} parent=1 // pred_region
      %56 = dma.done [#allocation6], 32768
    $region29: #{tpu_custom_call.1} parent=1 // pred_fallthru
      _
    // Predicated region
    $region30: #{tpu_custom_call.1} parent=1 // pred_check
      _
    $region31: #{tpu_custom_call.1} parent=1 // pred_check_branch
      %58 = sbr.rel (0) target = $region33
    $region32: #{tpu_custom_call.1} parent=1 // pred_region
      %59 = dma.done [#allocation6], 32768
    $region33: #{tpu_custom_call.1} parent=1 // pred_fallthru
      _
    %v60 = vld [vmem:[#allocation2] sm:$0xff]
    %v61 = vld [vmem:[#allocation2 + $0x8] sm:$0xff]
    %v62 = vld [vmem:[#allocation2 + $0x10] sm:$0xff]
    %v63 = vld [vmem:[#allocation2 + $0x18] sm:$0xff]
    %v64 = vld [vmem:[#allocation2 + $0x20] sm:$0xff]
    %v65 = vld [vmem:[#allocation2 + $0x28] sm:$0xff]
    %v66 = vld [vmem:[#allocation2 + $0x30] sm:$0xff]
    %v67 = vld [vmem:[#allocation2 + $0x38] sm:$0xff]
    %v68 = vpack.c.bf16 %v60, %v60
    %v69 = vpack.c.bf16 %v61, %v61
    %v70 = vpack.c.bf16 %v62, %v62
    %v71 = vpack.c.bf16 %v63, %v63
    %v72 = vpack.c.bf16 %v64, %v64
    %v73 = vpack.c.bf16 %v65, %v65
    %v74 = vpack.c.bf16 %v66, %v66
    %v75 = vpack.c.bf16 %v67, %v67
    %v76 = vld [vmem:[#allocation5] sm:$0xff]
    %v77 = vld [vmem:[#allocation5 + $0x8] sm:$0xff]
    %v78 = vld [vmem:[#allocation5 + $0x10] sm:$0xff]
    %v79 = vld [vmem:[#allocation5 + $0x18] sm:$0xff]
    %v80 = vld [vmem:[#allocation5 + $0x20] sm:$0xff]
    %v81 = vld [vmem:[#allocation5 + $0x28] sm:$0xff]
    %v82 = vld [vmem:[#allocation5 + $0x30] sm:$0xff]
    %v83 = vld [vmem:[#allocation5 + $0x38] sm:$0xff]
    %v84 = vld [vmem:[#allocation5 + $0x40] sm:$0xff]
    %v85 = vld [vmem:[#allocation5 + $0x48] sm:$0xff]
    %v86 = vld [vmem:[#allocation5 + $0x50] sm:$0xff]
    %v87 = vld [vmem:[#allocation5 + $0x58] sm:$0xff]
    %v88 = vld [vmem:[#allocation5 + $0x60] sm:$0xff]
    %v89 = vld [vmem:[#allocation5 + $0x68] sm:$0xff]
    %v90 = vld [vmem:[#allocation5 + $0x70] sm:$0xff]
    %v91 = vld [vmem:[#allocation5 + $0x78] sm:$0xff]
    %v92 = vld [vmem:[#allocation5 + $0x80] sm:$0xff]
    %v93 = vld [vmem:[#allocation5 + $0x88] sm:$0xff]
    %v94 = vld [vmem:[#allocation5 + $0x90] sm:$0xff]
    %v95 = vld [vmem:[#allocation5 + $0x98] sm:$0xff]
    %v96 = vld [vmem:[#allocation5 + $0xa0] sm:$0xff]
    %v97 = vld [vmem:[#allocation5 + $0xa8] sm:$0xff]
    %v98 = vld [vmem:[#allocation5 + $0xb0] sm:$0xff]
    %v99 = vld [vmem:[#allocation5 + $0xb8] sm:$0xff]
    %v100 = vld [vmem:[#allocation5 + $0xc0] sm:$0xff]
    %v101 = vld [vmem:[#allocation5 + $0xc8] sm:$0xff]
    %v102 = vld [vmem:[#allocation5 + $0xd0] sm:$0xff]
    %v103 = vld [vmem:[#allocation5 + $0xd8] sm:$0xff]
    %v104 = vld [vmem:[#allocation5 + $0xe0] sm:$0xff]
    %v105 = vld [vmem:[#allocation5 + $0xe8] sm:$0xff]
    %v106 = vld [vmem:[#allocation5 + $0xf0] sm:$0xff]
    %v107 = vld [vmem:[#allocation5 + $0xf8] sm:$0xff]
    %v108 = vld [vmem:[#allocation5 + $0x100] sm:$0xff]
    %v109 = vld [vmem:[#allocation5 + $0x108] sm:$0xff]
    %v110 = vld [vmem:[#allocation5 + $0x110] sm:$0xff]
    %v111 = vld [vmem:[#allocation5 + $0x118] sm:$0xff]
    %v112 = vld [vmem:[#allocation5 + $0x120] sm:$0xff]
    %v113 = vld [vmem:[#allocation5 + $0x128] sm:$0xff]
    %v114 = vld [vmem:[#allocation5 + $0x130] sm:$0xff]
    %v115 = vld [vmem:[#allocation5 + $0x138] sm:$0xff]
    %v116 = vld [vmem:[#allocation5 + $0x140] sm:$0xff]
    %v117 = vld [vmem:[#allocation5 + $0x148] sm:$0xff]
    %v118 = vld [vmem:[#allocation5 + $0x150] sm:$0xff]
    %v119 = vld [vmem:[#allocation5 + $0x158] sm:$0xff]
    %v120 = vld [vmem:[#allocation5 + $0x160] sm:$0xff]
    %v121 = vld [vmem:[#allocation5 + $0x168] sm:$0xff]
    %v122 = vld [vmem:[#allocation5 + $0x170] sm:$0xff]
    %v123 = vld [vmem:[#allocation5 + $0x178] sm:$0xff]
    %v124 = vld [vmem:[#allocation5 + $0x180] sm:$0xff]
    %v125 = vld [vmem:[#allocation5 + $0x188] sm:$0xff]
    %v126 = vld [vmem:[#allocation5 + $0x190] sm:$0xff]
    %v127 = vld [vmem:[#allocation5 + $0x198] sm:$0xff]
    %v128 = vld [vmem:[#allocation5 + $0x1a0] sm:$0xff]
    %v129 = vld [vmem:[#allocation5 + $0x1a8] sm:$0xff]
    %v130 = vld [vmem:[#allocation5 + $0x1b0] sm:$0xff]
    %v131 = vld [vmem:[#allocation5 + $0x1b8] sm:$0xff]
    %v132 = vld [vmem:[#allocation5 + $0x1c0] sm:$0xff]
    %v133 = vld [vmem:[#allocation5 + $0x1c8] sm:$0xff]
    %v134 = vld [vmem:[#allocation5 + $0x1d0] sm:$0xff]
    %v135 = vld [vmem:[#allocation5 + $0x1d8] sm:$0xff]
    %v136 = vld [vmem:[#allocation5 + $0x1e0] sm:$0xff]
    %v137 = vld [vmem:[#allocation5 + $0x1e8] sm:$0xff]
    %v138 = vld [vmem:[#allocation5 + $0x1f0] sm:$0xff]
    %v139 = vld [vmem:[#allocation5 + $0x1f8] sm:$0xff]
    %v140 = vld [vmem:[#allocation5 + $0x200] sm:$0xff]
    %v141 = vld [vmem:[#allocation5 + $0x208] sm:$0xff]
    %v142 = vld [vmem:[#allocation5 + $0x210] sm:$0xff]
    %v143 = vld [vmem:[#allocation5 + $0x218] sm:$0xff]
    %v144 = vld [vmem:[#allocation5 + $0x220] sm:$0xff]
    %v145 = vld [vmem:[#allocation5 + $0x228] sm:$0xff]
    %v146 = vld [vmem:[#allocation5 + $0x230] sm:$0xff]
    %v147 = vld [vmem:[#allocation5 + $0x238] sm:$0xff]
    %v148 = vld [vmem:[#allocation5 + $0x240] sm:$0xff]
    %v149 = vld [vmem:[#allocation5 + $0x248] sm:$0xff]
    %v150 = vld [vmem:[#allocation5 + $0x250] sm:$0xff]
    %v151 = vld [vmem:[#allocation5 + $0x258] sm:$0xff]
    %v152 = vld [vmem:[#allocation5 + $0x260] sm:$0xff]
    %v153 = vld [vmem:[#allocation5 + $0x268] sm:$0xff]
    %v154 = vld [vmem:[#allocation5 + $0x270] sm:$0xff]
    %v155 = vld [vmem:[#allocation5 + $0x278] sm:$0xff]
    %v156 = vld [vmem:[#allocation5 + $0x280] sm:$0xff]
    %v157 = vld [vmem:[#allocation5 + $0x288] sm:$0xff]
    %v158 = vld [vmem:[#allocation5 + $0x290] sm:$0xff]
    %v159 = vld [vmem:[#allocation5 + $0x298] sm:$0xff]
    %v160 = vld [vmem:[#allocation5 + $0x2a0] sm:$0xff]
    %v161 = vld [vmem:[#allocation5 + $0x2a8] sm:$0xff]
    %v162 = vld [vmem:[#allocation5 + $0x2b0] sm:$0xff]
    %v163 = vld [vmem:[#allocation5 + $0x2b8] sm:$0xff]
    %v164 = vld [vmem:[#allocation5 + $0x2c0] sm:$0xff]
    %v165 = vld [vmem:[#allocation5 + $0x2c8] sm:$0xff]
    %v166 = vld [vmem:[#allocation5 + $0x2d0] sm:$0xff]
    %v167 = vld [vmem:[#allocation5 + $0x2d8] sm:$0xff]
    %v168 = vld [vmem:[#allocation5 + $0x2e0] sm:$0xff]
    %v169 = vld [vmem:[#allocation5 + $0x2e8] sm:$0xff]
    %v170 = vld [vmem:[#allocation5 + $0x2f0] sm:$0xff]
    %v171 = vld [vmem:[#allocation5 + $0x2f8] sm:$0xff]
    %v172 = vld [vmem:[#allocation5 + $0x300] sm:$0xff]
    %v173 = vld [vmem:[#allocation5 + $0x308] sm:$0xff]
    %v174 = vld [vmem:[#allocation5 + $0x310] sm:$0xff]
    %v175 = vld [vmem:[#allocation5 + $0x318] sm:$0xff]
    %v176 = vld [vmem:[#allocation5 + $0x320] sm:$0xff]
    %v177 = vld [vmem:[#allocation5 + $0x328] sm:$0xff]
    %v178 = vld [vmem:[#allocation5 + $0x330] sm:$0xff]
    %v179 = vld [vmem:[#allocation5 + $0x338] sm:$0xff]
    %v180 = vld [vmem:[#allocation5 + $0x340] sm:$0xff]
    %v181 = vld [vmem:[#allocation5 + $0x348] sm:$0xff]
    %v182 = vld [vmem:[#allocation5 + $0x350] sm:$0xff]
    %v183 = vld [vmem:[#allocation5 + $0x358] sm:$0xff]
    %v184 = vld [vmem:[#allocation5 + $0x360] sm:$0xff]
    %v185 = vld [vmem:[#allocation5 + $0x368] sm:$0xff]
    %v186 = vld [vmem:[#allocation5 + $0x370] sm:$0xff]
    %v187 = vld [vmem:[#allocation5 + $0x378] sm:$0xff]
    %v188 = vld [vmem:[#allocation5 + $0x380] sm:$0xff]
    %v189 = vld [vmem:[#allocation5 + $0x388] sm:$0xff]
    %v190 = vld [vmem:[#allocation5 + $0x390] sm:$0xff]
    %v191 = vld [vmem:[#allocation5 + $0x398] sm:$0xff]
    %v192 = vld [vmem:[#allocation5 + $0x3a0] sm:$0xff]
    %v193 = vld [vmem:[#allocation5 + $0x3a8] sm:$0xff]
    %v194 = vld [vmem:[#allocation5 + $0x3b0] sm:$0xff]
    %v195 = vld [vmem:[#allocation5 + $0x3b8] sm:$0xff]
    %v196 = vld [vmem:[#allocation5 + $0x3c0] sm:$0xff]
    %v197 = vld [vmem:[#allocation5 + $0x3c8] sm:$0xff]
    %v198 = vld [vmem:[#allocation5 + $0x3d0] sm:$0xff]
    %v199 = vld [vmem:[#allocation5 + $0x3d8] sm:$0xff]
    %v200 = vld [vmem:[#allocation5 + $0x3e0] sm:$0xff]
    %v201 = vld [vmem:[#allocation5 + $0x3e8] sm:$0xff]
    %v202 = vld [vmem:[#allocation5 + $0x3f0] sm:$0xff]
    %v203 = vld [vmem:[#allocation5 + $0x3f8] sm:$0xff]
    %v204 = vld [vmem:[#allocation5 + $0x400] sm:$0xff]
    %v205 = vld [vmem:[#allocation5 + $0x408] sm:$0xff]
    %v206 = vld [vmem:[#allocation5 + $0x410] sm:$0xff]
    %v207 = vld [vmem:[#allocation5 + $0x418] sm:$0xff]
    %v208 = vld [vmem:[#allocation5 + $0x420] sm:$0xff]
    %v209 = vld [vmem:[#allocation5 + $0x428] sm:$0xff]
    %v210 = vld [vmem:[#allocation5 + $0x430] sm:$0xff]
    %v211 = vld [vmem:[#allocation5 + $0x438] sm:$0xff]
    %v212 = vld [vmem:[#allocation5 + $0x440] sm:$0xff]
    %v213 = vld [vmem:[#allocation5 + $0x448] sm:$0xff]
    %v214 = vld [vmem:[#allocation5 + $0x450] sm:$0xff]
    %v215 = vld [vmem:[#allocation5 + $0x458] sm:$0xff]
    %v216 = vld [vmem:[#allocation5 + $0x460] sm:$0xff]
    %v217 = vld [vmem:[#allocation5 + $0x468] sm:$0xff]
    %v218 = vld [vmem:[#allocation5 + $0x470] sm:$0xff]
    %v219 = vld [vmem:[#allocation5 + $0x478] sm:$0xff]
    %v220 = vld [vmem:[#allocation5 + $0x480] sm:$0xff]
    %v221 = vld [vmem:[#allocation5 + $0x488] sm:$0xff]
    %v222 = vld [vmem:[#allocation5 + $0x490] sm:$0xff]
    %v223 = vld [vmem:[#allocation5 + $0x498] sm:$0xff]
    %v224 = vld [vmem:[#allocation5 + $0x4a0] sm:$0xff]
    %v225 = vld [vmem:[#allocation5 + $0x4a8] sm:$0xff]
    %v226 = vld [vmem:[#allocation5 + $0x4b0] sm:$0xff]
    %v227 = vld [vmem:[#allocation5 + $0x4b8] sm:$0xff]
    %v228 = vld [vmem:[#allocation5 + $0x4c0] sm:$0xff]
    %v229 = vld [vmem:[#allocation5 + $0x4c8] sm:$0xff]
    %v230 = vld [vmem:[#allocation5 + $0x4d0] sm:$0xff]
    %v231 = vld [vmem:[#allocation5 + $0x4d8] sm:$0xff]
    %v232 = vld [vmem:[#allocation5 + $0x4e0] sm:$0xff]
    %v233 = vld [vmem:[#allocation5 + $0x4e8] sm:$0xff]
    %v234 = vld [vmem:[#allocation5 + $0x4f0] sm:$0xff]
    %v235 = vld [vmem:[#allocation5 + $0x4f8] sm:$0xff]
    %v236 = vld [vmem:[#allocation5 + $0x500] sm:$0xff]
    %v237 = vld [vmem:[#allocation5 + $0x508] sm:$0xff]
    %v238 = vld [vmem:[#allocation5 + $0x510] sm:$0xff]
    %v239 = vld [vmem:[#allocation5 + $0x518] sm:$0xff]
    %v240 = vld [vmem:[#allocation5 + $0x520] sm:$0xff]
    %v241 = vld [vmem:[#allocation5 + $0x528] sm:$0xff]
    %v242 = vld [vmem:[#allocation5 + $0x530] sm:$0xff]
    %v243 = vld [vmem:[#allocation5 + $0x538] sm:$0xff]
    %v244 = vld [vmem:[#allocation5 + $0x540] sm:$0xff]
    %v245 = vld [vmem:[#allocation5 + $0x548] sm:$0xff]
    %v246 = vld [vmem:[#allocation5 + $0x550] sm:$0xff]
    %v247 = vld [vmem:[#allocation5 + $0x558] sm:$0xff]
    %v248 = vld [vmem:[#allocation5 + $0x560] sm:$0xff]
    %v249 = vld [vmem:[#allocation5 + $0x568] sm:$0xff]
    %v250 = vld [vmem:[#allocation5 + $0x570] sm:$0xff]
    %v251 = vld [vmem:[#allocation5 + $0x578] sm:$0xff]
    %v252 = vld [vmem:[#allocation5 + $0x580] sm:$0xff]
    %v253 = vld [vmem:[#allocation5 + $0x588] sm:$0xff]
    %v254 = vld [vmem:[#allocation5 + $0x590] sm:$0xff]
    %v255 = vld [vmem:[#allocation5 + $0x598] sm:$0xff]
    %v256 = vld [vmem:[#allocation5 + $0x5a0] sm:$0xff]
    %v257 = vld [vmem:[#allocation5 + $0x5a8] sm:$0xff]
    %v258 = vld [vmem:[#allocation5 + $0x5b0] sm:$0xff]
    %v259 = vld [vmem:[#allocation5 + $0x5b8] sm:$0xff]
    %v260 = vld [vmem:[#allocation5 + $0x5c0] sm:$0xff]
    %v261 = vld [vmem:[#allocation5 + $0x5c8] sm:$0xff]
    %v262 = vld [vmem:[#allocation5 + $0x5d0] sm:$0xff]
    %v263 = vld [vmem:[#allocation5 + $0x5d8] sm:$0xff]
    %v264 = vld [vmem:[#allocation5 + $0x5e0] sm:$0xff]
    %v265 = vld [vmem:[#allocation5 + $0x5e8] sm:$0xff]
    %v266 = vld [vmem:[#allocation5 + $0x5f0] sm:$0xff]
    %v267 = vld [vmem:[#allocation5 + $0x5f8] sm:$0xff]
    %v268 = vld [vmem:[#allocation5 + $0x600] sm:$0xff]
    %v269 = vld [vmem:[#allocation5 + $0x608] sm:$0xff]
    %v270 = vld [vmem:[#allocation5 + $0x610] sm:$0xff]
    %v271 = vld [vmem:[#allocation5 + $0x618] sm:$0xff]
    %v272 = vld [vmem:[#allocation5 + $0x620] sm:$0xff]
    %v273 = vld [vmem:[#allocation5 + $0x628] sm:$0xff]
    %v274 = vld [vmem:[#allocation5 + $0x630] sm:$0xff]
    %v275 = vld [vmem:[#allocation5 + $0x638] sm:$0xff]
    %v276 = vld [vmem:[#allocation5 + $0x640] sm:$0xff]
    %v277 = vld [vmem:[#allocation5 + $0x648] sm:$0xff]
    %v278 = vld [vmem:[#allocation5 + $0x650] sm:$0xff]
    %v279 = vld [vmem:[#allocation5 + $0x658] sm:$0xff]
    %v280 = vld [vmem:[#allocation5 + $0x660] sm:$0xff]
    %v281 = vld [vmem:[#allocation5 + $0x668] sm:$0xff]
    %v282 = vld [vmem:[#allocation5 + $0x670] sm:$0xff]
    %v283 = vld [vmem:[#allocation5 + $0x678] sm:$0xff]
    %v284 = vld [vmem:[#allocation5 + $0x680] sm:$0xff]
    %v285 = vld [vmem:[#allocation5 + $0x688] sm:$0xff]
    %v286 = vld [vmem:[#allocation5 + $0x690] sm:$0xff]
    %v287 = vld [vmem:[#allocation5 + $0x698] sm:$0xff]
    %v288 = vld [vmem:[#allocation5 + $0x6a0] sm:$0xff]
    %v289 = vld [vmem:[#allocation5 + $0x6a8] sm:$0xff]
    %v290 = vld [vmem:[#allocation5 + $0x6b0] sm:$0xff]
    %v291 = vld [vmem:[#allocation5 + $0x6b8] sm:$0xff]
    %v292 = vld [vmem:[#allocation5 + $0x6c0] sm:$0xff]
    %v293 = vld [vmem:[#allocation5 + $0x6c8] sm:$0xff]
    %v294 = vld [vmem:[#allocation5 + $0x6d0] sm:$0xff]
    %v295 = vld [vmem:[#allocation5 + $0x6d8] sm:$0xff]
    %v296 = vld [vmem:[#allocation5 + $0x6e0] sm:$0xff]
    %v297 = vld [vmem:[#allocation5 + $0x6e8] sm:$0xff]
    %v298 = vld [vmem:[#allocation5 + $0x6f0] sm:$0xff]
    %v299 = vld [vmem:[#allocation5 + $0x6f8] sm:$0xff]
    %v300 = vld [vmem:[#allocation5 + $0x700] sm:$0xff]
    %v301 = vld [vmem:[#allocation5 + $0x708] sm:$0xff]
    %v302 = vld [vmem:[#allocation5 + $0x710] sm:$0xff]
    %v303 = vld [vmem:[#allocation5 + $0x718] sm:$0xff]
    %v304 = vld [vmem:[#allocation5 + $0x720] sm:$0xff]
    %v305 = vld [vmem:[#allocation5 + $0x728] sm:$0xff]
    %v306 = vld [vmem:[#allocation5 + $0x730] sm:$0xff]
    %v307 = vld [vmem:[#allocation5 + $0x738] sm:$0xff]
    %v308 = vld [vmem:[#allocation5 + $0x740] sm:$0xff]
    %v309 = vld [vmem:[#allocation5 + $0x748] sm:$0xff]
    %v310 = vld [vmem:[#allocation5 + $0x750] sm:$0xff]
    %v311 = vld [vmem:[#allocation5 + $0x758] sm:$0xff]
    %v312 = vld [vmem:[#allocation5 + $0x760] sm:$0xff]
    %v313 = vld [vmem:[#allocation5 + $0x768] sm:$0xff]
    %v314 = vld [vmem:[#allocation5 + $0x770] sm:$0xff]
    %v315 = vld [vmem:[#allocation5 + $0x778] sm:$0xff]
    %v316 = vld [vmem:[#allocation5 + $0x780] sm:$0xff]
    %v317 = vld [vmem:[#allocation5 + $0x788] sm:$0xff]
    %v318 = vld [vmem:[#allocation5 + $0x790] sm:$0xff]
    %v319 = vld [vmem:[#allocation5 + $0x798] sm:$0xff]
    %v320 = vld [vmem:[#allocation5 + $0x7a0] sm:$0xff]
    %v321 = vld [vmem:[#allocation5 + $0x7a8] sm:$0xff]
    %v322 = vld [vmem:[#allocation5 + $0x7b0] sm:$0xff]
    %v323 = vld [vmem:[#allocation5 + $0x7b8] sm:$0xff]
    %v324 = vld [vmem:[#allocation5 + $0x7c0] sm:$0xff]
    %v325 = vld [vmem:[#allocation5 + $0x7c8] sm:$0xff]
    %v326 = vld [vmem:[#allocation5 + $0x7d0] sm:$0xff]
    %v327 = vld [vmem:[#allocation5 + $0x7d8] sm:$0xff]
    %v328 = vld [vmem:[#allocation5 + $0x7e0] sm:$0xff]
    %v329 = vld [vmem:[#allocation5 + $0x7e8] sm:$0xff]
    %v330 = vld [vmem:[#allocation5 + $0x7f0] sm:$0xff]
    %v331 = vld [vmem:[#allocation5 + $0x7f8] sm:$0xff]
    %v332 = vld [vmem:[%s2] sm:$0xf]
    %v334 = vlaneseq
    %v335 = vshrl.u32 %v334, 7
    %v336 = vsub.s32 0, %v335
    %v337 = vrot.slane %v332, %v336
    %v338 = vlaneseq
    %v339 = vshrl.u32 %v338, 7
    %v340 = vsub.s32 1, %v339
    %v341 = vrot.slane %v332, %v340
    %v342 = vlaneseq
    %v343 = vshrl.u32 %v342, 7
    %v344 = vsub.s32 2, %v343
    %v345 = vrot.slane %v332, %v344
    %v346 = vlaneseq
    %v347 = vshrl.u32 %v346, 7
    %v348 = vsub.s32 3, %v347
    %v349 = vrot.slane %v332, %v348
    %v610 = vunpack.c.l.b16 %v76
    %v611 = vunpack.c.h.b16 %v76
    %v612 = vunpack.c.l.b16 %v77
    %v613 = vunpack.c.h.b16 %v77
    %v614 = vunpack.c.l.b16 %v78
    %v615 = vunpack.c.h.b16 %v78
    %v616 = vunpack.c.l.b16 %v79
    %v617 = vunpack.c.h.b16 %v79
    %v618 = vunpack.c.l.b16 %v80
    %v619 = vunpack.c.h.b16 %v80
    %v620 = vunpack.c.l.b16 %v81
    %v621 = vunpack.c.h.b16 %v81
    %v622 = vunpack.c.l.b16 %v82
    %v623 = vunpack.c.h.b16 %v82
    %v624 = vunpack.c.l.b16 %v83
    %v625 = vunpack.c.h.b16 %v83
    %v626 = vunpack.c.l.b16 %v84
    %v627 = vunpack.c.h.b16 %v84
    %v628 = vunpack.c.l.b16 %v85
    %v629 = vunpack.c.h.b16 %v85
    %v630 = vunpack.c.l.b16 %v86
    %v631 = vunpack.c.h.b16 %v86
    %v632 = vunpack.c.l.b16 %v87
    %v633 = vunpack.c.h.b16 %v87
    %v634 = vunpack.c.l.b16 %v88
    %v635 = vunpack.c.h.b16 %v88
    %v636 = vunpack.c.l.b16 %v89
    %v637 = vunpack.c.h.b16 %v89
    %v638 = vunpack.c.l.b16 %v90
    %v639 = vunpack.c.h.b16 %v90
    %v640 = vunpack.c.l.b16 %v91
    %v641 = vunpack.c.h.b16 %v91
    %v642 = vunpack.c.l.b16 %v92
    %v643 = vunpack.c.h.b16 %v92
    %v644 = vunpack.c.l.b16 %v93
    %v645 = vunpack.c.h.b16 %v93
    %v646 = vunpack.c.l.b16 %v94
    %v647 = vunpack.c.h.b16 %v94
    %v648 = vunpack.c.l.b16 %v95
    %v649 = vunpack.c.h.b16 %v95
    %v650 = vunpack.c.l.b16 %v96
    %v651 = vunpack.c.h.b16 %v96
    %v652 = vunpack.c.l.b16 %v97
    %v653 = vunpack.c.h.b16 %v97
    %v654 = vunpack.c.l.b16 %v98
    %v655 = vunpack.c.h.b16 %v98
    %v656 = vunpack.c.l.b16 %v99
    %v657 = vunpack.c.h.b16 %v99
    %v658 = vunpack.c.l.b16 %v100
    %v659 = vunpack.c.h.b16 %v100
    %v660 = vunpack.c.l.b16 %v101
    %v661 = vunpack.c.h.b16 %v101
    %v662 = vunpack.c.l.b16 %v102
    %v663 = vunpack.c.h.b16 %v102
    %v664 = vunpack.c.l.b16 %v103
    %v665 = vunpack.c.h.b16 %v103
    %v666 = vunpack.c.l.b16 %v104
    %v667 = vunpack.c.h.b16 %v104
    %v668 = vunpack.c.l.b16 %v105
    %v669 = vunpack.c.h.b16 %v105
    %v670 = vunpack.c.l.b16 %v106
    %v671 = vunpack.c.h.b16 %v106
    %v672 = vunpack.c.l.b16 %v107
    %v673 = vunpack.c.h.b16 %v107
    %v674 = vunpack.c.l.b16 %v108
    %v675 = vunpack.c.h.b16 %v108
    %v676 = vunpack.c.l.b16 %v109
    %v677 = vunpack.c.h.b16 %v109
    %v678 = vunpack.c.l.b16 %v110
    %v679 = vunpack.c.h.b16 %v110
    %v680 = vunpack.c.l.b16 %v111
    %v681 = vunpack.c.h.b16 %v111
    %v682 = vunpack.c.l.b16 %v112
    %v683 = vunpack.c.h.b16 %v112
    %v684 = vunpack.c.l.b16 %v113
    %v685 = vunpack.c.h.b16 %v113
    %v686 = vunpack.c.l.b16 %v114
    %v687 = vunpack.c.h.b16 %v114
    %v688 = vunpack.c.l.b16 %v115
    %v689 = vunpack.c.h.b16 %v115
    %v690 = vunpack.c.l.b16 %v116
    %v691 = vunpack.c.h.b16 %v116
    %v692 = vunpack.c.l.b16 %v117
    %v693 = vunpack.c.h.b16 %v117
    %v694 = vunpack.c.l.b16 %v118
    %v695 = vunpack.c.h.b16 %v118
    %v696 = vunpack.c.l.b16 %v119
    %v697 = vunpack.c.h.b16 %v119
    %v698 = vunpack.c.l.b16 %v120
    %v699 = vunpack.c.h.b16 %v120
    %v700 = vunpack.c.l.b16 %v121
    %v701 = vunpack.c.h.b16 %v121
    %v702 = vunpack.c.l.b16 %v122
    %v703 = vunpack.c.h.b16 %v122
    %v704 = vunpack.c.l.b16 %v123
    %v705 = vunpack.c.h.b16 %v123
    %v706 = vunpack.c.l.b16 %v124
    %v707 = vunpack.c.h.b16 %v124
    %v708 = vunpack.c.l.b16 %v125
    %v709 = vunpack.c.h.b16 %v125
    %v710 = vunpack.c.l.b16 %v126
    %v711 = vunpack.c.h.b16 %v126
    %v712 = vunpack.c.l.b16 %v127
    %v713 = vunpack.c.h.b16 %v127
    %v714 = vunpack.c.l.b16 %v128
    %v715 = vunpack.c.h.b16 %v128
    %v716 = vunpack.c.l.b16 %v129
    %v717 = vunpack.c.h.b16 %v129
    %v718 = vunpack.c.l.b16 %v130
    %v719 = vunpack.c.h.b16 %v130
    %v720 = vunpack.c.l.b16 %v131
    %v721 = vunpack.c.h.b16 %v131
    %v722 = vunpack.c.l.b16 %v132
    %v723 = vunpack.c.h.b16 %v132
    %v724 = vunpack.c.l.b16 %v133
    %v725 = vunpack.c.h.b16 %v133
    %v726 = vunpack.c.l.b16 %v134
    %v727 = vunpack.c.h.b16 %v134
    %v728 = vunpack.c.l.b16 %v135
    %v729 = vunpack.c.h.b16 %v135
    %v730 = vunpack.c.l.b16 %v136
    %v731 = vunpack.c.h.b16 %v136
    %v732 = vunpack.c.l.b16 %v137
    %v733 = vunpack.c.h.b16 %v137
    %v734 = vunpack.c.l.b16 %v138
    %v735 = vunpack.c.h.b16 %v138
    %v736 = vunpack.c.l.b16 %v139
    %v737 = vunpack.c.h.b16 %v139
    %v738 = vunpack.c.l.b16 %v140
    %v739 = vunpack.c.h.b16 %v140
    %v740 = vunpack.c.l.b16 %v141
    %v741 = vunpack.c.h.b16 %v141
    %v742 = vunpack.c.l.b16 %v142
    %v743 = vunpack.c.h.b16 %v142
    %v744 = vunpack.c.l.b16 %v143
    %v745 = vunpack.c.h.b16 %v143
    %v746 = vunpack.c.l.b16 %v144
    %v747 = vunpack.c.h.b16 %v144
    %v748 = vunpack.c.l.b16 %v145
    %v749 = vunpack.c.h.b16 %v145
    %v750 = vunpack.c.l.b16 %v146
    %v751 = vunpack.c.h.b16 %v146
    %v752 = vunpack.c.l.b16 %v147
    %v753 = vunpack.c.h.b16 %v147
    %v754 = vunpack.c.l.b16 %v148
    %v755 = vunpack.c.h.b16 %v148
    %v756 = vunpack.c.l.b16 %v149
    %v757 = vunpack.c.h.b16 %v149
    %v758 = vunpack.c.l.b16 %v150
    %v759 = vunpack.c.h.b16 %v150
    %v760 = vunpack.c.l.b16 %v151
    %v761 = vunpack.c.h.b16 %v151
    %v762 = vunpack.c.l.b16 %v152
    %v763 = vunpack.c.h.b16 %v152
    %v764 = vunpack.c.l.b16 %v153
    %v765 = vunpack.c.h.b16 %v153
    %v766 = vunpack.c.l.b16 %v154
    %v767 = vunpack.c.h.b16 %v154
    %v768 = vunpack.c.l.b16 %v155
    %v769 = vunpack.c.h.b16 %v155
    %v770 = vunpack.c.l.b16 %v156
    %v771 = vunpack.c.h.b16 %v156
    %v772 = vunpack.c.l.b16 %v157
    %v773 = vunpack.c.h.b16 %v157
    %v774 = vunpack.c.l.b16 %v158
    %v775 = vunpack.c.h.b16 %v158
    %v776 = vunpack.c.l.b16 %v159
    %v777 = vunpack.c.h.b16 %v159
    %v778 = vunpack.c.l.b16 %v160
    %v779 = vunpack.c.h.b16 %v160
    %v780 = vunpack.c.l.b16 %v161
    %v781 = vunpack.c.h.b16 %v161
    %v782 = vunpack.c.l.b16 %v162
    %v783 = vunpack.c.h.b16 %v162
    %v784 = vunpack.c.l.b16 %v163
    %v785 = vunpack.c.h.b16 %v163
    %v786 = vunpack.c.l.b16 %v164
    %v787 = vunpack.c.h.b16 %v164
    %v788 = vunpack.c.l.b16 %v165
    %v789 = vunpack.c.h.b16 %v165
    %v790 = vunpack.c.l.b16 %v166
    %v791 = vunpack.c.h.b16 %v166
    %v792 = vunpack.c.l.b16 %v167
    %v793 = vunpack.c.h.b16 %v167
    %v794 = vunpack.c.l.b16 %v168
    %v795 = vunpack.c.h.b16 %v168
    %v796 = vunpack.c.l.b16 %v169
    %v797 = vunpack.c.h.b16 %v169
    %v798 = vunpack.c.l.b16 %v170
    %v799 = vunpack.c.h.b16 %v170
    %v800 = vunpack.c.l.b16 %v171
    %v801 = vunpack.c.h.b16 %v171
    %v802 = vunpack.c.l.b16 %v172
    %v803 = vunpack.c.h.b16 %v172
    %v804 = vunpack.c.l.b16 %v173
    %v805 = vunpack.c.h.b16 %v173
    %v806 = vunpack.c.l.b16 %v174
    %v807 = vunpack.c.h.b16 %v174
    %v808 = vunpack.c.l.b16 %v175
    %v809 = vunpack.c.h.b16 %v175
    %v810 = vunpack.c.l.b16 %v176
    %v811 = vunpack.c.h.b16 %v176
    %v812 = vunpack.c.l.b16 %v177
    %v813 = vunpack.c.h.b16 %v177
    %v814 = vunpack.c.l.b16 %v178
    %v815 = vunpack.c.h.b16 %v178
    %v816 = vunpack.c.l.b16 %v179
    %v817 = vunpack.c.h.b16 %v179
    %v818 = vunpack.c.l.b16 %v180
    %v819 = vunpack.c.h.b16 %v180
    %v820 = vunpack.c.l.b16 %v181
    %v821 = vunpack.c.h.b16 %v181
    %v822 = vunpack.c.l.b16 %v182
    %v823 = vunpack.c.h.b16 %v182
    %v824 = vunpack.c.l.b16 %v183
    %v825 = vunpack.c.h.b16 %v183
    %v826 = vunpack.c.l.b16 %v184
    %v827 = vunpack.c.h.b16 %v184
    %v828 = vunpack.c.l.b16 %v185
    %v829 = vunpack.c.h.b16 %v185
    %v830 = vunpack.c.l.b16 %v186
    %v831 = vunpack.c.h.b16 %v186
    %v832 = vunpack.c.l.b16 %v187
    %v833 = vunpack.c.h.b16 %v187
    %v834 = vunpack.c.l.b16 %v188
    %v835 = vunpack.c.h.b16 %v188
    %v836 = vunpack.c.l.b16 %v189
    %v837 = vunpack.c.h.b16 %v189
    %v838 = vunpack.c.l.b16 %v190
    %v839 = vunpack.c.h.b16 %v190
    %v840 = vunpack.c.l.b16 %v191
    %v841 = vunpack.c.h.b16 %v191
    %v842 = vunpack.c.l.b16 %v192
    %v843 = vunpack.c.h.b16 %v192
    %v844 = vunpack.c.l.b16 %v193
    %v845 = vunpack.c.h.b16 %v193
    %v846 = vunpack.c.l.b16 %v194
    %v847 = vunpack.c.h.b16 %v194
    %v848 = vunpack.c.l.b16 %v195
    %v849 = vunpack.c.h.b16 %v195
    %v850 = vunpack.c.l.b16 %v196
    %v851 = vunpack.c.h.b16 %v196
    %v852 = vunpack.c.l.b16 %v197
    %v853 = vunpack.c.h.b16 %v197
    %v854 = vunpack.c.l.b16 %v198
    %v855 = vunpack.c.h.b16 %v198
    %v856 = vunpack.c.l.b16 %v199
    %v857 = vunpack.c.h.b16 %v199
    %v858 = vunpack.c.l.b16 %v200
    %v859 = vunpack.c.h.b16 %v200
    %v860 = vunpack.c.l.b16 %v201
    %v861 = vunpack.c.h.b16 %v201
    %v862 = vunpack.c.l.b16 %v202
    %v863 = vunpack.c.h.b16 %v202
    %v864 = vunpack.c.l.b16 %v203
    %v865 = vunpack.c.h.b16 %v203
    %v866 = vunpack.c.l.b16 %v204
    %v867 = vunpack.c.h.b16 %v204
    %v868 = vunpack.c.l.b16 %v205
    %v869 = vunpack.c.h.b16 %v205
    %v870 = vunpack.c.l.b16 %v206
    %v871 = vunpack.c.h.b16 %v206
    %v872 = vunpack.c.l.b16 %v207
    %v873 = vunpack.c.h.b16 %v207
    %v874 = vunpack.c.l.b16 %v208
    %v875 = vunpack.c.h.b16 %v208
    %v876 = vunpack.c.l.b16 %v209
    %v877 = vunpack.c.h.b16 %v209
    %v878 = vunpack.c.l.b16 %v210
    %v879 = vunpack.c.h.b16 %v210
    %v880 = vunpack.c.l.b16 %v211
    %v881 = vunpack.c.h.b16 %v211
    %v882 = vunpack.c.l.b16 %v212
    %v883 = vunpack.c.h.b16 %v212
    %v884 = vunpack.c.l.b16 %v213
    %v885 = vunpack.c.h.b16 %v213
    %v886 = vunpack.c.l.b16 %v214
    %v887 = vunpack.c.h.b16 %v214
    %v888 = vunpack.c.l.b16 %v215
    %v889 = vunpack.c.h.b16 %v215
    %v890 = vunpack.c.l.b16 %v216
    %v891 = vunpack.c.h.b16 %v216
    %v892 = vunpack.c.l.b16 %v217
    %v893 = vunpack.c.h.b16 %v217
    %v894 = vunpack.c.l.b16 %v218
    %v895 = vunpack.c.h.b16 %v218
    %v896 = vunpack.c.l.b16 %v219
    %v897 = vunpack.c.h.b16 %v219
    %v898 = vunpack.c.l.b16 %v220
    %v899 = vunpack.c.h.b16 %v220
    %v900 = vunpack.c.l.b16 %v221
    %v901 = vunpack.c.h.b16 %v221
    %v902 = vunpack.c.l.b16 %v222
    %v903 = vunpack.c.h.b16 %v222
    %v904 = vunpack.c.l.b16 %v223
    %v905 = vunpack.c.h.b16 %v223
    %v906 = vunpack.c.l.b16 %v224
    %v907 = vunpack.c.h.b16 %v224
    %v908 = vunpack.c.l.b16 %v225
    %v909 = vunpack.c.h.b16 %v225
    %v910 = vunpack.c.l.b16 %v226
    %v911 = vunpack.c.h.b16 %v226
    %v912 = vunpack.c.l.b16 %v227
    %v913 = vunpack.c.h.b16 %v227
    %v914 = vunpack.c.l.b16 %v228
    %v915 = vunpack.c.h.b16 %v228
    %v916 = vunpack.c.l.b16 %v229
    %v917 = vunpack.c.h.b16 %v229
    %v918 = vunpack.c.l.b16 %v230
    %v919 = vunpack.c.h.b16 %v230
    %v920 = vunpack.c.l.b16 %v231
    %v921 = vunpack.c.h.b16 %v231
    %v922 = vunpack.c.l.b16 %v232
    %v923 = vunpack.c.h.b16 %v232
    %v924 = vunpack.c.l.b16 %v233
    %v925 = vunpack.c.h.b16 %v233
    %v926 = vunpack.c.l.b16 %v234
    %v927 = vunpack.c.h.b16 %v234
    %v928 = vunpack.c.l.b16 %v235
    %v929 = vunpack.c.h.b16 %v235
    %v930 = vunpack.c.l.b16 %v236
    %v931 = vunpack.c.h.b16 %v236
    %v932 = vunpack.c.l.b16 %v237
    %v933 = vunpack.c.h.b16 %v237
    %v934 = vunpack.c.l.b16 %v238
    %v935 = vunpack.c.h.b16 %v238
    %v936 = vunpack.c.l.b16 %v239
    %v937 = vunpack.c.h.b16 %v239
    %v938 = vunpack.c.l.b16 %v240
    %v939 = vunpack.c.h.b16 %v240
    %v940 = vunpack.c.l.b16 %v241
    %v941 = vunpack.c.h.b16 %v241
    %v942 = vunpack.c.l.b16 %v242
    %v943 = vunpack.c.h.b16 %v242
    %v944 = vunpack.c.l.b16 %v243
    %v945 = vunpack.c.h.b16 %v243
    %v946 = vunpack.c.l.b16 %v244
    %v947 = vunpack.c.h.b16 %v244
    %v948 = vunpack.c.l.b16 %v245
    %v949 = vunpack.c.h.b16 %v245
    %v950 = vunpack.c.l.b16 %v246
    %v951 = vunpack.c.h.b16 %v246
    %v952 = vunpack.c.l.b16 %v247
    %v953 = vunpack.c.h.b16 %v247
    %v954 = vunpack.c.l.b16 %v248
    %v955 = vunpack.c.h.b16 %v248
    %v956 = vunpack.c.l.b16 %v249
    %v957 = vunpack.c.h.b16 %v249
    %v958 = vunpack.c.l.b16 %v250
    %v959 = vunpack.c.h.b16 %v250
    %v960 = vunpack.c.l.b16 %v251
    %v961 = vunpack.c.h.b16 %v251
    %v962 = vunpack.c.l.b16 %v252
    %v963 = vunpack.c.h.b16 %v252
    %v964 = vunpack.c.l.b16 %v253
    %v965 = vunpack.c.h.b16 %v253
    %v966 = vunpack.c.l.b16 %v254
    %v967 = vunpack.c.h.b16 %v254
    %v968 = vunpack.c.l.b16 %v255
    %v969 = vunpack.c.h.b16 %v255
    %v970 = vunpack.c.l.b16 %v256
    %v971 = vunpack.c.h.b16 %v256
    %v972 = vunpack.c.l.b16 %v257
    %v973 = vunpack.c.h.b16 %v257
    %v974 = vunpack.c.l.b16 %v258
    %v975 = vunpack.c.h.b16 %v258
    %v976 = vunpack.c.l.b16 %v259
    %v977 = vunpack.c.h.b16 %v259
    %v978 = vunpack.c.l.b16 %v260
    %v979 = vunpack.c.h.b16 %v260
    %v980 = vunpack.c.l.b16 %v261
    %v981 = vunpack.c.h.b16 %v261
    %v982 = vunpack.c.l.b16 %v262
    %v983 = vunpack.c.h.b16 %v262
    %v984 = vunpack.c.l.b16 %v263
    %v985 = vunpack.c.h.b16 %v263
    %v986 = vunpack.c.l.b16 %v264
    %v987 = vunpack.c.h.b16 %v264
    %v988 = vunpack.c.l.b16 %v265
    %v989 = vunpack.c.h.b16 %v265
    %v990 = vunpack.c.l.b16 %v266
    %v991 = vunpack.c.h.b16 %v266
    %v992 = vunpack.c.l.b16 %v267
    %v993 = vunpack.c.h.b16 %v267
    %v994 = vunpack.c.l.b16 %v268
    %v995 = vunpack.c.h.b16 %v268
    %v996 = vunpack.c.l.b16 %v269
    %v997 = vunpack.c.h.b16 %v269
    %v998 = vunpack.c.l.b16 %v270
    %v999 = vunpack.c.h.b16 %v270
    %v1000 = vunpack.c.l.b16 %v271
    %v1001 = vunpack.c.h.b16 %v271
    %v1002 = vunpack.c.l.b16 %v272
    %v1003 = vunpack.c.h.b16 %v272
    %v1004 = vunpack.c.l.b16 %v273
    %v1005 = vunpack.c.h.b16 %v273
    %v1006 = vunpack.c.l.b16 %v274
    %v1007 = vunpack.c.h.b16 %v274
    %v1008 = vunpack.c.l.b16 %v275
    %v1009 = vunpack.c.h.b16 %v275
    %v1010 = vunpack.c.l.b16 %v276
    %v1011 = vunpack.c.h.b16 %v276
    %v1012 = vunpack.c.l.b16 %v277
    %v1013 = vunpack.c.h.b16 %v277
    %v1014 = vunpack.c.l.b16 %v278
    %v1015 = vunpack.c.h.b16 %v278
    %v1016 = vunpack.c.l.b16 %v279
    %v1017 = vunpack.c.h.b16 %v279
    %v1018 = vunpack.c.l.b16 %v280
    %v1019 = vunpack.c.h.b16 %v280
    %v1020 = vunpack.c.l.b16 %v281
    %v1021 = vunpack.c.h.b16 %v281
    %v1022 = vunpack.c.l.b16 %v282
    %v1023 = vunpack.c.h.b16 %v282
    %v1024 = vunpack.c.l.b16 %v283
    %v1025 = vunpack.c.h.b16 %v283
    %v1026 = vunpack.c.l.b16 %v284
    %v1027 = vunpack.c.h.b16 %v284
    %v1028 = vunpack.c.l.b16 %v285
    %v1029 = vunpack.c.h.b16 %v285
    %v1030 = vunpack.c.l.b16 %v286
    %v1031 = vunpack.c.h.b16 %v286
    %v1032 = vunpack.c.l.b16 %v287
    %v1033 = vunpack.c.h.b16 %v287
    %v1034 = vunpack.c.l.b16 %v288
    %v1035 = vunpack.c.h.b16 %v288
    %v1036 = vunpack.c.l.b16 %v289
    %v1037 = vunpack.c.h.b16 %v289
    %v1038 = vunpack.c.l.b16 %v290
    %v1039 = vunpack.c.h.b16 %v290
    %v1040 = vunpack.c.l.b16 %v291
    %v1041 = vunpack.c.h.b16 %v291
    %v1042 = vunpack.c.l.b16 %v292
    %v1043 = vunpack.c.h.b16 %v292
    %v1044 = vunpack.c.l.b16 %v293
    %v1045 = vunpack.c.h.b16 %v293
    %v1046 = vunpack.c.l.b16 %v294
    %v1047 = vunpack.c.h.b16 %v294
    %v1048 = vunpack.c.l.b16 %v295
    %v1049 = vunpack.c.h.b16 %v295
    %v1050 = vunpack.c.l.b16 %v296
    %v1051 = vunpack.c.h.b16 %v296
    %v1052 = vunpack.c.l.b16 %v297
    %v1053 = vunpack.c.h.b16 %v297
    %v1054 = vunpack.c.l.b16 %v298
    %v1055 = vunpack.c.h.b16 %v298
    %v1056 = vunpack.c.l.b16 %v299
    %v1057 = vunpack.c.h.b16 %v299
    %v1058 = vunpack.c.l.b16 %v300
    %v1059 = vunpack.c.h.b16 %v300
    %v1060 = vunpack.c.l.b16 %v301
    %v1061 = vunpack.c.h.b16 %v301
    %v1062 = vunpack.c.l.b16 %v302
    %v1063 = vunpack.c.h.b16 %v302
    %v1064 = vunpack.c.l.b16 %v303
    %v1065 = vunpack.c.h.b16 %v303
    %v1066 = vunpack.c.l.b16 %v304
    %v1067 = vunpack.c.h.b16 %v304
    %v1068 = vunpack.c.l.b16 %v305
    %v1069 = vunpack.c.h.b16 %v305
    %v1070 = vunpack.c.l.b16 %v306
    %v1071 = vunpack.c.h.b16 %v306
    %v1072 = vunpack.c.l.b16 %v307
    %v1073 = vunpack.c.h.b16 %v307
    %v1074 = vunpack.c.l.b16 %v308
    %v1075 = vunpack.c.h.b16 %v308
    %v1076 = vunpack.c.l.b16 %v309
    %v1077 = vunpack.c.h.b16 %v309
    %v1078 = vunpack.c.l.b16 %v310
    %v1079 = vunpack.c.h.b16 %v310
    %v1080 = vunpack.c.l.b16 %v311
    %v1081 = vunpack.c.h.b16 %v311
    %v1082 = vunpack.c.l.b16 %v312
    %v1083 = vunpack.c.h.b16 %v312
    %v1084 = vunpack.c.l.b16 %v313
    %v1085 = vunpack.c.h.b16 %v313
    %v1086 = vunpack.c.l.b16 %v314
    %v1087 = vunpack.c.h.b16 %v314
    %v1088 = vunpack.c.l.b16 %v315
    %v1089 = vunpack.c.h.b16 %v315
    %v1090 = vunpack.c.l.b16 %v316
    %v1091 = vunpack.c.h.b16 %v316
    %v1092 = vunpack.c.l.b16 %v317
    %v1093 = vunpack.c.h.b16 %v317
    %v1094 = vunpack.c.l.b16 %v318
    %v1095 = vunpack.c.h.b16 %v318
    %v1096 = vunpack.c.l.b16 %v319
    %v1097 = vunpack.c.h.b16 %v319
    %v1098 = vunpack.c.l.b16 %v320
    %v1099 = vunpack.c.h.b16 %v320
    %v1100 = vunpack.c.l.b16 %v321
    %v1101 = vunpack.c.h.b16 %v321
    %v1102 = vunpack.c.l.b16 %v322
    %v1103 = vunpack.c.h.b16 %v322
    %v1104 = vunpack.c.l.b16 %v323
    %v1105 = vunpack.c.h.b16 %v323
    %v1106 = vunpack.c.l.b16 %v324
    %v1107 = vunpack.c.h.b16 %v324
    %v1108 = vunpack.c.l.b16 %v325
    %v1109 = vunpack.c.h.b16 %v325
    %v1110 = vunpack.c.l.b16 %v326
    %v1111 = vunpack.c.h.b16 %v326
    %v1112 = vunpack.c.l.b16 %v327
    %v1113 = vunpack.c.h.b16 %v327
    %v1114 = vunpack.c.l.b16 %v328
    %v1115 = vunpack.c.h.b16 %v328
    %v1116 = vunpack.c.l.b16 %v329
    %v1117 = vunpack.c.h.b16 %v329
    %v1118 = vunpack.c.l.b16 %v330
    %v1119 = vunpack.c.h.b16 %v330
    %v1120 = vunpack.c.l.b16 %v331
    %v1121 = vunpack.c.h.b16 %v331
    %v1122 = vpack.c.b16 %v614, %v610
    %v1123 = vpack.c.b16 %v615, %v611
    %v1124 = vpack.c.b16 %v616, %v612
    %v1125 = vpack.c.b16 %v617, %v613
    %v1126 = vpack.c.b16 %v622, %v618
    %v1127 = vpack.c.b16 %v623, %v619
    %v1128 = vpack.c.b16 %v624, %v620
    %v1129 = vpack.c.b16 %v625, %v621
    %v1130 = vpack.c.b16 %v630, %v626
    %v1131 = vpack.c.b16 %v631, %v627
    %v1132 = vpack.c.b16 %v632, %v628
    %v1133 = vpack.c.b16 %v633, %v629
    %v1134 = vpack.c.b16 %v638, %v634
    %v1135 = vpack.c.b16 %v639, %v635
    %v1136 = vpack.c.b16 %v640, %v636
    %v1137 = vpack.c.b16 %v641, %v637
    %v1138 = vpack.c.b16 %v646, %v642
    %v1139 = vpack.c.b16 %v647, %v643
    %v1140 = vpack.c.b16 %v648, %v644
    %v1141 = vpack.c.b16 %v649, %v645
    %v1142 = vpack.c.b16 %v654, %v650
    %v1143 = vpack.c.b16 %v655, %v651
    %v1144 = vpack.c.b16 %v656, %v652
    %v1145 = vpack.c.b16 %v657, %v653
    %v1146 = vpack.c.b16 %v662, %v658
    %v1147 = vpack.c.b16 %v663, %v659
    %v1148 = vpack.c.b16 %v664, %v660
    %v1149 = vpack.c.b16 %v665, %v661
    %v1150 = vpack.c.b16 %v670, %v666
    %v1151 = vpack.c.b16 %v671, %v667
    %v1152 = vpack.c.b16 %v672, %v668
    %v1153 = vpack.c.b16 %v673, %v669
    %v1154 = vpack.c.b16 %v678, %v674
    %v1155 = vpack.c.b16 %v679, %v675
    %v1156 = vpack.c.b16 %v680, %v676
    %v1157 = vpack.c.b16 %v681, %v677
    %v1158 = vpack.c.b16 %v686, %v682
    %v1159 = vpack.c.b16 %v687, %v683
    %v1160 = vpack.c.b16 %v688, %v684
    %v1161 = vpack.c.b16 %v689, %v685
    %v1162 = vpack.c.b16 %v694, %v690
    %v1163 = vpack.c.b16 %v695, %v691
    %v1164 = vpack.c.b16 %v696, %v692
    %v1165 = vpack.c.b16 %v697, %v693
    %v1166 = vpack.c.b16 %v702, %v698
    %v1167 = vpack.c.b16 %v703, %v699
    %v1168 = vpack.c.b16 %v704, %v700
    %v1169 = vpack.c.b16 %v705, %v701
    %v1170 = vpack.c.b16 %v710, %v706
    %v1171 = vpack.c.b16 %v711, %v707
    %v1172 = vpack.c.b16 %v712, %v708
    %v1173 = vpack.c.b16 %v713, %v709
    %v1174 = vpack.c.b16 %v718, %v714
    %v1175 = vpack.c.b16 %v719, %v715
    %v1176 = vpack.c.b16 %v720, %v716
    %v1177 = vpack.c.b16 %v721, %v717
    %v1178 = vpack.c.b16 %v726, %v722
    %v1179 = vpack.c.b16 %v727, %v723
    %v1180 = vpack.c.b16 %v728, %v724
    %v1181 = vpack.c.b16 %v729, %v725
    %v1182 = vpack.c.b16 %v734, %v730
    %v1183 = vpack.c.b16 %v735, %v731
    %v1184 = vpack.c.b16 %v736, %v732
    %v1185 = vpack.c.b16 %v737, %v733
    %v1186 = vpack.c.b16 %v742, %v738
    %v1187 = vpack.c.b16 %v743, %v739
    %v1188 = vpack.c.b16 %v744, %v740
    %v1189 = vpack.c.b16 %v745, %v741
    %v1190 = vpack.c.b16 %v750, %v746
    %v1191 = vpack.c.b16 %v751, %v747
    %v1192 = vpack.c.b16 %v752, %v748
    %v1193 = vpack.c.b16 %v753, %v749
    %v1194 = vpack.c.b16 %v758, %v754
    %v1195 = vpack.c.b16 %v759, %v755
    %v1196 = vpack.c.b16 %v760, %v756
    %v1197 = vpack.c.b16 %v761, %v757
    %v1198 = vpack.c.b16 %v766, %v762
    %v1199 = vpack.c.b16 %v767, %v763
    %v1200 = vpack.c.b16 %v768, %v764
    %v1201 = vpack.c.b16 %v769, %v765
    %v1202 = vpack.c.b16 %v774, %v770
    %v1203 = vpack.c.b16 %v775, %v771
    %v1204 = vpack.c.b16 %v776, %v772
    %v1205 = vpack.c.b16 %v777, %v773
    %v1206 = vpack.c.b16 %v782, %v778
    %v1207 = vpack.c.b16 %v783, %v779
    %v1208 = vpack.c.b16 %v784, %v780
    %v1209 = vpack.c.b16 %v785, %v781
    %v1210 = vpack.c.b16 %v790, %v786
    %v1211 = vpack.c.b16 %v791, %v787
    %v1212 = vpack.c.b16 %v792, %v788
    %v1213 = vpack.c.b16 %v793, %v789
    %v1214 = vpack.c.b16 %v798, %v794
    %v1215 = vpack.c.b16 %v799, %v795
    %v1216 = vpack.c.b16 %v800, %v796
    %v1217 = vpack.c.b16 %v801, %v797
    %v1218 = vpack.c.b16 %v806, %v802
    %v1219 = vpack.c.b16 %v807, %v803
    %v1220 = vpack.c.b16 %v808, %v804
    %v1221 = vpack.c.b16 %v809, %v805
    %v1222 = vpack.c.b16 %v814, %v810
    %v1223 = vpack.c.b16 %v815, %v811
    %v1224 = vpack.c.b16 %v816, %v812
    %v1225 = vpack.c.b16 %v817, %v813
    %v1226 = vpack.c.b16 %v822, %v818
    %v1227 = vpack.c.b16 %v823, %v819
    %v1228 = vpack.c.b16 %v824, %v820
    %v1229 = vpack.c.b16 %v825, %v821
    %v1230 = vpack.c.b16 %v830, %v826
    %v1231 = vpack.c.b16 %v831, %v827
    %v1232 = vpack.c.b16 %v832, %v828
    %v1233 = vpack.c.b16 %v833, %v829
    %v1234 = vpack.c.b16 %v838, %v834
    %v1235 = vpack.c.b16 %v839, %v835
    %v1236 = vpack.c.b16 %v840, %v836
    %v1237 = vpack.c.b16 %v841, %v837
    %v1238 = vpack.c.b16 %v846, %v842
    %v1239 = vpack.c.b16 %v847, %v843
    %v1240 = vpack.c.b16 %v848, %v844
    %v1241 = vpack.c.b16 %v849, %v845
    %v1242 = vpack.c.b16 %v854, %v850
    %v1243 = vpack.c.b16 %v855, %v851
    %v1244 = vpack.c.b16 %v856, %v852
    %v1245 = vpack.c.b16 %v857, %v853
    %v1246 = vpack.c.b16 %v862, %v858
    %v1247 = vpack.c.b16 %v863, %v859
    %v1248 = vpack.c.b16 %v864, %v860
    %v1249 = vpack.c.b16 %v865, %v861
    %v1250 = vpack.c.b16 %v870, %v866
    %v1251 = vpack.c.b16 %v871, %v867
    %v1252 = vpack.c.b16 %v872, %v868
    %v1253 = vpack.c.b16 %v873, %v869
    %v1254 = vpack.c.b16 %v878, %v874
    %v1255 = vpack.c.b16 %v879, %v875
    %v1256 = vpack.c.b16 %v880, %v876
    %v1257 = vpack.c.b16 %v881, %v877
    %v1258 = vpack.c.b16 %v886, %v882
    %v1259 = vpack.c.b16 %v887, %v883
    %v1260 = vpack.c.b16 %v888, %v884
    %v1261 = vpack.c.b16 %v889, %v885
    %v1262 = vpack.c.b16 %v894, %v890
    %v1263 = vpack.c.b16 %v895, %v891
    %v1264 = vpack.c.b16 %v896, %v892
    %v1265 = vpack.c.b16 %v897, %v893
    %v1266 = vpack.c.b16 %v902, %v898
    %v1267 = vpack.c.b16 %v903, %v899
    %v1268 = vpack.c.b16 %v904, %v900
    %v1269 = vpack.c.b16 %v905, %v901
    %v1270 = vpack.c.b16 %v910, %v906
    %v1271 = vpack.c.b16 %v911, %v907
    %v1272 = vpack.c.b16 %v912, %v908
    %v1273 = vpack.c.b16 %v913, %v909
    %v1274 = vpack.c.b16 %v918, %v914
    %v1275 = vpack.c.b16 %v919, %v915
    %v1276 = vpack.c.b16 %v920, %v916
    %v1277 = vpack.c.b16 %v921, %v917
    %v1278 = vpack.c.b16 %v926, %v922
    %v1279 = vpack.c.b16 %v927, %v923
    %v1280 = vpack.c.b16 %v928, %v924
    %v1281 = vpack.c.b16 %v929, %v925
    %v1282 = vpack.c.b16 %v934, %v930
    %v1283 = vpack.c.b16 %v935, %v931
    %v1284 = vpack.c.b16 %v936, %v932
    %v1285 = vpack.c.b16 %v937, %v933
    %v1286 = vpack.c.b16 %v942, %v938
    %v1287 = vpack.c.b16 %v943, %v939
    %v1288 = vpack.c.b16 %v944, %v940
    %v1289 = vpack.c.b16 %v945, %v941
    %v1290 = vpack.c.b16 %v950, %v946
    %v1291 = vpack.c.b16 %v951, %v947
    %v1292 = vpack.c.b16 %v952, %v948
    %v1293 = vpack.c.b16 %v953, %v949
    %v1294 = vpack.c.b16 %v958, %v954
    %v1295 = vpack.c.b16 %v959, %v955
    %v1296 = vpack.c.b16 %v960, %v956
    %v1297 = vpack.c.b16 %v961, %v957
    %v1298 = vpack.c.b16 %v966, %v962
    %v1299 = vpack.c.b16 %v967, %v963
    %v1300 = vpack.c.b16 %v968, %v964
    %v1301 = vpack.c.b16 %v969, %v965
    %v1302 = vpack.c.b16 %v974, %v970
    %v1303 = vpack.c.b16 %v975, %v971
    %v1304 = vpack.c.b16 %v976, %v972
    %v1305 = vpack.c.b16 %v977, %v973
    %v1306 = vpack.c.b16 %v982, %v978
    %v1307 = vpack.c.b16 %v983, %v979
    %v1308 = vpack.c.b16 %v984, %v980
    %v1309 = vpack.c.b16 %v985, %v981
    %v1310 = vpack.c.b16 %v990, %v986
    %v1311 = vpack.c.b16 %v991, %v987
    %v1312 = vpack.c.b16 %v992, %v988
    %v1313 = vpack.c.b16 %v993, %v989
    %v1314 = vpack.c.b16 %v998, %v994
    %v1315 = vpack.c.b16 %v999, %v995
    %v1316 = vpack.c.b16 %v1000, %v996
    %v1317 = vpack.c.b16 %v1001, %v997
    %v1318 = vpack.c.b16 %v1006, %v1002
    %v1319 = vpack.c.b16 %v1007, %v1003
    %v1320 = vpack.c.b16 %v1008, %v1004
    %v1321 = vpack.c.b16 %v1009, %v1005
    %v1322 = vpack.c.b16 %v1014, %v1010
    %v1323 = vpack.c.b16 %v1015, %v1011
    %v1324 = vpack.c.b16 %v1016, %v1012
    %v1325 = vpack.c.b16 %v1017, %v1013
    %v1326 = vpack.c.b16 %v1022, %v1018
    %v1327 = vpack.c.b16 %v1023, %v1019
    %v1328 = vpack.c.b16 %v1024, %v1020
    %v1329 = vpack.c.b16 %v1025, %v1021
    %v1330 = vpack.c.b16 %v1030, %v1026
    %v1331 = vpack.c.b16 %v1031, %v1027
    %v1332 = vpack.c.b16 %v1032, %v1028
    %v1333 = vpack.c.b16 %v1033, %v1029
    %v1334 = vpack.c.b16 %v1038, %v1034
    %v1335 = vpack.c.b16 %v1039, %v1035
    %v1336 = vpack.c.b16 %v1040, %v1036
    %v1337 = vpack.c.b16 %v1041, %v1037
    %v1338 = vpack.c.b16 %v1046, %v1042
    %v1339 = vpack.c.b16 %v1047, %v1043
    %v1340 = vpack.c.b16 %v1048, %v1044
    %v1341 = vpack.c.b16 %v1049, %v1045
    %v1342 = vpack.c.b16 %v1054, %v1050
    %v1343 = vpack.c.b16 %v1055, %v1051
    %v1344 = vpack.c.b16 %v1056, %v1052
    %v1345 = vpack.c.b16 %v1057, %v1053
    %v1346 = vpack.c.b16 %v1062, %v1058
    %v1347 = vpack.c.b16 %v1063, %v1059
    %v1348 = vpack.c.b16 %v1064, %v1060
    %v1349 = vpack.c.b16 %v1065, %v1061
    %v1350 = vpack.c.b16 %v1070, %v1066
    %v1351 = vpack.c.b16 %v1071, %v1067
    %v1352 = vpack.c.b16 %v1072, %v1068
    %v1353 = vpack.c.b16 %v1073, %v1069
    %v1354 = vpack.c.b16 %v1078, %v1074
    %v1355 = vpack.c.b16 %v1079, %v1075
    %v1356 = vpack.c.b16 %v1080, %v1076
    %v1357 = vpack.c.b16 %v1081, %v1077
    %v1358 = vpack.c.b16 %v1086, %v1082
    %v1359 = vpack.c.b16 %v1087, %v1083
    %v1360 = vpack.c.b16 %v1088, %v1084
    %v1361 = vpack.c.b16 %v1089, %v1085
    %v1362 = vpack.c.b16 %v1094, %v1090
    %v1363 = vpack.c.b16 %v1095, %v1091
    %v1364 = vpack.c.b16 %v1096, %v1092
    %v1365 = vpack.c.b16 %v1097, %v1093
    %v1366 = vpack.c.b16 %v1102, %v1098
    %v1367 = vpack.c.b16 %v1103, %v1099
    %v1368 = vpack.c.b16 %v1104, %v1100
    %v1369 = vpack.c.b16 %v1105, %v1101
    %v1370 = vpack.c.b16 %v1110, %v1106
    %v1371 = vpack.c.b16 %v1111, %v1107
    %v1372 = vpack.c.b16 %v1112, %v1108
    %v1373 = vpack.c.b16 %v1113, %v1109
    %v1374 = vpack.c.b16 %v1118, %v1114
    %v1375 = vpack.c.b16 %v1119, %v1115
    %v1376 = vpack.c.b16 %v1120, %v1116
    %v1377 = vpack.c.b16 %v1121, %v1117
    %1634 = vmatprep.subr.bf16.mxu0 %v1123
    %1635 = vmatpush1.bf16.msra.mxu0 %v1122
    %1636 = vmatprep.subr.bf16.mxu0 %v1127
    %1637 = vmatpush1.bf16.msra.mxu0 %v1126
    %1638 = vmatprep.subr.bf16.mxu0 %v1131
    %1639 = vmatpush1.bf16.msra.mxu0 %v1130
    %1640 = vmatprep.subr.bf16.mxu0 %v1135
    %1641 = vmatpush1.bf16.msra.mxu0 %v1134
    %1642 = vmatprep.subr.bf16.mxu0 %v1139
    %1643 = vmatpush1.bf16.msra.mxu0 %v1138
    %1644 = vmatprep.subr.bf16.mxu0 %v1143
    %1645 = vmatpush1.bf16.msra.mxu0 %v1142
    %1646 = vmatprep.subr.bf16.mxu0 %v1147
    %1647 = vmatpush1.bf16.msra.mxu0 %v1146
    %1648 = vmatprep.subr.bf16.mxu0 %v1151
    %1649 = vmatpush1.bf16.msra.mxu0 %v1150
    %1650 = vmatprep.subr.bf16.mxu0 %v1155
    %1651 = vmatpush1.bf16.msra.mxu0 %v1154
    %1652 = vmatprep.subr.bf16.mxu0 %v1159
    %1653 = vmatpush1.bf16.msra.mxu0 %v1158
    %1654 = vmatprep.subr.bf16.mxu0 %v1163
    %1655 = vmatpush1.bf16.msra.mxu0 %v1162
    %1656 = vmatprep.subr.bf16.mxu0 %v1167
    %1657 = vmatpush1.bf16.msra.mxu0 %v1166
    %1658 = vmatprep.subr.bf16.mxu0 %v1171
    %1659 = vmatpush1.bf16.msra.mxu0 %v1170
    %1660 = vmatprep.subr.bf16.mxu0 %v1175
    %1661 = vmatpush1.bf16.msra.mxu0 %v1174
    %1662 = vmatprep.subr.bf16.mxu0 %v1179
    %1663 = vmatpush1.bf16.msra.mxu0 %v1178
    %1664 = vmatprep.subr.bf16.mxu0 %v1183
    %1665 = vmatpush1.bf16.msra.mxu0 %v1182
    %1666 = vmatprep.mubr.bf16.mxu0 %v69
    %1667 = vmatmul.mubr.bf16.gmra.mrb[0].mxu0 %v68
    %v1668 = vpop.f32.mrb[0].mxu0
    %v1669 = vadd.f32 %v337, %v1668
    %v1670 = vpop.f32.mrb[0].mxu0
    %v1671 = vadd.f32 %v341, %v1670
    %v1672 = vpop.f32.mrb[0].mxu0
    %v1673 = vpop.f32.mrb[0].mxu0
    %1674 = vdwg.mxu0
    %1675 = vmatprep.subr.bf16.mxu0 %v1187
    %1676 = vmatpush1.bf16.msra.mxu0 %v1186
    %1677 = vmatprep.subr.bf16.mxu0 %v1191
    %1678 = vmatpush1.bf16.msra.mxu0 %v1190
    %1679 = vmatprep.subr.bf16.mxu0 %v1195
    %1680 = vmatpush1.bf16.msra.mxu0 %v1194
    %1681 = vmatprep.subr.bf16.mxu0 %v1199
    %1682 = vmatpush1.bf16.msra.mxu0 %v1198
    %1683 = vmatprep.subr.bf16.mxu0 %v1203
    %1684 = vmatpush1.bf16.msra.mxu0 %v1202
    %1685 = vmatprep.subr.bf16.mxu0 %v1207
    %1686 = vmatpush1.bf16.msra.mxu0 %v1206
    %1687 = vmatprep.subr.bf16.mxu0 %v1211
    %1688 = vmatpush1.bf16.msra.mxu0 %v1210
    %1689 = vmatprep.subr.bf16.mxu0 %v1215
    %1690 = vmatpush1.bf16.msra.mxu0 %v1214
    %1691 = vmatprep.subr.bf16.mxu0 %v1219
    %1692 = vmatpush1.bf16.msra.mxu0 %v1218
    %1693 = vmatprep.subr.bf16.mxu0 %v1223
    %1694 = vmatpush1.bf16.msra.mxu0 %v1222
    %1695 = vmatprep.subr.bf16.mxu0 %v1227
    %1696 = vmatpush1.bf16.msra.mxu0 %v1226
    %1697 = vmatprep.subr.bf16.mxu0 %v1231
    %1698 = vmatpush1.bf16.msra.mxu0 %v1230
    %1699 = vmatprep.subr.bf16.mxu0 %v1235
    %1700 = vmatpush1.bf16.msra.mxu0 %v1234
    %1701 = vmatprep.subr.bf16.mxu0 %v1239
    %1702 = vmatpush1.bf16.msra.mxu0 %v1238
    %1703 = vmatprep.subr.bf16.mxu0 %v1243
    %1704 = vmatpush1.bf16.msra.mxu0 %v1242
    %1705 = vmatprep.subr.bf16.mxu0 %v1247
    %1706 = vmatpush1.bf16.msra.mxu0 %v1246
    %1707 = vmatprep.mubr.bf16.mxu0 %v71
    %1708 = vmatmul.mubr.bf16.gmra.mrb[0].mxu0 %v70
    %v1709 = vpop.f32.mrb[0].mxu0
    %v1710 = vadd.f32 %v1669, %v1709
    %v1711 = vpop.f32.mrb[0].mxu0
    %v1712 = vadd.f32 %v1671, %v1711
    %v1713 = vpop.f32.mrb[0].mxu0
    %v1714 = vpop.f32.mrb[0].mxu0
    %1715 = vdwg.mxu0
    %1716 = vmatprep.subr.bf16.mxu0 %v1251
    %1717 = vmatpush1.bf16.msra.mxu0 %v1250
    %1718 = vmatprep.subr.bf16.mxu0 %v1255
    %1719 = vmatpush1.bf16.msra.mxu0 %v1254
    %1720 = vmatprep.subr.bf16.mxu0 %v1259
    %1721 = vmatpush1.bf16.msra.mxu0 %v1258
    %1722 = vmatprep.subr.bf16.mxu0 %v1263
    %1723 = vmatpush1.bf16.msra.mxu0 %v1262
    %1724 = vmatprep.subr.bf16.mxu0 %v1267
    %1725 = vmatpush1.bf16.msra.mxu0 %v1266
    %1726 = vmatprep.subr.bf16.mxu0 %v1271
    %1727 = vmatpush1.bf16.msra.mxu0 %v1270
    %1728 = vmatprep.subr.bf16.mxu0 %v1275
    %1729 = vmatpush1.bf16.msra.mxu0 %v1274
    %1730 = vmatprep.subr.bf16.mxu0 %v1279
    %1731 = vmatpush1.bf16.msra.mxu0 %v1278
    %1732 = vmatprep.subr.bf16.mxu0 %v1283
    %1733 = vmatpush1.bf16.msra.mxu0 %v1282
    %1734 = vmatprep.subr.bf16.mxu0 %v1287
    %1735 = vmatpush1.bf16.msra.mxu0 %v1286
    %1736 = vmatprep.subr.bf16.mxu0 %v1291
    %1737 = vmatpush1.bf16.msra.mxu0 %v1290
    %1738 = vmatprep.subr.bf16.mxu0 %v1295
    %1739 = vmatpush1.bf16.msra.mxu0 %v1294
    %1740 = vmatprep.subr.bf16.mxu0 %v1299
    %1741 = vmatpush1.bf16.msra.mxu0 %v1298
    %1742 = vmatprep.subr.bf16.mxu0 %v1303
    %1743 = vmatpush1.bf16.msra.mxu0 %v1302
    %1744 = vmatprep.subr.bf16.mxu0 %v1307
    %1745 = vmatpush1.bf16.msra.mxu0 %v1306
    %1746 = vmatprep.subr.bf16.mxu0 %v1311
    %1747 = vmatpush1.bf16.msra.mxu0 %v1310
    %1748 = vmatprep.mubr.bf16.mxu0 %v73
    %1749 = vmatmul.mubr.bf16.gmra.mrb[0].mxu0 %v72
    %v1750 = vpop.f32.mrb[0].mxu0
    %v1751 = vadd.f32 %v1710, %v1750
    %v1752 = vpop.f32.mrb[0].mxu0
    %v1753 = vadd.f32 %v1712, %v1752
    %v1754 = vpop.f32.mrb[0].mxu0
    %v1755 = vpop.f32.mrb[0].mxu0
    %1756 = vdwg.mxu0
    %1757 = vmatprep.subr.bf16.mxu0 %v1315
    %1758 = vmatpush1.bf16.msra.mxu0 %v1314
    %1759 = vmatprep.subr.bf16.mxu0 %v1319
    %1760 = vmatpush1.bf16.msra.mxu0 %v1318
    %1761 = vmatprep.subr.bf16.mxu0 %v1323
    %1762 = vmatpush1.bf16.msra.mxu0 %v1322
    %1763 = vmatprep.subr.bf16.mxu0 %v1327
    %1764 = vmatpush1.bf16.msra.mxu0 %v1326
    %1765 = vmatprep.subr.bf16.mxu0 %v1331
    %1766 = vmatpush1.bf16.msra.mxu0 %v1330
    %1767 = vmatprep.subr.bf16.mxu0 %v1335
    %1768 = vmatpush1.bf16.msra.mxu0 %v1334
    %1769 = vmatprep.subr.bf16.mxu0 %v1339
    %1770 = vmatpush1.bf16.msra.mxu0 %v1338
    %1771 = vmatprep.subr.bf16.mxu0 %v1343
    %1772 = vmatpush1.bf16.msra.mxu0 %v1342
    %1773 = vmatprep.subr.bf16.mxu0 %v1347
    %1774 = vmatpush1.bf16.msra.mxu0 %v1346
    %1775 = vmatprep.subr.bf16.mxu0 %v1351
    %1776 = vmatpush1.bf16.msra.mxu0 %v1350
    %1777 = vmatprep.subr.bf16.mxu0 %v1355
    %1778 = vmatpush1.bf16.msra.mxu0 %v1354
    %1779 = vmatprep.subr.bf16.mxu0 %v1359
    %1780 = vmatpush1.bf16.msra.mxu0 %v1358
    %1781 = vmatprep.subr.bf16.mxu0 %v1363
    %1782 = vmatpush1.bf16.msra.mxu0 %v1362
    %1783 = vmatprep.subr.bf16.mxu0 %v1367
    %1784 = vmatpush1.bf16.msra.mxu0 %v1366
    %1785 = vmatprep.subr.bf16.mxu0 %v1371
    %1786 = vmatpush1.bf16.msra.mxu0 %v1370
    %1787 = vmatprep.subr.bf16.mxu0 %v1375
    %1788 = vmatpush1.bf16.msra.mxu0 %v1374
    %1789 = vmatprep.mubr.bf16.mxu0 %v75
    %1790 = vmatmul.mubr.bf16.gmra.mrb[0].mxu0 %v74
    %v1791 = vpop.f32.mrb[0].mxu0
    %v1792 = vadd.f32 %v1751, %v1791
    %v1793 = vpop.f32.mrb[0].mxu0
    %v1794 = vadd.f32 %v1753, %v1793
    %v1795 = vpop.f32.mrb[0].mxu0
    %v1796 = vpop.f32.mrb[0].mxu0
    %1797 = vdwg.mxu0
    %1798 = vmatprep.subr.bf16.mxu0 %v1125
    %1799 = vmatpush1.bf16.msra.mxu0 %v1124
    %1800 = vmatprep.subr.bf16.mxu0 %v1129
    %1801 = vmatpush1.bf16.msra.mxu0 %v1128
    %1802 = vmatprep.subr.bf16.mxu0 %v1133
    %1803 = vmatpush1.bf16.msra.mxu0 %v1132
    %1804 = vmatprep.subr.bf16.mxu0 %v1137
    %1805 = vmatpush1.bf16.msra.mxu0 %v1136
    %1806 = vmatprep.subr.bf16.mxu0 %v1141
    %1807 = vmatpush1.bf16.msra.mxu0 %v1140
    %1808 = vmatprep.subr.bf16.mxu0 %v1145
    %1809 = vmatpush1.bf16.msra.mxu0 %v1144
    %1810 = vmatprep.subr.bf16.mxu0 %v1149
    %1811 = vmatpush1.bf16.msra.mxu0 %v1148
    %1812 = vmatprep.subr.bf16.mxu0 %v1153
    %1813 = vmatpush1.bf16.msra.mxu0 %v1152
    %1814 = vmatprep.subr.bf16.mxu0 %v1157
    %1815 = vmatpush1.bf16.msra.mxu0 %v1156
    %1816 = vmatprep.subr.bf16.mxu0 %v1161
    %1817 = vmatpush1.bf16.msra.mxu0 %v1160
    %1818 = vmatprep.subr.bf16.mxu0 %v1165
    %1819 = vmatpush1.bf16.msra.mxu0 %v1164
    %1820 = vmatprep.subr.bf16.mxu0 %v1169
    %1821 = vmatpush1.bf16.msra.mxu0 %v1168
    %1822 = vmatprep.subr.bf16.mxu0 %v1173
    %1823 = vmatpush1.bf16.msra.mxu0 %v1172
    %1824 = vmatprep.subr.bf16.mxu0 %v1177
    %1825 = vmatpush1.bf16.msra.mxu0 %v1176
    %1826 = vmatprep.subr.bf16.mxu0 %v1181
    %1827 = vmatpush1.bf16.msra.mxu0 %v1180
    %1828 = vmatprep.subr.bf16.mxu0 %v1185
    %1829 = vmatpush1.bf16.msra.mxu0 %v1184
    %1830 = vmatprep.mubr.bf16.mxu0 %v69
    %1831 = vmatmul.mubr.bf16.gmra.mrb[0].mxu0 %v68
    %v1832 = vpop.f32.mrb[0].mxu0
    %v1833 = vadd.f32 %v345, %v1832
    %v1834 = vpop.f32.mrb[0].mxu0
    %v1835 = vadd.f32 %v349, %v1834
    %v1836 = vpop.f32.mrb[0].mxu0
    %v1837 = vpop.f32.mrb[0].mxu0
    %1838 = vdwg.mxu0
    %1839 = vmatprep.subr.bf16.mxu0 %v1189
    %1840 = vmatpush1.bf16.msra.mxu0 %v1188
    %1841 = vmatprep.subr.bf16.mxu0 %v1193
    %1842 = vmatpush1.bf16.msra.mxu0 %v1192
    %1843 = vmatprep.subr.bf16.mxu0 %v1197
    %1844 = vmatpush1.bf16.msra.mxu0 %v1196
    %1845 = vmatprep.subr.bf16.mxu0 %v1201
    %1846 = vmatpush1.bf16.msra.mxu0 %v1200
    %1847 = vmatprep.subr.bf16.mxu0 %v1205
    %1848 = vmatpush1.bf16.msra.mxu0 %v1204
    %1849 = vmatprep.subr.bf16.mxu0 %v1209
    %1850 = vmatpush1.bf16.msra.mxu0 %v1208
    %1851 = vmatprep.subr.bf16.mxu0 %v1213
    %1852 = vmatpush1.bf16.msra.mxu0 %v1212
    %1853 = vmatprep.subr.bf16.mxu0 %v1217
    %1854 = vmatpush1.bf16.msra.mxu0 %v1216
    %1855 = vmatprep.subr.bf16.mxu0 %v1221
    %1856 = vmatpush1.bf16.msra.mxu0 %v1220
    %1857 = vmatprep.subr.bf16.mxu0 %v1225
    %1858 = vmatpush1.bf16.msra.mxu0 %v1224
    %1859 = vmatprep.subr.bf16.mxu0 %v1229
    %1860 = vmatpush1.bf16.msra.mxu0 %v1228
    %1861 = vmatprep.subr.bf16.mxu0 %v1233
    %1862 = vmatpush1.bf16.msra.mxu0 %v1232
    %1863 = vmatprep.subr.bf16.mxu0 %v1237
    %1864 = vmatpush1.bf16.msra.mxu0 %v1236
    %1865 = vmatprep.subr.bf16.mxu0 %v1241
    %1866 = vmatpush1.bf16.msra.mxu0 %v1240
    %1867 = vmatprep.subr.bf16.mxu0 %v1245
    %1868 = vmatpush1.bf16.msra.mxu0 %v1244
    %1869 = vmatprep.subr.bf16.mxu0 %v1249
    %1870 = vmatpush1.bf16.msra.mxu0 %v1248
    %1871 = vmatprep.mubr.bf16.mxu0 %v71
    %1872 = vmatmul.mubr.bf16.gmra.mrb[0].mxu0 %v70
    %v1873 = vpop.f32.mrb[0].mxu0
    %v1874 = vadd.f32 %v1833, %v1873
    %v1875 = vpop.f32.mrb[0].mxu0
    %v1876 = vadd.f32 %v1835, %v1875
    %v1877 = vpop.f32.mrb[0].mxu0
    %v1878 = vpop.f32.mrb[0].mxu0
    %1879 = vdwg.mxu0
    %1880 = vmatprep.subr.bf16.mxu0 %v1253
    %1881 = vmatpush1.bf16.msra.mxu0 %v1252
    %1882 = vmatprep.subr.bf16.mxu0 %v1257
    %1883 = vmatpush1.bf16.msra.mxu0 %v1256
    %1884 = vmatprep.subr.bf16.mxu0 %v1261
    %1885 = vmatpush1.bf16.msra.mxu0 %v1260
    %1886 = vmatprep.subr.bf16.mxu0 %v1265
    %1887 = vmatpush1.bf16.msra.mxu0 %v1264
    %1888 = vmatprep.subr.bf16.mxu0 %v1269
    %1889 = vmatpush1.bf16.msra.mxu0 %v1268
    %1890 = vmatprep.subr.bf16.mxu0 %v1273
    %1891 = vmatpush1.bf16.msra.mxu0 %v1272
    %1892 = vmatprep.subr.bf16.mxu0 %v1277
    %1893 = vmatpush1.bf16.msra.mxu0 %v1276
    %1894 = vmatprep.subr.bf16.mxu0 %v1281
    %1895 = vmatpush1.bf16.msra.mxu0 %v1280
    %1896 = vmatprep.subr.bf16.mxu0 %v1285
    %1897 = vmatpush1.bf16.msra.mxu0 %v1284
    %1898 = vmatprep.subr.bf16.mxu0 %v1289
    %1899 = vmatpush1.bf16.msra.mxu0 %v1288
    %1900 = vmatprep.subr.bf16.mxu0 %v1293
    %1901 = vmatpush1.bf16.msra.mxu0 %v1292
    %1902 = vmatprep.subr.bf16.mxu0 %v1297
    %1903 = vmatpush1.bf16.msra.mxu0 %v1296
    %1904 = vmatprep.subr.bf16.mxu0 %v1301
    %1905 = vmatpush1.bf16.msra.mxu0 %v1300
    %1906 = vmatprep.subr.bf16.mxu0 %v1305
    %1907 = vmatpush1.bf16.msra.mxu0 %v1304
    %1908 = vmatprep.subr.bf16.mxu0 %v1309
    %1909 = vmatpush1.bf16.msra.mxu0 %v1308
    %1910 = vmatprep.subr.bf16.mxu0 %v1313
    %1911 = vmatpush1.bf16.msra.mxu0 %v1312
    %1912 = vmatprep.mubr.bf16.mxu0 %v73
    %1913 = vmatmul.mubr.bf16.gmra.mrb[0].mxu0 %v72
    %v1914 = vpop.f32.mrb[0].mxu0
    %v1915 = vadd.f32 %v1874, %v1914
    %v1916 = vpop.f32.mrb[0].mxu0
    %v1917 = vadd.f32 %v1876, %v1916
    %v1918 = vpop.f32.mrb[0].mxu0
    %v1919 = vpop.f32.mrb[0].mxu0
    %1920 = vdwg.mxu0
    %1921 = vmatprep.subr.bf16.mxu0 %v1317
    %1922 = vmatpush1.bf16.msra.mxu0 %v1316
    %1923 = vmatprep.subr.bf16.mxu0 %v1321
    %1924 = vmatpush1.bf16.msra.mxu0 %v1320
    %1925 = vmatprep.subr.bf16.mxu0 %v1325
    %1926 = vmatpush1.bf16.msra.mxu0 %v1324
    %1927 = vmatprep.subr.bf16.mxu0 %v1329
    %1928 = vmatpush1.bf16.msra.mxu0 %v1328
    %1929 = vmatprep.subr.bf16.mxu0 %v1333
    %1930 = vmatpush1.bf16.msra.mxu0 %v1332
    %1931 = vmatprep.subr.bf16.mxu0 %v1337
    %1932 = vmatpush1.bf16.msra.mxu0 %v1336
    %1933 = vmatprep.subr.bf16.mxu0 %v1341
    %1934 = vmatpush1.bf16.msra.mxu0 %v1340
    %1935 = vmatprep.subr.bf16.mxu0 %v1345
    %1936 = vmatpush1.bf16.msra.mxu0 %v1344
    %1937 = vmatprep.subr.bf16.mxu0 %v1349
    %1938 = vmatpush1.bf16.msra.mxu0 %v1348
    %1939 = vmatprep.subr.bf16.mxu0 %v1353
    %1940 = vmatpush1.bf16.msra.mxu0 %v1352
    %1941 = vmatprep.subr.bf16.mxu0 %v1357
    %1942 = vmatpush1.bf16.msra.mxu0 %v1356
    %1943 = vmatprep.subr.bf16.mxu0 %v1361
    %1944 = vmatpush1.bf16.msra.mxu0 %v1360
    %1945 = vmatprep.subr.bf16.mxu0 %v1365
    %1946 = vmatpush1.bf16.msra.mxu0 %v1364
    %1947 = vmatprep.subr.bf16.mxu0 %v1369
    %1948 = vmatpush1.bf16.msra.mxu0 %v1368
    %1949 = vmatprep.subr.bf16.mxu0 %v1373
    %1950 = vmatpush1.bf16.msra.mxu0 %v1372
    %1951 = vmatprep.subr.bf16.mxu0 %v1377
    %1952 = vmatpush1.bf16.msra.mxu0 %v1376
    %1953 = vmatprep.mubr.bf16.mxu0 %v75
    %1954 = vmatmul.mubr.bf16.gmra.mrb[0].mxu0 %v74
    %v1955 = vpop.f32.mrb[0].mxu0
    %v1956 = vadd.f32 %v1915, %v1955
    %v1957 = vpop.f32.mrb[0].mxu0
    %v1958 = vadd.f32 %v1917, %v1957
    %v1959 = vpop.f32.mrb[0].mxu0
    %v1960 = vpop.f32.mrb[0].mxu0
    %1961 = vdwg.mxu0
    %v1962 = vmul.f32 %v1792, 0.01
    %v1963 = vmul.f32 %v1794, 0.01
    %v1964 = vmul.f32 %v1956, 0.01
    %v1965 = vmul.f32 %v1958, 0.01
    %v1966 = vmax.f32 %v1792, %v1962
    %v1967 = vmax.f32 %v1794, %v1963
    %v1968 = vmax.f32 %v1956, %v1964
    %v1969 = vmax.f32 %v1958, %v1965
    %v1970 = vpack.c.bf16 %v1966, %v1966
    %v1971 = vpack.c.bf16 %v1967, %v1967
    %v1972 = vpack.c.bf16 %v1968, %v1968
    %v1973 = vpack.c.bf16 %v1969, %v1969
    %v1974 = vld [vmem:[#allocation7] sm:$0xff]
    %v1975 = vld [vmem:[#allocation7 + $0x8] sm:$0xff]
    %v1976 = vld [vmem:[#allocation7 + $0x10] sm:$0xff]
    %v1977 = vld [vmem:[#allocation7 + $0x18] sm:$0xff]
    %v1978 = vld [vmem:[#allocation7 + $0x20] sm:$0xff]
    %v1979 = vld [vmem:[#allocation7 + $0x28] sm:$0xff]
    %v1980 = vld [vmem:[#allocation7 + $0x30] sm:$0xff]
    %v1981 = vld [vmem:[#allocation7 + $0x38] sm:$0xff]
    %v1982 = vld [vmem:[#allocation7 + $0x40] sm:$0xff]
    %v1983 = vld [vmem:[#allocation7 + $0x48] sm:$0xff]
    %v1984 = vld [vmem:[#allocation7 + $0x50] sm:$0xff]
    %v1985 = vld [vmem:[#allocation7 + $0x58] sm:$0xff]
    %v1986 = vld [vmem:[#allocation7 + $0x60] sm:$0xff]
    %v1987 = vld [vmem:[#allocation7 + $0x68] sm:$0xff]
    %v1988 = vld [vmem:[#allocation7 + $0x70] sm:$0xff]
    %v1989 = vld [vmem:[#allocation7 + $0x78] sm:$0xff]
    %v1990 = vld [vmem:[#allocation7 + $0x80] sm:$0xff]
    %v1991 = vld [vmem:[#allocation7 + $0x88] sm:$0xff]
    %v1992 = vld [vmem:[#allocation7 + $0x90] sm:$0xff]
    %v1993 = vld [vmem:[#allocation7 + $0x98] sm:$0xff]
    %v1994 = vld [vmem:[#allocation7 + $0xa0] sm:$0xff]
    %v1995 = vld [vmem:[#allocation7 + $0xa8] sm:$0xff]
    %v1996 = vld [vmem:[#allocation7 + $0xb0] sm:$0xff]
    %v1997 = vld [vmem:[#allocation7 + $0xb8] sm:$0xff]
    %v1998 = vld [vmem:[#allocation7 + $0xc0] sm:$0xff]
    %v1999 = vld [vmem:[#allocation7 + $0xc8] sm:$0xff]
    %v2000 = vld [vmem:[#allocation7 + $0xd0] sm:$0xff]
    %v2001 = vld [vmem:[#allocation7 + $0xd8] sm:$0xff]
    %v2002 = vld [vmem:[#allocation7 + $0xe0] sm:$0xff]
    %v2003 = vld [vmem:[#allocation7 + $0xe8] sm:$0xff]
    %v2004 = vld [vmem:[#allocation7 + $0xf0] sm:$0xff]
    %v2005 = vld [vmem:[#allocation7 + $0xf8] sm:$0xff]
    %v2006 = vld [vmem:[#allocation7 + $0x100] sm:$0xff]
    %v2007 = vld [vmem:[#allocation7 + $0x108] sm:$0xff]
    %v2008 = vld [vmem:[#allocation7 + $0x110] sm:$0xff]
    %v2009 = vld [vmem:[#allocation7 + $0x118] sm:$0xff]
    %v2010 = vld [vmem:[#allocation7 + $0x120] sm:$0xff]
    %v2011 = vld [vmem:[#allocation7 + $0x128] sm:$0xff]
    %v2012 = vld [vmem:[#allocation7 + $0x130] sm:$0xff]
    %v2013 = vld [vmem:[#allocation7 + $0x138] sm:$0xff]
    %v2014 = vld [vmem:[#allocation7 + $0x140] sm:$0xff]
    %v2015 = vld [vmem:[#allocation7 + $0x148] sm:$0xff]
    %v2016 = vld [vmem:[#allocation7 + $0x150] sm:$0xff]
    %v2017 = vld [vmem:[#allocation7 + $0x158] sm:$0xff]
    %v2018 = vld [vmem:[#allocation7 + $0x160] sm:$0xff]
    %v2019 = vld [vmem:[#allocation7 + $0x168] sm:$0xff]
    %v2020 = vld [vmem:[#allocation7 + $0x170] sm:$0xff]
    %v2021 = vld [vmem:[#allocation7 + $0x178] sm:$0xff]
    %v2022 = vld [vmem:[#allocation7 + $0x180] sm:$0xff]
    %v2023 = vld [vmem:[#allocation7 + $0x188] sm:$0xff]
    %v2024 = vld [vmem:[#allocation7 + $0x190] sm:$0xff]
    %v2025 = vld [vmem:[#allocation7 + $0x198] sm:$0xff]
    %v2026 = vld [vmem:[#allocation7 + $0x1a0] sm:$0xff]
    %v2027 = vld [vmem:[#allocation7 + $0x1a8] sm:$0xff]
    %v2028 = vld [vmem:[#allocation7 + $0x1b0] sm:$0xff]
    %v2029 = vld [vmem:[#allocation7 + $0x1b8] sm:$0xff]
    %v2030 = vld [vmem:[#allocation7 + $0x1c0] sm:$0xff]
    %v2031 = vld [vmem:[#allocation7 + $0x1c8] sm:$0xff]
    %v2032 = vld [vmem:[#allocation7 + $0x1d0] sm:$0xff]
    %v2033 = vld [vmem:[#allocation7 + $0x1d8] sm:$0xff]
    %v2034 = vld [vmem:[#allocation7 + $0x1e0] sm:$0xff]
    %v2035 = vld [vmem:[#allocation7 + $0x1e8] sm:$0xff]
    %v2036 = vld [vmem:[#allocation7 + $0x1f0] sm:$0xff]
    %v2037 = vld [vmem:[#allocation7 + $0x1f8] sm:$0xff]
    %v2038 = vld [vmem:[#allocation7 + $0x200] sm:$0xff]
    %v2039 = vld [vmem:[#allocation7 + $0x208] sm:$0xff]
    %v2040 = vld [vmem:[#allocation7 + $0x210] sm:$0xff]
    %v2041 = vld [vmem:[#allocation7 + $0x218] sm:$0xff]
    %v2042 = vld [vmem:[#allocation7 + $0x220] sm:$0xff]
    %v2043 = vld [vmem:[#allocation7 + $0x228] sm:$0xff]
    %v2044 = vld [vmem:[#allocation7 + $0x230] sm:$0xff]
    %v2045 = vld [vmem:[#allocation7 + $0x238] sm:$0xff]
    %v2046 = vld [vmem:[#allocation7 + $0x240] sm:$0xff]
    %v2047 = vld [vmem:[#allocation7 + $0x248] sm:$0xff]
    %v2048 = vld [vmem:[#allocation7 + $0x250] sm:$0xff]
    %v2049 = vld [vmem:[#allocation7 + $0x258] sm:$0xff]
    %v2050 = vld [vmem:[#allocation7 + $0x260] sm:$0xff]
    %v2051 = vld [vmem:[#allocation7 + $0x268] sm:$0xff]
    %v2052 = vld [vmem:[#allocation7 + $0x270] sm:$0xff]
    %v2053 = vld [vmem:[#allocation7 + $0x278] sm:$0xff]
    %v2054 = vld [vmem:[#allocation7 + $0x280] sm:$0xff]
    %v2055 = vld [vmem:[#allocation7 + $0x288] sm:$0xff]
    %v2056 = vld [vmem:[#allocation7 + $0x290] sm:$0xff]
    %v2057 = vld [vmem:[#allocation7 + $0x298] sm:$0xff]
    %v2058 = vld [vmem:[#allocation7 + $0x2a0] sm:$0xff]
    %v2059 = vld [vmem:[#allocation7 + $0x2a8] sm:$0xff]
    %v2060 = vld [vmem:[#allocation7 + $0x2b0] sm:$0xff]
    %v2061 = vld [vmem:[#allocation7 + $0x2b8] sm:$0xff]
    %v2062 = vld [vmem:[#allocation7 + $0x2c0] sm:$0xff]
    %v2063 = vld [vmem:[#allocation7 + $0x2c8] sm:$0xff]
    %v2064 = vld [vmem:[#allocation7 + $0x2d0] sm:$0xff]
    %v2065 = vld [vmem:[#allocation7 + $0x2d8] sm:$0xff]
    %v2066 = vld [vmem:[#allocation7 + $0x2e0] sm:$0xff]
    %v2067 = vld [vmem:[#allocation7 + $0x2e8] sm:$0xff]
    %v2068 = vld [vmem:[#allocation7 + $0x2f0] sm:$0xff]
    %v2069 = vld [vmem:[#allocation7 + $0x2f8] sm:$0xff]
    %v2070 = vld [vmem:[#allocation7 + $0x300] sm:$0xff]
    %v2071 = vld [vmem:[#allocation7 + $0x308] sm:$0xff]
    %v2072 = vld [vmem:[#allocation7 + $0x310] sm:$0xff]
    %v2073 = vld [vmem:[#allocation7 + $0x318] sm:$0xff]
    %v2074 = vld [vmem:[#allocation7 + $0x320] sm:$0xff]
    %v2075 = vld [vmem:[#allocation7 + $0x328] sm:$0xff]
    %v2076 = vld [vmem:[#allocation7 + $0x330] sm:$0xff]
    %v2077 = vld [vmem:[#allocation7 + $0x338] sm:$0xff]
    %v2078 = vld [vmem:[#allocation7 + $0x340] sm:$0xff]
    %v2079 = vld [vmem:[#allocation7 + $0x348] sm:$0xff]
    %v2080 = vld [vmem:[#allocation7 + $0x350] sm:$0xff]
    %v2081 = vld [vmem:[#allocation7 + $0x358] sm:$0xff]
    %v2082 = vld [vmem:[#allocation7 + $0x360] sm:$0xff]
    %v2083 = vld [vmem:[#allocation7 + $0x368] sm:$0xff]
    %v2084 = vld [vmem:[#allocation7 + $0x370] sm:$0xff]
    %v2085 = vld [vmem:[#allocation7 + $0x378] sm:$0xff]
    %v2086 = vld [vmem:[#allocation7 + $0x380] sm:$0xff]
    %v2087 = vld [vmem:[#allocation7 + $0x388] sm:$0xff]
    %v2088 = vld [vmem:[#allocation7 + $0x390] sm:$0xff]
    %v2089 = vld [vmem:[#allocation7 + $0x398] sm:$0xff]
    %v2090 = vld [vmem:[#allocation7 + $0x3a0] sm:$0xff]
    %v2091 = vld [vmem:[#allocation7 + $0x3a8] sm:$0xff]
    %v2092 = vld [vmem:[#allocation7 + $0x3b0] sm:$0xff]
    %v2093 = vld [vmem:[#allocation7 + $0x3b8] sm:$0xff]
    %v2094 = vld [vmem:[#allocation7 + $0x3c0] sm:$0xff]
    %v2095 = vld [vmem:[#allocation7 + $0x3c8] sm:$0xff]
    %v2096 = vld [vmem:[#allocation7 + $0x3d0] sm:$0xff]
    %v2097 = vld [vmem:[#allocation7 + $0x3d8] sm:$0xff]
    %v2098 = vld [vmem:[#allocation7 + $0x3e0] sm:$0xff]
    %v2099 = vld [vmem:[#allocation7 + $0x3e8] sm:$0xff]
    %v2100 = vld [vmem:[#allocation7 + $0x3f0] sm:$0xff]
    %v2101 = vld [vmem:[#allocation7 + $0x3f8] sm:$0xff]
    %v2102 = vld [vmem:[#allocation7 + $0x400] sm:$0xff]
    %v2103 = vld [vmem:[#allocation7 + $0x408] sm:$0xff]
    %v2104 = vld [vmem:[#allocation7 + $0x410] sm:$0xff]
    %v2105 = vld [vmem:[#allocation7 + $0x418] sm:$0xff]
    %v2106 = vld [vmem:[#allocation7 + $0x420] sm:$0xff]
    %v2107 = vld [vmem:[#allocation7 + $0x428] sm:$0xff]
    %v2108 = vld [vmem:[#allocation7 + $0x430] sm:$0xff]
    %v2109 = vld [vmem:[#allocation7 + $0x438] sm:$0xff]
    %v2110 = vld [vmem:[#allocation7 + $0x440] sm:$0xff]
    %v2111 = vld [vmem:[#allocation7 + $0x448] sm:$0xff]
    %v2112 = vld [vmem:[#allocation7 + $0x450] sm:$0xff]
    %v2113 = vld [vmem:[#allocation7 + $0x458] sm:$0xff]
    %v2114 = vld [vmem:[#allocation7 + $0x460] sm:$0xff]
    %v2115 = vld [vmem:[#allocation7 + $0x468] sm:$0xff]
    %v2116 = vld [vmem:[#allocation7 + $0x470] sm:$0xff]
    %v2117 = vld [vmem:[#allocation7 + $0x478] sm:$0xff]
    %v2118 = vld [vmem:[#allocation7 + $0x480] sm:$0xff]
    %v2119 = vld [vmem:[#allocation7 + $0x488] sm:$0xff]
    %v2120 = vld [vmem:[#allocation7 + $0x490] sm:$0xff]
    %v2121 = vld [vmem:[#allocation7 + $0x498] sm:$0xff]
    %v2122 = vld [vmem:[#allocation7 + $0x4a0] sm:$0xff]
    %v2123 = vld [vmem:[#allocation7 + $0x4a8] sm:$0xff]
    %v2124 = vld [vmem:[#allocation7 + $0x4b0] sm:$0xff]
    %v2125 = vld [vmem:[#allocation7 + $0x4b8] sm:$0xff]
    %v2126 = vld [vmem:[#allocation7 + $0x4c0] sm:$0xff]
    %v2127 = vld [vmem:[#allocation7 + $0x4c8] sm:$0xff]
    %v2128 = vld [vmem:[#allocation7 + $0x4d0] sm:$0xff]
    %v2129 = vld [vmem:[#allocation7 + $0x4d8] sm:$0xff]
    %v2130 = vld [vmem:[#allocation7 + $0x4e0] sm:$0xff]
    %v2131 = vld [vmem:[#allocation7 + $0x4e8] sm:$0xff]
    %v2132 = vld [vmem:[#allocation7 + $0x4f0] sm:$0xff]
    %v2133 = vld [vmem:[#allocation7 + $0x4f8] sm:$0xff]
    %v2134 = vld [vmem:[#allocation7 + $0x500] sm:$0xff]
    %v2135 = vld [vmem:[#allocation7 + $0x508] sm:$0xff]
    %v2136 = vld [vmem:[#allocation7 + $0x510] sm:$0xff]
    %v2137 = vld [vmem:[#allocation7 + $0x518] sm:$0xff]
    %v2138 = vld [vmem:[#allocation7 + $0x520] sm:$0xff]
    %v2139 = vld [vmem:[#allocation7 + $0x528] sm:$0xff]
    %v2140 = vld [vmem:[#allocation7 + $0x530] sm:$0xff]
    %v2141 = vld [vmem:[#allocation7 + $0x538] sm:$0xff]
    %v2142 = vld [vmem:[#allocation7 + $0x540] sm:$0xff]
    %v2143 = vld [vmem:[#allocation7 + $0x548] sm:$0xff]
    %v2144 = vld [vmem:[#allocation7 + $0x550] sm:$0xff]
    %v2145 = vld [vmem:[#allocation7 + $0x558] sm:$0xff]
    %v2146 = vld [vmem:[#allocation7 + $0x560] sm:$0xff]
    %v2147 = vld [vmem:[#allocation7 + $0x568] sm:$0xff]
    %v2148 = vld [vmem:[#allocation7 + $0x570] sm:$0xff]
    %v2149 = vld [vmem:[#allocation7 + $0x578] sm:$0xff]
    %v2150 = vld [vmem:[#allocation7 + $0x580] sm:$0xff]
    %v2151 = vld [vmem:[#allocation7 + $0x588] sm:$0xff]
    %v2152 = vld [vmem:[#allocation7 + $0x590] sm:$0xff]
    %v2153 = vld [vmem:[#allocation7 + $0x598] sm:$0xff]
    %v2154 = vld [vmem:[#allocation7 + $0x5a0] sm:$0xff]
    %v2155 = vld [vmem:[#allocation7 + $0x5a8] sm:$0xff]
    %v2156 = vld [vmem:[#allocation7 + $0x5b0] sm:$0xff]
    %v2157 = vld [vmem:[#allocation7 + $0x5b8] sm:$0xff]
    %v2158 = vld [vmem:[#allocation7 + $0x5c0] sm:$0xff]
    %v2159 = vld [vmem:[#allocation7 + $0x5c8] sm:$0xff]
    %v2160 = vld [vmem:[#allocation7 + $0x5d0] sm:$0xff]
    %v2161 = vld [vmem:[#allocation7 + $0x5d8] sm:$0xff]
    %v2162 = vld [vmem:[#allocation7 + $0x5e0] sm:$0xff]
    %v2163 = vld [vmem:[#allocation7 + $0x5e8] sm:$0xff]
    %v2164 = vld [vmem:[#allocation7 + $0x5f0] sm:$0xff]
    %v2165 = vld [vmem:[#allocation7 + $0x5f8] sm:$0xff]
    %v2166 = vld [vmem:[#allocation7 + $0x600] sm:$0xff]
    %v2167 = vld [vmem:[#allocation7 + $0x608] sm:$0xff]
    %v2168 = vld [vmem:[#allocation7 + $0x610] sm:$0xff]
    %v2169 = vld [vmem:[#allocation7 + $0x618] sm:$0xff]
    %v2170 = vld [vmem:[#allocation7 + $0x620] sm:$0xff]
    %v2171 = vld [vmem:[#allocation7 + $0x628] sm:$0xff]
    %v2172 = vld [vmem:[#allocation7 + $0x630] sm:$0xff]
    %v2173 = vld [vmem:[#allocation7 + $0x638] sm:$0xff]
    %v2174 = vld [vmem:[#allocation7 + $0x640] sm:$0xff]
    %v2175 = vld [vmem:[#allocation7 + $0x648] sm:$0xff]
    %v2176 = vld [vmem:[#allocation7 + $0x650] sm:$0xff]
    %v2177 = vld [vmem:[#allocation7 + $0x658] sm:$0xff]
    %v2178 = vld [vmem:[#allocation7 + $0x660] sm:$0xff]
    %v2179 = vld [vmem:[#allocation7 + $0x668] sm:$0xff]
    %v2180 = vld [vmem:[#allocation7 + $0x670] sm:$0xff]
    %v2181 = vld [vmem:[#allocation7 + $0x678] sm:$0xff]
    %v2182 = vld [vmem:[#allocation7 + $0x680] sm:$0xff]
    %v2183 = vld [vmem:[#allocation7 + $0x688] sm:$0xff]
    %v2184 = vld [vmem:[#allocation7 + $0x690] sm:$0xff]
    %v2185 = vld [vmem:[#allocation7 + $0x698] sm:$0xff]
    %v2186 = vld [vmem:[#allocation7 + $0x6a0] sm:$0xff]
    %v2187 = vld [vmem:[#allocation7 + $0x6a8] sm:$0xff]
    %v2188 = vld [vmem:[#allocation7 + $0x6b0] sm:$0xff]
    %v2189 = vld [vmem:[#allocation7 + $0x6b8] sm:$0xff]
    %v2190 = vld [vmem:[#allocation7 + $0x6c0] sm:$0xff]
    %v2191 = vld [vmem:[#allocation7 + $0x6c8] sm:$0xff]
    %v2192 = vld [vmem:[#allocation7 + $0x6d0] sm:$0xff]
    %v2193 = vld [vmem:[#allocation7 + $0x6d8] sm:$0xff]
    %v2194 = vld [vmem:[#allocation7 + $0x6e0] sm:$0xff]
    %v2195 = vld [vmem:[#allocation7 + $0x6e8] sm:$0xff]
    %v2196 = vld [vmem:[#allocation7 + $0x6f0] sm:$0xff]
    %v2197 = vld [vmem:[#allocation7 + $0x6f8] sm:$0xff]
    %v2198 = vld [vmem:[#allocation7 + $0x700] sm:$0xff]
    %v2199 = vld [vmem:[#allocation7 + $0x708] sm:$0xff]
    %v2200 = vld [vmem:[#allocation7 + $0x710] sm:$0xff]
    %v2201 = vld [vmem:[#allocation7 + $0x718] sm:$0xff]
    %v2202 = vld [vmem:[#allocation7 + $0x720] sm:$0xff]
    %v2203 = vld [vmem:[#allocation7 + $0x728] sm:$0xff]
    %v2204 = vld [vmem:[#allocation7 + $0x730] sm:$0xff]
    %v2205 = vld [vmem:[#allocation7 + $0x738] sm:$0xff]
    %v2206 = vld [vmem:[#allocation7 + $0x740] sm:$0xff]
    %v2207 = vld [vmem:[#allocation7 + $0x748] sm:$0xff]
    %v2208 = vld [vmem:[#allocation7 + $0x750] sm:$0xff]
    %v2209 = vld [vmem:[#allocation7 + $0x758] sm:$0xff]
    %v2210 = vld [vmem:[#allocation7 + $0x760] sm:$0xff]
    %v2211 = vld [vmem:[#allocation7 + $0x768] sm:$0xff]
    %v2212 = vld [vmem:[#allocation7 + $0x770] sm:$0xff]
    %v2213 = vld [vmem:[#allocation7 + $0x778] sm:$0xff]
    %v2214 = vld [vmem:[#allocation7 + $0x780] sm:$0xff]
    %v2215 = vld [vmem:[#allocation7 + $0x788] sm:$0xff]
    %v2216 = vld [vmem:[#allocation7 + $0x790] sm:$0xff]
    %v2217 = vld [vmem:[#allocation7 + $0x798] sm:$0xff]
    %v2218 = vld [vmem:[#allocation7 + $0x7a0] sm:$0xff]
    %v2219 = vld [vmem:[#allocation7 + $0x7a8] sm:$0xff]
    %v2220 = vld [vmem:[#allocation7 + $0x7b0] sm:$0xff]
    %v2221 = vld [vmem:[#allocation7 + $0x7b8] sm:$0xff]
    %v2222 = vld [vmem:[#allocation7 + $0x7c0] sm:$0xff]
    %v2223 = vld [vmem:[#allocation7 + $0x7c8] sm:$0xff]
    %v2224 = vld [vmem:[#allocation7 + $0x7d0] sm:$0xff]
    %v2225 = vld [vmem:[#allocation7 + $0x7d8] sm:$0xff]
    %v2226 = vld [vmem:[#allocation7 + $0x7e0] sm:$0xff]
    %v2227 = vld [vmem:[#allocation7 + $0x7e8] sm:$0xff]
    %v2228 = vld [vmem:[#allocation7 + $0x7f0] sm:$0xff]
    %v2229 = vld [vmem:[#allocation7 + $0x7f8] sm:$0xff]
    %v2230 = vld [vmem:[%s4] sm:$0xff]
    %v2232 = vlaneseq
    %v2233 = vshrl.u32 %v2232, 7
    %v2234 = vsub.s32 0, %v2233
    %v2235 = vrot.slane %v2230, %v2234
    %v2236 = vlaneseq
    %v2237 = vshrl.u32 %v2236, 7
    %v2238 = vsub.s32 1, %v2237
    %v2239 = vrot.slane %v2230, %v2238
    %v2240 = vlaneseq
    %v2241 = vshrl.u32 %v2240, 7
    %v2242 = vsub.s32 2, %v2241
    %v2243 = vrot.slane %v2230, %v2242
    %v2244 = vlaneseq
    %v2245 = vshrl.u32 %v2244, 7
    %v2246 = vsub.s32 3, %v2245
    %v2247 = vrot.slane %v2230, %v2246
    %v2248 = vlaneseq
    %v2249 = vshrl.u32 %v2248, 7
    %v2250 = vsub.s32 4, %v2249
    %v2251 = vrot.slane %v2230, %v2250
    %v2252 = vlaneseq
    %v2253 = vshrl.u32 %v2252, 7
    %v2254 = vsub.s32 5, %v2253
    %v2255 = vrot.slane %v2230, %v2254
    %v2256 = vlaneseq
    %v2257 = vshrl.u32 %v2256, 7
    %v2258 = vsub.s32 6, %v2257
    %v2259 = vrot.slane %v2230, %v2258
    %v2260 = vlaneseq
    %v2261 = vshrl.u32 %v2260, 7
    %v2262 = vsub.s32 7, %v2261
    %v2263 = vrot.slane %v2230, %v2262
    %v2528 = vunpack.c.l.b16 %v1974
    %v2529 = vunpack.c.h.b16 %v1974
    %v2530 = vunpack.c.l.b16 %v1975
    %v2531 = vunpack.c.h.b16 %v1975
    %v2532 = vunpack.c.l.b16 %v1976
    %v2533 = vunpack.c.h.b16 %v1976
    %v2534 = vunpack.c.l.b16 %v1977
    %v2535 = vunpack.c.h.b16 %v1977
    %v2536 = vunpack.c.l.b16 %v1978
    %v2537 = vunpack.c.h.b16 %v1978
    %v2538 = vunpack.c.l.b16 %v1979
    %v2539 = vunpack.c.h.b16 %v1979
    %v2540 = vunpack.c.l.b16 %v1980
    %v2541 = vunpack.c.h.b16 %v1980
    %v2542 = vunpack.c.l.b16 %v1981
    %v2543 = vunpack.c.h.b16 %v1981
    %v2544 = vunpack.c.l.b16 %v1982
    %v2545 = vunpack.c.h.b16 %v1982
    %v2546 = vunpack.c.l.b16 %v1983
    %v2547 = vunpack.c.h.b16 %v1983
    %v2548 = vunpack.c.l.b16 %v1984
    %v2549 = vunpack.c.h.b16 %v1984
    %v2550 = vunpack.c.l.b16 %v1985
    %v2551 = vunpack.c.h.b16 %v1985
    %v2552 = vunpack.c.l.b16 %v1986
    %v2553 = vunpack.c.h.b16 %v1986
    %v2554 = vunpack.c.l.b16 %v1987
    %v2555 = vunpack.c.h.b16 %v1987
    %v2556 = vunpack.c.l.b16 %v1988
    %v2557 = vunpack.c.h.b16 %v1988
    %v2558 = vunpack.c.l.b16 %v1989
    %v2559 = vunpack.c.h.b16 %v1989
    %v2560 = vunpack.c.l.b16 %v1990
    %v2561 = vunpack.c.h.b16 %v1990
    %v2562 = vunpack.c.l.b16 %v1991
    %v2563 = vunpack.c.h.b16 %v1991
    %v2564 = vunpack.c.l.b16 %v1992
    %v2565 = vunpack.c.h.b16 %v1992
    %v2566 = vunpack.c.l.b16 %v1993
    %v2567 = vunpack.c.h.b16 %v1993
    %v2568 = vunpack.c.l.b16 %v1994
    %v2569 = vunpack.c.h.b16 %v1994
    %v2570 = vunpack.c.l.b16 %v1995
    %v2571 = vunpack.c.h.b16 %v1995
    %v2572 = vunpack.c.l.b16 %v1996
    %v2573 = vunpack.c.h.b16 %v1996
    %v2574 = vunpack.c.l.b16 %v1997
    %v2575 = vunpack.c.h.b16 %v1997
    %v2576 = vunpack.c.l.b16 %v1998
    %v2577 = vunpack.c.h.b16 %v1998
    %v2578 = vunpack.c.l.b16 %v1999
    %v2579 = vunpack.c.h.b16 %v1999
    %v2580 = vunpack.c.l.b16 %v2000
    %v2581 = vunpack.c.h.b16 %v2000
    %v2582 = vunpack.c.l.b16 %v2001
    %v2583 = vunpack.c.h.b16 %v2001
    %v2584 = vunpack.c.l.b16 %v2002
    %v2585 = vunpack.c.h.b16 %v2002
    %v2586 = vunpack.c.l.b16 %v2003
    %v2587 = vunpack.c.h.b16 %v2003
    %v2588 = vunpack.c.l.b16 %v2004
    %v2589 = vunpack.c.h.b16 %v2004
    %v2590 = vunpack.c.l.b16 %v2005
    %v2591 = vunpack.c.h.b16 %v2005
    %v2592 = vunpack.c.l.b16 %v2006
    %v2593 = vunpack.c.h.b16 %v2006
    %v2594 = vunpack.c.l.b16 %v2007
    %v2595 = vunpack.c.h.b16 %v2007
    %v2596 = vunpack.c.l.b16 %v2008
    %v2597 = vunpack.c.h.b16 %v2008
    %v2598 = vunpack.c.l.b16 %v2009
    %v2599 = vunpack.c.h.b16 %v2009
    %v2600 = vunpack.c.l.b16 %v2010
    %v2601 = vunpack.c.h.b16 %v2010
    %v2602 = vunpack.c.l.b16 %v2011
    %v2603 = vunpack.c.h.b16 %v2011
    %v2604 = vunpack.c.l.b16 %v2012
    %v2605 = vunpack.c.h.b16 %v2012
    %v2606 = vunpack.c.l.b16 %v2013
    %v2607 = vunpack.c.h.b16 %v2013
    %v2608 = vunpack.c.l.b16 %v2014
    %v2609 = vunpack.c.h.b16 %v2014
    %v2610 = vunpack.c.l.b16 %v2015
    %v2611 = vunpack.c.h.b16 %v2015
    %v2612 = vunpack.c.l.b16 %v2016
    %v2613 = vunpack.c.h.b16 %v2016
    %v2614 = vunpack.c.l.b16 %v2017
    %v2615 = vunpack.c.h.b16 %v2017
    %v2616 = vunpack.c.l.b16 %v2018
    %v2617 = vunpack.c.h.b16 %v2018
    %v2618 = vunpack.c.l.b16 %v2019
    %v2619 = vunpack.c.h.b16 %v2019
    %v2620 = vunpack.c.l.b16 %v2020
    %v2621 = vunpack.c.h.b16 %v2020
    %v2622 = vunpack.c.l.b16 %v2021
    %v2623 = vunpack.c.h.b16 %v2021
    %v2624 = vunpack.c.l.b16 %v2022
    %v2625 = vunpack.c.h.b16 %v2022
    %v2626 = vunpack.c.l.b16 %v2023
    %v2627 = vunpack.c.h.b16 %v2023
    %v2628 = vunpack.c.l.b16 %v2024
    %v2629 = vunpack.c.h.b16 %v2024
    %v2630 = vunpack.c.l.b16 %v2025
    %v2631 = vunpack.c.h.b16 %v2025
    %v2632 = vunpack.c.l.b16 %v2026
    %v2633 = vunpack.c.h.b16 %v2026
    %v2634 = vunpack.c.l.b16 %v2027
    %v2635 = vunpack.c.h.b16 %v2027
    %v2636 = vunpack.c.l.b16 %v2028
    %v2637 = vunpack.c.h.b16 %v2028
    %v2638 = vunpack.c.l.b16 %v2029
    %v2639 = vunpack.c.h.b16 %v2029
    %v2640 = vunpack.c.l.b16 %v2030
    %v2641 = vunpack.c.h.b16 %v2030
    %v2642 = vunpack.c.l.b16 %v2031
    %v2643 = vunpack.c.h.b16 %v2031
    %v2644 = vunpack.c.l.b16 %v2032
    %v2645 = vunpack.c.h.b16 %v2032
    %v2646 = vunpack.c.l.b16 %v2033
    %v2647 = vunpack.c.h.b16 %v2033
    %v2648 = vunpack.c.l.b16 %v2034
    %v2649 = vunpack.c.h.b16 %v2034
    %v2650 = vunpack.c.l.b16 %v2035
    %v2651 = vunpack.c.h.b16 %v2035
    %v2652 = vunpack.c.l.b16 %v2036
    %v2653 = vunpack.c.h.b16 %v2036
    %v2654 = vunpack.c.l.b16 %v2037
    %v2655 = vunpack.c.h.b16 %v2037
    %v2656 = vunpack.c.l.b16 %v2038
    %v2657 = vunpack.c.h.b16 %v2038
    %v2658 = vunpack.c.l.b16 %v2039
    %v2659 = vunpack.c.h.b16 %v2039
    %v2660 = vunpack.c.l.b16 %v2040
    %v2661 = vunpack.c.h.b16 %v2040
    %v2662 = vunpack.c.l.b16 %v2041
    %v2663 = vunpack.c.h.b16 %v2041
    %v2664 = vunpack.c.l.b16 %v2042
    %v2665 = vunpack.c.h.b16 %v2042
    %v2666 = vunpack.c.l.b16 %v2043
    %v2667 = vunpack.c.h.b16 %v2043
    %v2668 = vunpack.c.l.b16 %v2044
    %v2669 = vunpack.c.h.b16 %v2044
    %v2670 = vunpack.c.l.b16 %v2045
    %v2671 = vunpack.c.h.b16 %v2045
    %v2672 = vunpack.c.l.b16 %v2046
    %v2673 = vunpack.c.h.b16 %v2046
    %v2674 = vunpack.c.l.b16 %v2047
    %v2675 = vunpack.c.h.b16 %v2047
    %v2676 = vunpack.c.l.b16 %v2048
    %v2677 = vunpack.c.h.b16 %v2048
    %v2678 = vunpack.c.l.b16 %v2049
    %v2679 = vunpack.c.h.b16 %v2049
    %v2680 = vunpack.c.l.b16 %v2050
    %v2681 = vunpack.c.h.b16 %v2050
    %v2682 = vunpack.c.l.b16 %v2051
    %v2683 = vunpack.c.h.b16 %v2051
    %v2684 = vunpack.c.l.b16 %v2052
    %v2685 = vunpack.c.h.b16 %v2052
    %v2686 = vunpack.c.l.b16 %v2053
    %v2687 = vunpack.c.h.b16 %v2053
    %v2688 = vunpack.c.l.b16 %v2054
    %v2689 = vunpack.c.h.b16 %v2054
    %v2690 = vunpack.c.l.b16 %v2055
    %v2691 = vunpack.c.h.b16 %v2055
    %v2692 = vunpack.c.l.b16 %v2056
    %v2693 = vunpack.c.h.b16 %v2056
    %v2694 = vunpack.c.l.b16 %v2057
    %v2695 = vunpack.c.h.b16 %v2057
    %v2696 = vunpack.c.l.b16 %v2058
    %v2697 = vunpack.c.h.b16 %v2058
    %v2698 = vunpack.c.l.b16 %v2059
    %v2699 = vunpack.c.h.b16 %v2059
    %v2700 = vunpack.c.l.b16 %v2060
    %v2701 = vunpack.c.h.b16 %v2060
    %v2702 = vunpack.c.l.b16 %v2061
    %v2703 = vunpack.c.h.b16 %v2061
    %v2704 = vunpack.c.l.b16 %v2062
    %v2705 = vunpack.c.h.b16 %v2062
    %v2706 = vunpack.c.l.b16 %v2063
    %v2707 = vunpack.c.h.b16 %v2063
    %v2708 = vunpack.c.l.b16 %v2064
    %v2709 = vunpack.c.h.b16 %v2064
    %v2710 = vunpack.c.l.b16 %v2065
    %v2711 = vunpack.c.h.b16 %v2065
    %v2712 = vunpack.c.l.b16 %v2066
    %v2713 = vunpack.c.h.b16 %v2066
    %v2714 = vunpack.c.l.b16 %v2067
    %v2715 = vunpack.c.h.b16 %v2067
    %v2716 = vunpack.c.l.b16 %v2068
    %v2717 = vunpack.c.h.b16 %v2068
    %v2718 = vunpack.c.l.b16 %v2069
    %v2719 = vunpack.c.h.b16 %v2069
    %v2720 = vunpack.c.l.b16 %v2070
    %v2721 = vunpack.c.h.b16 %v2070
    %v2722 = vunpack.c.l.b16 %v2071
    %v2723 = vunpack.c.h.b16 %v2071
    %v2724 = vunpack.c.l.b16 %v2072
    %v2725 = vunpack.c.h.b16 %v2072
    %v2726 = vunpack.c.l.b16 %v2073
    %v2727 = vunpack.c.h.b16 %v2073
    %v2728 = vunpack.c.l.b16 %v2074
    %v2729 = vunpack.c.h.b16 %v2074
    %v2730 = vunpack.c.l.b16 %v2075
    %v2731 = vunpack.c.h.b16 %v2075
    %v2732 = vunpack.c.l.b16 %v2076
    %v2733 = vunpack.c.h.b16 %v2076
    %v2734 = vunpack.c.l.b16 %v2077
    %v2735 = vunpack.c.h.b16 %v2077
    %v2736 = vunpack.c.l.b16 %v2078
    %v2737 = vunpack.c.h.b16 %v2078
    %v2738 = vunpack.c.l.b16 %v2079
    %v2739 = vunpack.c.h.b16 %v2079
    %v2740 = vunpack.c.l.b16 %v2080
    %v2741 = vunpack.c.h.b16 %v2080
    %v2742 = vunpack.c.l.b16 %v2081
    %v2743 = vunpack.c.h.b16 %v2081
    %v2744 = vunpack.c.l.b16 %v2082
    %v2745 = vunpack.c.h.b16 %v2082
    %v2746 = vunpack.c.l.b16 %v2083
    %v2747 = vunpack.c.h.b16 %v2083
    %v2748 = vunpack.c.l.b16 %v2084
    %v2749 = vunpack.c.h.b16 %v2084
    %v2750 = vunpack.c.l.b16 %v2085
    %v2751 = vunpack.c.h.b16 %v2085
    %v2752 = vunpack.c.l.b16 %v2086
    %v2753 = vunpack.c.h.b16 %v2086
    %v2754 = vunpack.c.l.b16 %v2087
    %v2755 = vunpack.c.h.b16 %v2087
    %v2756 = vunpack.c.l.b16 %v2088
    %v2757 = vunpack.c.h.b16 %v2088
    %v2758 = vunpack.c.l.b16 %v2089
    %v2759 = vunpack.c.h.b16 %v2089
    %v2760 = vunpack.c.l.b16 %v2090
    %v2761 = vunpack.c.h.b16 %v2090
    %v2762 = vunpack.c.l.b16 %v2091
    %v2763 = vunpack.c.h.b16 %v2091
    %v2764 = vunpack.c.l.b16 %v2092
    %v2765 = vunpack.c.h.b16 %v2092
    %v2766 = vunpack.c.l.b16 %v2093
    %v2767 = vunpack.c.h.b16 %v2093
    %v2768 = vunpack.c.l.b16 %v2094
    %v2769 = vunpack.c.h.b16 %v2094
    %v2770 = vunpack.c.l.b16 %v2095
    %v2771 = vunpack.c.h.b16 %v2095
    %v2772 = vunpack.c.l.b16 %v2096
    %v2773 = vunpack.c.h.b16 %v2096
    %v2774 = vunpack.c.l.b16 %v2097
    %v2775 = vunpack.c.h.b16 %v2097
    %v2776 = vunpack.c.l.b16 %v2098
    %v2777 = vunpack.c.h.b16 %v2098
    %v2778 = vunpack.c.l.b16 %v2099
    %v2779 = vunpack.c.h.b16 %v2099
    %v2780 = vunpack.c.l.b16 %v2100
    %v2781 = vunpack.c.h.b16 %v2100
    %v2782 = vunpack.c.l.b16 %v2101
    %v2783 = vunpack.c.h.b16 %v2101
    %v2784 = vunpack.c.l.b16 %v2102
    %v2785 = vunpack.c.h.b16 %v2102
    %v2786 = vunpack.c.l.b16 %v2103
    %v2787 = vunpack.c.h.b16 %v2103
    %v2788 = vunpack.c.l.b16 %v2104
    %v2789 = vunpack.c.h.b16 %v2104
    %v2790 = vunpack.c.l.b16 %v2105
    %v2791 = vunpack.c.h.b16 %v2105
    %v2792 = vunpack.c.l.b16 %v2106
    %v2793 = vunpack.c.h.b16 %v2106
    %v2794 = vunpack.c.l.b16 %v2107
    %v2795 = vunpack.c.h.b16 %v2107
    %v2796 = vunpack.c.l.b16 %v2108
    %v2797 = vunpack.c.h.b16 %v2108
    %v2798 = vunpack.c.l.b16 %v2109
    %v2799 = vunpack.c.h.b16 %v2109
    %v2800 = vunpack.c.l.b16 %v2110
    %v2801 = vunpack.c.h.b16 %v2110
    %v2802 = vunpack.c.l.b16 %v2111
    %v2803 = vunpack.c.h.b16 %v2111
    %v2804 = vunpack.c.l.b16 %v2112
    %v2805 = vunpack.c.h.b16 %v2112
    %v2806 = vunpack.c.l.b16 %v2113
    %v2807 = vunpack.c.h.b16 %v2113
    %v2808 = vunpack.c.l.b16 %v2114
    %v2809 = vunpack.c.h.b16 %v2114
    %v2810 = vunpack.c.l.b16 %v2115
    %v2811 = vunpack.c.h.b16 %v2115
    %v2812 = vunpack.c.l.b16 %v2116
    %v2813 = vunpack.c.h.b16 %v2116
    %v2814 = vunpack.c.l.b16 %v2117
    %v2815 = vunpack.c.h.b16 %v2117
    %v2816 = vunpack.c.l.b16 %v2118
    %v2817 = vunpack.c.h.b16 %v2118
    %v2818 = vunpack.c.l.b16 %v2119
    %v2819 = vunpack.c.h.b16 %v2119
    %v2820 = vunpack.c.l.b16 %v2120
    %v2821 = vunpack.c.h.b16 %v2120
    %v2822 = vunpack.c.l.b16 %v2121
    %v2823 = vunpack.c.h.b16 %v2121
    %v2824 = vunpack.c.l.b16 %v2122
    %v2825 = vunpack.c.h.b16 %v2122
    %v2826 = vunpack.c.l.b16 %v2123
    %v2827 = vunpack.c.h.b16 %v2123
    %v2828 = vunpack.c.l.b16 %v2124
    %v2829 = vunpack.c.h.b16 %v2124
    %v2830 = vunpack.c.l.b16 %v2125
    %v2831 = vunpack.c.h.b16 %v2125
    %v2832 = vunpack.c.l.b16 %v2126
    %v2833 = vunpack.c.h.b16 %v2126
    %v2834 = vunpack.c.l.b16 %v2127
    %v2835 = vunpack.c.h.b16 %v2127
    %v2836 = vunpack.c.l.b16 %v2128
    %v2837 = vunpack.c.h.b16 %v2128
    %v2838 = vunpack.c.l.b16 %v2129
    %v2839 = vunpack.c.h.b16 %v2129
    %v2840 = vunpack.c.l.b16 %v2130
    %v2841 = vunpack.c.h.b16 %v2130
    %v2842 = vunpack.c.l.b16 %v2131
    %v2843 = vunpack.c.h.b16 %v2131
    %v2844 = vunpack.c.l.b16 %v2132
    %v2845 = vunpack.c.h.b16 %v2132
    %v2846 = vunpack.c.l.b16 %v2133
    %v2847 = vunpack.c.h.b16 %v2133
    %v2848 = vunpack.c.l.b16 %v2134
    %v2849 = vunpack.c.h.b16 %v2134
    %v2850 = vunpack.c.l.b16 %v2135
    %v2851 = vunpack.c.h.b16 %v2135
    %v2852 = vunpack.c.l.b16 %v2136
    %v2853 = vunpack.c.h.b16 %v2136
    %v2854 = vunpack.c.l.b16 %v2137
    %v2855 = vunpack.c.h.b16 %v2137
    %v2856 = vunpack.c.l.b16 %v2138
    %v2857 = vunpack.c.h.b16 %v2138
    %v2858 = vunpack.c.l.b16 %v2139
    %v2859 = vunpack.c.h.b16 %v2139
    %v2860 = vunpack.c.l.b16 %v2140
    %v2861 = vunpack.c.h.b16 %v2140
    %v2862 = vunpack.c.l.b16 %v2141
    %v2863 = vunpack.c.h.b16 %v2141
    %v2864 = vunpack.c.l.b16 %v2142
    %v2865 = vunpack.c.h.b16 %v2142
    %v2866 = vunpack.c.l.b16 %v2143
    %v2867 = vunpack.c.h.b16 %v2143
    %v2868 = vunpack.c.l.b16 %v2144
    %v2869 = vunpack.c.h.b16 %v2144
    %v2870 = vunpack.c.l.b16 %v2145
    %v2871 = vunpack.c.h.b16 %v2145
    %v2872 = vunpack.c.l.b16 %v2146
    %v2873 = vunpack.c.h.b16 %v2146
    %v2874 = vunpack.c.l.b16 %v2147
    %v2875 = vunpack.c.h.b16 %v2147
    %v2876 = vunpack.c.l.b16 %v2148
    %v2877 = vunpack.c.h.b16 %v2148
    %v2878 = vunpack.c.l.b16 %v2149
    %v2879 = vunpack.c.h.b16 %v2149
    %v2880 = vunpack.c.l.b16 %v2150
    %v2881 = vunpack.c.h.b16 %v2150
    %v2882 = vunpack.c.l.b16 %v2151
    %v2883 = vunpack.c.h.b16 %v2151
    %v2884 = vunpack.c.l.b16 %v2152
    %v2885 = vunpack.c.h.b16 %v2152
    %v2886 = vunpack.c.l.b16 %v2153
    %v2887 = vunpack.c.h.b16 %v2153
    %v2888 = vunpack.c.l.b16 %v2154
    %v2889 = vunpack.c.h.b16 %v2154
    %v2890 = vunpack.c.l.b16 %v2155
    %v2891 = vunpack.c.h.b16 %v2155
    %v2892 = vunpack.c.l.b16 %v2156
    %v2893 = vunpack.c.h.b16 %v2156
    %v2894 = vunpack.c.l.b16 %v2157
    %v2895 = vunpack.c.h.b16 %v2157
    %v2896 = vunpack.c.l.b16 %v2158
    %v2897 = vunpack.c.h.b16 %v2158
    %v2898 = vunpack.c.l.b16 %v2159
    %v2899 = vunpack.c.h.b16 %v2159
    %v2900 = vunpack.c.l.b16 %v2160
    %v2901 = vunpack.c.h.b16 %v2160
    %v2902 = vunpack.c.l.b16 %v2161
    %v2903 = vunpack.c.h.b16 %v2161
    %v2904 = vunpack.c.l.b16 %v2162
    %v2905 = vunpack.c.h.b16 %v2162
    %v2906 = vunpack.c.l.b16 %v2163
    %v2907 = vunpack.c.h.b16 %v2163
    %v2908 = vunpack.c.l.b16 %v2164
    %v2909 = vunpack.c.h.b16 %v2164
    %v2910 = vunpack.c.l.b16 %v2165
    %v2911 = vunpack.c.h.b16 %v2165
    %v2912 = vunpack.c.l.b16 %v2166
    %v2913 = vunpack.c.h.b16 %v2166
    %v2914 = vunpack.c.l.b16 %v2167
    %v2915 = vunpack.c.h.b16 %v2167
    %v2916 = vunpack.c.l.b16 %v2168
    %v2917 = vunpack.c.h.b16 %v2168
    %v2918 = vunpack.c.l.b16 %v2169
    %v2919 = vunpack.c.h.b16 %v2169
    %v2920 = vunpack.c.l.b16 %v2170
    %v2921 = vunpack.c.h.b16 %v2170
    %v2922 = vunpack.c.l.b16 %v2171
    %v2923 = vunpack.c.h.b16 %v2171
    %v2924 = vunpack.c.l.b16 %v2172
    %v2925 = vunpack.c.h.b16 %v2172
    %v2926 = vunpack.c.l.b16 %v2173
    %v2927 = vunpack.c.h.b16 %v2173
    %v2928 = vunpack.c.l.b16 %v2174
    %v2929 = vunpack.c.h.b16 %v2174
    %v2930 = vunpack.c.l.b16 %v2175
    %v2931 = vunpack.c.h.b16 %v2175
    %v2932 = vunpack.c.l.b16 %v2176
    %v2933 = vunpack.c.h.b16 %v2176
    %v2934 = vunpack.c.l.b16 %v2177
    %v2935 = vunpack.c.h.b16 %v2177
    %v2936 = vunpack.c.l.b16 %v2178
    %v2937 = vunpack.c.h.b16 %v2178
    %v2938 = vunpack.c.l.b16 %v2179
    %v2939 = vunpack.c.h.b16 %v2179
    %v2940 = vunpack.c.l.b16 %v2180
    %v2941 = vunpack.c.h.b16 %v2180
    %v2942 = vunpack.c.l.b16 %v2181
    %v2943 = vunpack.c.h.b16 %v2181
    %v2944 = vunpack.c.l.b16 %v2182
    %v2945 = vunpack.c.h.b16 %v2182
    %v2946 = vunpack.c.l.b16 %v2183
    %v2947 = vunpack.c.h.b16 %v2183
    %v2948 = vunpack.c.l.b16 %v2184
    %v2949 = vunpack.c.h.b16 %v2184
    %v2950 = vunpack.c.l.b16 %v2185
    %v2951 = vunpack.c.h.b16 %v2185
    %v2952 = vunpack.c.l.b16 %v2186
    %v2953 = vunpack.c.h.b16 %v2186
    %v2954 = vunpack.c.l.b16 %v2187
    %v2955 = vunpack.c.h.b16 %v2187
    %v2956 = vunpack.c.l.b16 %v2188
    %v2957 = vunpack.c.h.b16 %v2188
    %v2958 = vunpack.c.l.b16 %v2189
    %v2959 = vunpack.c.h.b16 %v2189
    %v2960 = vunpack.c.l.b16 %v2190
    %v2961 = vunpack.c.h.b16 %v2190
    %v2962 = vunpack.c.l.b16 %v2191
    %v2963 = vunpack.c.h.b16 %v2191
    %v2964 = vunpack.c.l.b16 %v2192
    %v2965 = vunpack.c.h.b16 %v2192
    %v2966 = vunpack.c.l.b16 %v2193
    %v2967 = vunpack.c.h.b16 %v2193
    %v2968 = vunpack.c.l.b16 %v2194
    %v2969 = vunpack.c.h.b16 %v2194
    %v2970 = vunpack.c.l.b16 %v2195
    %v2971 = vunpack.c.h.b16 %v2195
    %v2972 = vunpack.c.l.b16 %v2196
    %v2973 = vunpack.c.h.b16 %v2196
    %v2974 = vunpack.c.l.b16 %v2197
    %v2975 = vunpack.c.h.b16 %v2197
    %v2976 = vunpack.c.l.b16 %v2198
    %v2977 = vunpack.c.h.b16 %v2198
    %v2978 = vunpack.c.l.b16 %v2199
    %v2979 = vunpack.c.h.b16 %v2199
    %v2980 = vunpack.c.l.b16 %v2200
    %v2981 = vunpack.c.h.b16 %v2200
    %v2982 = vunpack.c.l.b16 %v2201
    %v2983 = vunpack.c.h.b16 %v2201
    %v2984 = vunpack.c.l.b16 %v2202
    %v2985 = vunpack.c.h.b16 %v2202
    %v2986 = vunpack.c.l.b16 %v2203
    %v2987 = vunpack.c.h.b16 %v2203
    %v2988 = vunpack.c.l.b16 %v2204
    %v2989 = vunpack.c.h.b16 %v2204
    %v2990 = vunpack.c.l.b16 %v2205
    %v2991 = vunpack.c.h.b16 %v2205
    %v2992 = vunpack.c.l.b16 %v2206
    %v2993 = vunpack.c.h.b16 %v2206
    %v2994 = vunpack.c.l.b16 %v2207
    %v2995 = vunpack.c.h.b16 %v2207
    %v2996 = vunpack.c.l.b16 %v2208
    %v2997 = vunpack.c.h.b16 %v2208
    %v2998 = vunpack.c.l.b16 %v2209
    %v2999 = vunpack.c.h.b16 %v2209
    %v3000 = vunpack.c.l.b16 %v2210
    %v3001 = vunpack.c.h.b16 %v2210
    %v3002 = vunpack.c.l.b16 %v2211
    %v3003 = vunpack.c.h.b16 %v2211
    %v3004 = vunpack.c.l.b16 %v2212
    %v3005 = vunpack.c.h.b16 %v2212
    %v3006 = vunpack.c.l.b16 %v2213
    %v3007 = vunpack.c.h.b16 %v2213
    %v3008 = vunpack.c.l.b16 %v2214
    %v3009 = vunpack.c.h.b16 %v2214
    %v3010 = vunpack.c.l.b16 %v2215
    %v3011 = vunpack.c.h.b16 %v2215
    %v3012 = vunpack.c.l.b16 %v2216
    %v3013 = vunpack.c.h.b16 %v2216
    %v3014 = vunpack.c.l.b16 %v2217
    %v3015 = vunpack.c.h.b16 %v2217
    %v3016 = vunpack.c.l.b16 %v2218
    %v3017 = vunpack.c.h.b16 %v2218
    %v3018 = vunpack.c.l.b16 %v2219
    %v3019 = vunpack.c.h.b16 %v2219
    %v3020 = vunpack.c.l.b16 %v2220
    %v3021 = vunpack.c.h.b16 %v2220
    %v3022 = vunpack.c.l.b16 %v2221
    %v3023 = vunpack.c.h.b16 %v2221
    %v3024 = vunpack.c.l.b16 %v2222
    %v3025 = vunpack.c.h.b16 %v2222
    %v3026 = vunpack.c.l.b16 %v2223
    %v3027 = vunpack.c.h.b16 %v2223
    %v3028 = vunpack.c.l.b16 %v2224
    %v3029 = vunpack.c.h.b16 %v2224
    %v3030 = vunpack.c.l.b16 %v2225
    %v3031 = vunpack.c.h.b16 %v2225
    %v3032 = vunpack.c.l.b16 %v2226
    %v3033 = vunpack.c.h.b16 %v2226
    %v3034 = vunpack.c.l.b16 %v2227
    %v3035 = vunpack.c.h.b16 %v2227
    %v3036 = vunpack.c.l.b16 %v2228
    %v3037 = vunpack.c.h.b16 %v2228
    %v3038 = vunpack.c.l.b16 %v2229
    %v3039 = vunpack.c.h.b16 %v2229
    %v3040 = vpack.c.b16 %v2536, %v2528
    %v3041 = vpack.c.b16 %v2537, %v2529
    %v3042 = vpack.c.b16 %v2538, %v2530
    %v3043 = vpack.c.b16 %v2539, %v2531
    %v3044 = vpack.c.b16 %v2540, %v2532
    %v3045 = vpack.c.b16 %v2541, %v2533
    %v3046 = vpack.c.b16 %v2542, %v2534
    %v3047 = vpack.c.b16 %v2543, %v2535
    %v3048 = vpack.c.b16 %v2552, %v2544
    %v3049 = vpack.c.b16 %v2553, %v2545
    %v3050 = vpack.c.b16 %v2554, %v2546
    %v3051 = vpack.c.b16 %v2555, %v2547
    %v3052 = vpack.c.b16 %v2556, %v2548
    %v3053 = vpack.c.b16 %v2557, %v2549
    %v3054 = vpack.c.b16 %v2558, %v2550
    %v3055 = vpack.c.b16 %v2559, %v2551
    %v3056 = vpack.c.b16 %v2568, %v2560
    %v3057 = vpack.c.b16 %v2569, %v2561
    %v3058 = vpack.c.b16 %v2570, %v2562
    %v3059 = vpack.c.b16 %v2571, %v2563
    %v3060 = vpack.c.b16 %v2572, %v2564
    %v3061 = vpack.c.b16 %v2573, %v2565
    %v3062 = vpack.c.b16 %v2574, %v2566
    %v3063 = vpack.c.b16 %v2575, %v2567
    %v3064 = vpack.c.b16 %v2584, %v2576
    %v3065 = vpack.c.b16 %v2585, %v2577
    %v3066 = vpack.c.b16 %v2586, %v2578
    %v3067 = vpack.c.b16 %v2587, %v2579
    %v3068 = vpack.c.b16 %v2588, %v2580
    %v3069 = vpack.c.b16 %v2589, %v2581
    %v3070 = vpack.c.b16 %v2590, %v2582
    %v3071 = vpack.c.b16 %v2591, %v2583
    %v3072 = vpack.c.b16 %v2600, %v2592
    %v3073 = vpack.c.b16 %v2601, %v2593
    %v3074 = vpack.c.b16 %v2602, %v2594
    %v3075 = vpack.c.b16 %v2603, %v2595
    %v3076 = vpack.c.b16 %v2604, %v2596
    %v3077 = vpack.c.b16 %v2605, %v2597
    %v3078 = vpack.c.b16 %v2606, %v2598
    %v3079 = vpack.c.b16 %v2607, %v2599
    %v3080 = vpack.c.b16 %v2616, %v2608
    %v3081 = vpack.c.b16 %v2617, %v2609
    %v3082 = vpack.c.b16 %v2618, %v2610
    %v3083 = vpack.c.b16 %v2619, %v2611
    %v3084 = vpack.c.b16 %v2620, %v2612
    %v3085 = vpack.c.b16 %v2621, %v2613
    %v3086 = vpack.c.b16 %v2622, %v2614
    %v3087 = vpack.c.b16 %v2623, %v2615
    %v3088 = vpack.c.b16 %v2632, %v2624
    %v3089 = vpack.c.b16 %v2633, %v2625
    %v3090 = vpack.c.b16 %v2634, %v2626
    %v3091 = vpack.c.b16 %v2635, %v2627
    %v3092 = vpack.c.b16 %v2636, %v2628
    %v3093 = vpack.c.b16 %v2637, %v2629
    %v3094 = vpack.c.b16 %v2638, %v2630
    %v3095 = vpack.c.b16 %v2639, %v2631
    %v3096 = vpack.c.b16 %v2648, %v2640
    %v3097 = vpack.c.b16 %v2649, %v2641
    %v3098 = vpack.c.b16 %v2650, %v2642
    %v3099 = vpack.c.b16 %v2651, %v2643
    %v3100 = vpack.c.b16 %v2652, %v2644
    %v3101 = vpack.c.b16 %v2653, %v2645
    %v3102 = vpack.c.b16 %v2654, %v2646
    %v3103 = vpack.c.b16 %v2655, %v2647
    %v3104 = vpack.c.b16 %v2664, %v2656
    %v3105 = vpack.c.b16 %v2665, %v2657
    %v3106 = vpack.c.b16 %v2666, %v2658
    %v3107 = vpack.c.b16 %v2667, %v2659
    %v3108 = vpack.c.b16 %v2668, %v2660
    %v3109 = vpack.c.b16 %v2669, %v2661
    %v3110 = vpack.c.b16 %v2670, %v2662
    %v3111 = vpack.c.b16 %v2671, %v2663
    %v3112 = vpack.c.b16 %v2680, %v2672
    %v3113 = vpack.c.b16 %v2681, %v2673
    %v3114 = vpack.c.b16 %v2682, %v2674
    %v3115 = vpack.c.b16 %v2683, %v2675
    %v3116 = vpack.c.b16 %v2684, %v2676
    %v3117 = vpack.c.b16 %v2685, %v2677
    %v3118 = vpack.c.b16 %v2686, %v2678
    %v3119 = vpack.c.b16 %v2687, %v2679
    %v3120 = vpack.c.b16 %v2696, %v2688
    %v3121 = vpack.c.b16 %v2697, %v2689
    %v3122 = vpack.c.b16 %v2698, %v2690
    %v3123 = vpack.c.b16 %v2699, %v2691
    %v3124 = vpack.c.b16 %v2700, %v2692
    %v3125 = vpack.c.b16 %v2701, %v2693
    %v3126 = vpack.c.b16 %v2702, %v2694
    %v3127 = vpack.c.b16 %v2703, %v2695
    %v3128 = vpack.c.b16 %v2712, %v2704
    %v3129 = vpack.c.b16 %v2713, %v2705
    %v3130 = vpack.c.b16 %v2714, %v2706
    %v3131 = vpack.c.b16 %v2715, %v2707
    %v3132 = vpack.c.b16 %v2716, %v2708
    %v3133 = vpack.c.b16 %v2717, %v2709
    %v3134 = vpack.c.b16 %v2718, %v2710
    %v3135 = vpack.c.b16 %v2719, %v2711
    %v3136 = vpack.c.b16 %v2728, %v2720
    %v3137 = vpack.c.b16 %v2729, %v2721
    %v3138 = vpack.c.b16 %v2730, %v2722
    %v3139 = vpack.c.b16 %v2731, %v2723
    %v3140 = vpack.c.b16 %v2732, %v2724
    %v3141 = vpack.c.b16 %v2733, %v2725
    %v3142 = vpack.c.b16 %v2734, %v2726
    %v3143 = vpack.c.b16 %v2735, %v2727
    %v3144 = vpack.c.b16 %v2744, %v2736
    %v3145 = vpack.c.b16 %v2745, %v2737
    %v3146 = vpack.c.b16 %v2746, %v2738
    %v3147 = vpack.c.b16 %v2747, %v2739
    %v3148 = vpack.c.b16 %v2748, %v2740
    %v3149 = vpack.c.b16 %v2749, %v2741
    %v3150 = vpack.c.b16 %v2750, %v2742
    %v3151 = vpack.c.b16 %v2751, %v2743
    %v3152 = vpack.c.b16 %v2760, %v2752
    %v3153 = vpack.c.b16 %v2761, %v2753
    %v3154 = vpack.c.b16 %v2762, %v2754
    %v3155 = vpack.c.b16 %v2763, %v2755
    %v3156 = vpack.c.b16 %v2764, %v2756
    %v3157 = vpack.c.b16 %v2765, %v2757
    %v3158 = vpack.c.b16 %v2766, %v2758
    %v3159 = vpack.c.b16 %v2767, %v2759
    %v3160 = vpack.c.b16 %v2776, %v2768
    %v3161 = vpack.c.b16 %v2777, %v2769
    %v3162 = vpack.c.b16 %v2778, %v2770
    %v3163 = vpack.c.b16 %v2779, %v2771
    %v3164 = vpack.c.b16 %v2780, %v2772
    %v3165 = vpack.c.b16 %v2781, %v2773
    %v3166 = vpack.c.b16 %v2782, %v2774
    %v3167 = vpack.c.b16 %v2783, %v2775
    %v3168 = vpack.c.b16 %v2792, %v2784
    %v3169 = vpack.c.b16 %v2793, %v2785
    %v3170 = vpack.c.b16 %v2794, %v2786
    %v3171 = vpack.c.b16 %v2795, %v2787
    %v3172 = vpack.c.b16 %v2796, %v2788
    %v3173 = vpack.c.b16 %v2797, %v2789
    %v3174 = vpack.c.b16 %v2798, %v2790
    %v3175 = vpack.c.b16 %v2799, %v2791
    %v3176 = vpack.c.b16 %v2808, %v2800
    %v3177 = vpack.c.b16 %v2809, %v2801
    %v3178 = vpack.c.b16 %v2810, %v2802
    %v3179 = vpack.c.b16 %v2811, %v2803
    %v3180 = vpack.c.b16 %v2812, %v2804
    %v3181 = vpack.c.b16 %v2813, %v2805
    %v3182 = vpack.c.b16 %v2814, %v2806
    %v3183 = vpack.c.b16 %v2815, %v2807
    %v3184 = vpack.c.b16 %v2824, %v2816
    %v3185 = vpack.c.b16 %v2825, %v2817
    %v3186 = vpack.c.b16 %v2826, %v2818
    %v3187 = vpack.c.b16 %v2827, %v2819
    %v3188 = vpack.c.b16 %v2828, %v2820
    %v3189 = vpack.c.b16 %v2829, %v2821
    %v3190 = vpack.c.b16 %v2830, %v2822
    %v3191 = vpack.c.b16 %v2831, %v2823
    %v3192 = vpack.c.b16 %v2840, %v2832
    %v3193 = vpack.c.b16 %v2841, %v2833
    %v3194 = vpack.c.b16 %v2842, %v2834
    %v3195 = vpack.c.b16 %v2843, %v2835
    %v3196 = vpack.c.b16 %v2844, %v2836
    %v3197 = vpack.c.b16 %v2845, %v2837
    %v3198 = vpack.c.b16 %v2846, %v2838
    %v3199 = vpack.c.b16 %v2847, %v2839
    %v3200 = vpack.c.b16 %v2856, %v2848
    %v3201 = vpack.c.b16 %v2857, %v2849
    %v3202 = vpack.c.b16 %v2858, %v2850
    %v3203 = vpack.c.b16 %v2859, %v2851
    %v3204 = vpack.c.b16 %v2860, %v2852
    %v3205 = vpack.c.b16 %v2861, %v2853
    %v3206 = vpack.c.b16 %v2862, %v2854
    %v3207 = vpack.c.b16 %v2863, %v2855
    %v3208 = vpack.c.b16 %v2872, %v2864
    %v3209 = vpack.c.b16 %v2873, %v2865
    %v3210 = vpack.c.b16 %v2874, %v2866
    %v3211 = vpack.c.b16 %v2875, %v2867
    %v3212 = vpack.c.b16 %v2876, %v2868
    %v3213 = vpack.c.b16 %v2877, %v2869
    %v3214 = vpack.c.b16 %v2878, %v2870
    %v3215 = vpack.c.b16 %v2879, %v2871
    %v3216 = vpack.c.b16 %v2888, %v2880
    %v3217 = vpack.c.b16 %v2889, %v2881
    %v3218 = vpack.c.b16 %v2890, %v2882
    %v3219 = vpack.c.b16 %v2891, %v2883
    %v3220 = vpack.c.b16 %v2892, %v2884
    %v3221 = vpack.c.b16 %v2893, %v2885
    %v3222 = vpack.c.b16 %v2894, %v2886
    %v3223 = vpack.c.b16 %v2895, %v2887
    %v3224 = vpack.c.b16 %v2904, %v2896
    %v3225 = vpack.c.b16 %v2905, %v2897
    %v3226 = vpack.c.b16 %v2906, %v2898
    %v3227 = vpack.c.b16 %v2907, %v2899
    %v3228 = vpack.c.b16 %v2908, %v2900
    %v3229 = vpack.c.b16 %v2909, %v2901
    %v3230 = vpack.c.b16 %v2910, %v2902
    %v3231 = vpack.c.b16 %v2911, %v2903
    %v3232 = vpack.c.b16 %v2920, %v2912
    %v3233 = vpack.c.b16 %v2921, %v2913
    %v3234 = vpack.c.b16 %v2922, %v2914
    %v3235 = vpack.c.b16 %v2923, %v2915
    %v3236 = vpack.c.b16 %v2924, %v2916
    %v3237 = vpack.c.b16 %v2925, %v2917
    %v3238 = vpack.c.b16 %v2926, %v2918
    %v3239 = vpack.c.b16 %v2927, %v2919
    %v3240 = vpack.c.b16 %v2936, %v2928
    %v3241 = vpack.c.b16 %v2937, %v2929
    %v3242 = vpack.c.b16 %v2938, %v2930
    %v3243 = vpack.c.b16 %v2939, %v2931
    %v3244 = vpack.c.b16 %v2940, %v2932
    %v3245 = vpack.c.b16 %v2941, %v2933
    %v3246 = vpack.c.b16 %v2942, %v2934
    %v3247 = vpack.c.b16 %v2943, %v2935
    %v3248 = vpack.c.b16 %v2952, %v2944
    %v3249 = vpack.c.b16 %v2953, %v2945
    %v3250 = vpack.c.b16 %v2954, %v2946
    %v3251 = vpack.c.b16 %v2955, %v2947
    %v3252 = vpack.c.b16 %v2956, %v2948
    %v3253 = vpack.c.b16 %v2957, %v2949
    %v3254 = vpack.c.b16 %v2958, %v2950
    %v3255 = vpack.c.b16 %v2959, %v2951
    %v3256 = vpack.c.b16 %v2968, %v2960
    %v3257 = vpack.c.b16 %v2969, %v2961
    %v3258 = vpack.c.b16 %v2970, %v2962
    %v3259 = vpack.c.b16 %v2971, %v2963
    %v3260 = vpack.c.b16 %v2972, %v2964
    %v3261 = vpack.c.b16 %v2973, %v2965
    %v3262 = vpack.c.b16 %v2974, %v2966
    %v3263 = vpack.c.b16 %v2975, %v2967
    %v3264 = vpack.c.b16 %v2984, %v2976
    %v3265 = vpack.c.b16 %v2985, %v2977
    %v3266 = vpack.c.b16 %v2986, %v2978
    %v3267 = vpack.c.b16 %v2987, %v2979
    %v3268 = vpack.c.b16 %v2988, %v2980
    %v3269 = vpack.c.b16 %v2989, %v2981
    %v3270 = vpack.c.b16 %v2990, %v2982
    %v3271 = vpack.c.b16 %v2991, %v2983
    %v3272 = vpack.c.b16 %v3000, %v2992
    %v3273 = vpack.c.b16 %v3001, %v2993
    %v3274 = vpack.c.b16 %v3002, %v2994
    %v3275 = vpack.c.b16 %v3003, %v2995
    %v3276 = vpack.c.b16 %v3004, %v2996
    %v3277 = vpack.c.b16 %v3005, %v2997
    %v3278 = vpack.c.b16 %v3006, %v2998
    %v3279 = vpack.c.b16 %v3007, %v2999
    %v3280 = vpack.c.b16 %v3016, %v3008
    %v3281 = vpack.c.b16 %v3017, %v3009
    %v3282 = vpack.c.b16 %v3018, %v3010
    %v3283 = vpack.c.b16 %v3019, %v3011
    %v3284 = vpack.c.b16 %v3020, %v3012
    %v3285 = vpack.c.b16 %v3021, %v3013
    %v3286 = vpack.c.b16 %v3022, %v3014
    %v3287 = vpack.c.b16 %v3023, %v3015
    %v3288 = vpack.c.b16 %v3032, %v3024
    %v3289 = vpack.c.b16 %v3033, %v3025
    %v3290 = vpack.c.b16 %v3034, %v3026
    %v3291 = vpack.c.b16 %v3035, %v3027
    %v3292 = vpack.c.b16 %v3036, %v3028
    %v3293 = vpack.c.b16 %v3037, %v3029
    %v3294 = vpack.c.b16 %v3038, %v3030
    %v3295 = vpack.c.b16 %v3039, %v3031
    %3552 = vmatprep.subr.bf16.mxu0 %v3041
    %3553 = vmatpush1.bf16.msra.mxu0 %v3040
    %3554 = vmatprep.subr.bf16.mxu0 %v3049
    %3555 = vmatpush1.bf16.msra.mxu0 %v3048
    %3556 = vmatprep.subr.bf16.mxu0 %v3057
    %3557 = vmatpush1.bf16.msra.mxu0 %v3056
    %3558 = vmatprep.subr.bf16.mxu0 %v3065
    %3559 = vmatpush1.bf16.msra.mxu0 %v3064
    %3560 = vmatprep.subr.bf16.mxu0 %v3073
    %3561 = vmatpush1.bf16.msra.mxu0 %v3072
    %3562 = vmatprep.subr.bf16.mxu0 %v3081
    %3563 = vmatpush1.bf16.msra.mxu0 %v3080
    %3564 = vmatprep.subr.bf16.mxu0 %v3089
    %3565 = vmatpush1.bf16.msra.mxu0 %v3088
    %3566 = vmatprep.subr.bf16.mxu0 %v3097
    %3567 = vmatpush1.bf16.msra.mxu0 %v3096
    %3568 = vmatprep.subr.bf16.mxu0 %v3105
    %3569 = vmatpush1.bf16.msra.mxu0 %v3104
    %3570 = vmatprep.subr.bf16.mxu0 %v3113
    %3571 = vmatpush1.bf16.msra.mxu0 %v3112
    %3572 = vmatprep.subr.bf16.mxu0 %v3121
    %3573 = vmatpush1.bf16.msra.mxu0 %v3120
    %3574 = vmatprep.subr.bf16.mxu0 %v3129
    %3575 = vmatpush1.bf16.msra.mxu0 %v3128
    %3576 = vmatprep.subr.bf16.mxu0 %v3137
    %3577 = vmatpush1.bf16.msra.mxu0 %v3136
    %3578 = vmatprep.subr.bf16.mxu0 %v3145
    %3579 = vmatpush1.bf16.msra.mxu0 %v3144
    %3580 = vmatprep.subr.bf16.mxu0 %v3153
    %3581 = vmatpush1.bf16.msra.mxu0 %v3152
    %3582 = vmatprep.subr.bf16.mxu0 %v3161
    %3583 = vmatpush1.bf16.msra.mxu0 %v3160
    %3584 = vmatprep.mubr.bf16.mxu0 %v1971
    %3585 = vmatmul.mubr.bf16.gmra.mrb[0].mxu0 %v1970
    %v3586 = vpop.f32.mrb[0].mxu0
    %v3587 = vadd.f32 %v2235, %v3586
    %v3588 = vpop.f32.mrb[0].mxu0
    %v3589 = vadd.f32 %v2239, %v3588
    %v3590 = vpop.f32.mrb[0].mxu0
    %v3591 = vpop.f32.mrb[0].mxu0
    %3592 = vdwg.mxu0
    %3593 = vmatprep.subr.bf16.mxu0 %v3169
    %3594 = vmatpush1.bf16.msra.mxu0 %v3168
    %3595 = vmatprep.subr.bf16.mxu0 %v3177
    %3596 = vmatpush1.bf16.msra.mxu0 %v3176
    %3597 = vmatprep.subr.bf16.mxu0 %v3185
    %3598 = vmatpush1.bf16.msra.mxu0 %v3184
    %3599 = vmatprep.subr.bf16.mxu0 %v3193
    %3600 = vmatpush1.bf16.msra.mxu0 %v3192
    %3601 = vmatprep.subr.bf16.mxu0 %v3201
    %3602 = vmatpush1.bf16.msra.mxu0 %v3200
    %3603 = vmatprep.subr.bf16.mxu0 %v3209
    %3604 = vmatpush1.bf16.msra.mxu0 %v3208
    %3605 = vmatprep.subr.bf16.mxu0 %v3217
    %3606 = vmatpush1.bf16.msra.mxu0 %v3216
    %3607 = vmatprep.subr.bf16.mxu0 %v3225
    %3608 = vmatpush1.bf16.msra.mxu0 %v3224
    %3609 = vmatprep.subr.bf16.mxu0 %v3233
    %3610 = vmatpush1.bf16.msra.mxu0 %v3232
    %3611 = vmatprep.subr.bf16.mxu0 %v3241
    %3612 = vmatpush1.bf16.msra.mxu0 %v3240
    %3613 = vmatprep.subr.bf16.mxu0 %v3249
    %3614 = vmatpush1.bf16.msra.mxu0 %v3248
    %3615 = vmatprep.subr.bf16.mxu0 %v3257
    %3616 = vmatpush1.bf16.msra.mxu0 %v3256
    %3617 = vmatprep.subr.bf16.mxu0 %v3265
    %3618 = vmatpush1.bf16.msra.mxu0 %v3264
    %3619 = vmatprep.subr.bf16.mxu0 %v3273
    %3620 = vmatpush1.bf16.msra.mxu0 %v3272
    %3621 = vmatprep.subr.bf16.mxu0 %v3281
    %3622 = vmatpush1.bf16.msra.mxu0 %v3280
    %3623 = vmatprep.subr.bf16.mxu0 %v3289
    %3624 = vmatpush1.bf16.msra.mxu0 %v3288
    %3625 = vmatprep.mubr.bf16.mxu0 %v1973
    %3626 = vmatmul.mubr.bf16.gmra.mrb[0].mxu0 %v1972
    %v3627 = vpop.f32.mrb[0].mxu0
    %v3628 = vadd.f32 %v3587, %v3627
    %v3629 = vpop.f32.mrb[0].mxu0
    %v3630 = vadd.f32 %v3589, %v3629
    %v3631 = vpop.f32.mrb[0].mxu0
    %v3632 = vpop.f32.mrb[0].mxu0
    %3633 = vdwg.mxu0
    %3634 = vmatprep.subr.bf16.mxu0 %v3043
    %3635 = vmatpush1.bf16.msra.mxu0 %v3042
    %3636 = vmatprep.subr.bf16.mxu0 %v3051
    %3637 = vmatpush1.bf16.msra.mxu0 %v3050
    %3638 = vmatprep.subr.bf16.mxu0 %v3059
    %3639 = vmatpush1.bf16.msra.mxu0 %v3058
    %3640 = vmatprep.subr.bf16.mxu0 %v3067
    %3641 = vmatpush1.bf16.msra.mxu0 %v3066
    %3642 = vmatprep.subr.bf16.mxu0 %v3075
    %3643 = vmatpush1.bf16.msra.mxu0 %v3074
    %3644 = vmatprep.subr.bf16.mxu0 %v3083
    %3645 = vmatpush1.bf16.msra.mxu0 %v3082
    %3646 = vmatprep.subr.bf16.mxu0 %v3091
    %3647 = vmatpush1.bf16.msra.mxu0 %v3090
    %3648 = vmatprep.subr.bf16.mxu0 %v3099
    %3649 = vmatpush1.bf16.msra.mxu0 %v3098
    %3650 = vmatprep.subr.bf16.mxu0 %v3107
    %3651 = vmatpush1.bf16.msra.mxu0 %v3106
    %3652 = vmatprep.subr.bf16.mxu0 %v3115
    %3653 = vmatpush1.bf16.msra.mxu0 %v3114
    %3654 = vmatprep.subr.bf16.mxu0 %v3123
    %3655 = vmatpush1.bf16.msra.mxu0 %v3122
    %3656 = vmatprep.subr.bf16.mxu0 %v3131
    %3657 = vmatpush1.bf16.msra.mxu0 %v3130
    %3658 = vmatprep.subr.bf16.mxu0 %v3139
    %3659 = vmatpush1.bf16.msra.mxu0 %v3138
    %3660 = vmatprep.subr.bf16.mxu0 %v3147
    %3661 = vmatpush1.bf16.msra.mxu0 %v3146
    %3662 = vmatprep.subr.bf16.mxu0 %v3155
    %3663 = vmatpush1.bf16.msra.mxu0 %v3154
    %3664 = vmatprep.subr.bf16.mxu0 %v3163
    %3665 = vmatpush1.bf16.msra.mxu0 %v3162
    %3666 = vmatprep.mubr.bf16.mxu0 %v1971
    %3667 = vmatmul.mubr.bf16.gmra.mrb[0].mxu0 %v1970
    %v3668 = vpop.f32.mrb[0].mxu0
    %v3669 = vadd.f32 %v2243, %v3668
    %v3670 = vpop.f32.mrb[0].mxu0
    %v3671 = vadd.f32 %v2247, %v3670
    %v3672 = vpop.f32.mrb[0].mxu0
    %v3673 = vpop.f32.mrb[0].mxu0
    %3674 = vdwg.mxu0
    %3675 = vmatprep.subr.bf16.mxu0 %v3171
    %3676 = vmatpush1.bf16.msra.mxu0 %v3170
    %3677 = vmatprep.subr.bf16.mxu0 %v3179
    %3678 = vmatpush1.bf16.msra.mxu0 %v3178
    %3679 = vmatprep.subr.bf16.mxu0 %v3187
    %3680 = vmatpush1.bf16.msra.mxu0 %v3186
    %3681 = vmatprep.subr.bf16.mxu0 %v3195
    %3682 = vmatpush1.bf16.msra.mxu0 %v3194
    %3683 = vmatprep.subr.bf16.mxu0 %v3203
    %3684 = vmatpush1.bf16.msra.mxu0 %v3202
    %3685 = vmatprep.subr.bf16.mxu0 %v3211
    %3686 = vmatpush1.bf16.msra.mxu0 %v3210
    %3687 = vmatprep.subr.bf16.mxu0 %v3219
    %3688 = vmatpush1.bf16.msra.mxu0 %v3218
    %3689 = vmatprep.subr.bf16.mxu0 %v3227
    %3690 = vmatpush1.bf16.msra.mxu0 %v3226
    %3691 = vmatprep.subr.bf16.mxu0 %v3235
    %3692 = vmatpush1.bf16.msra.mxu0 %v3234
    %3693 = vmatprep.subr.bf16.mxu0 %v3243
    %3694 = vmatpush1.bf16.msra.mxu0 %v3242
    %3695 = vmatprep.subr.bf16.mxu0 %v3251
    %3696 = vmatpush1.bf16.msra.mxu0 %v3250
    %3697 = vmatprep.subr.bf16.mxu0 %v3259
    %3698 = vmatpush1.bf16.msra.mxu0 %v3258
    %3699 = vmatprep.subr.bf16.mxu0 %v3267
    %3700 = vmatpush1.bf16.msra.mxu0 %v3266
    %3701 = vmatprep.subr.bf16.mxu0 %v3275
    %3702 = vmatpush1.bf16.msra.mxu0 %v3274
    %3703 = vmatprep.subr.bf16.mxu0 %v3283
    %3704 = vmatpush1.bf16.msra.mxu0 %v3282
    %3705 = vmatprep.subr.bf16.mxu0 %v3291
    %3706 = vmatpush1.bf16.msra.mxu0 %v3290
    %3707 = vmatprep.mubr.bf16.mxu0 %v1973
    %3708 = vmatmul.mubr.bf16.gmra.mrb[0].mxu0 %v1972
    %v3709 = vpop.f32.mrb[0].mxu0
    %v3710 = vadd.f32 %v3669, %v3709
    %v3711 = vpop.f32.mrb[0].mxu0
    %v3712 = vadd.f32 %v3671, %v3711
    %v3713 = vpop.f32.mrb[0].mxu0
    %v3714 = vpop.f32.mrb[0].mxu0
    %3715 = vdwg.mxu0
    %3716 = vmatprep.subr.bf16.mxu0 %v3045
    %3717 = vmatpush1.bf16.msra.mxu0 %v3044
    %3718 = vmatprep.subr.bf16.mxu0 %v3053
    %3719 = vmatpush1.bf16.msra.mxu0 %v3052
    %3720 = vmatprep.subr.bf16.mxu0 %v3061
    %3721 = vmatpush1.bf16.msra.mxu0 %v3060
    %3722 = vmatprep.subr.bf16.mxu0 %v3069
    %3723 = vmatpush1.bf16.msra.mxu0 %v3068
    %3724 = vmatprep.subr.bf16.mxu0 %v3077
    %3725 = vmatpush1.bf16.msra.mxu0 %v3076
    %3726 = vmatprep.subr.bf16.mxu0 %v3085
    %3727 = vmatpush1.bf16.msra.mxu0 %v3084
    %3728 = vmatprep.subr.bf16.mxu0 %v3093
    %3729 = vmatpush1.bf16.msra.mxu0 %v3092
    %3730 = vmatprep.subr.bf16.mxu0 %v3101
    %3731 = vmatpush1.bf16.msra.mxu0 %v3100
    %3732 = vmatprep.subr.bf16.mxu0 %v3109
    %3733 = vmatpush1.bf16.msra.mxu0 %v3108
    %3734 = vmatprep.subr.bf16.mxu0 %v3117
    %3735 = vmatpush1.bf16.msra.mxu0 %v3116
    %3736 = vmatprep.subr.bf16.mxu0 %v3125
    %3737 = vmatpush1.bf16.msra.mxu0 %v3124
    %3738 = vmatprep.subr.bf16.mxu0 %v3133
    %3739 = vmatpush1.bf16.msra.mxu0 %v3132
    %3740 = vmatprep.subr.bf16.mxu0 %v3141
    %3741 = vmatpush1.bf16.msra.mxu0 %v3140
    %3742 = vmatprep.subr.bf16.mxu0 %v3149
    %3743 = vmatpush1.bf16.msra.mxu0 %v3148
    %3744 = vmatprep.subr.bf16.mxu0 %v3157
    %3745 = vmatpush1.bf16.msra.mxu0 %v3156
    %3746 = vmatprep.subr.bf16.mxu0 %v3165
    %3747 = vmatpush1.bf16.msra.mxu0 %v3164
    %3748 = vmatprep.mubr.bf16.mxu0 %v1971
    %3749 = vmatmul.mubr.bf16.gmra.mrb[0].mxu0 %v1970
    %v3750 = vpop.f32.mrb[0].mxu0
    %v3751 = vadd.f32 %v2251, %v3750
    %v3752 = vpop.f32.mrb[0].mxu0
    %v3753 = vadd.f32 %v2255, %v3752
    %v3754 = vpop.f32.mrb[0].mxu0
    %v3755 = vpop.f32.mrb[0].mxu0
    %3756 = vdwg.mxu0
    %3757 = vmatprep.subr.bf16.mxu0 %v3173
    %3758 = vmatpush1.bf16.msra.mxu0 %v3172
    %3759 = vmatprep.subr.bf16.mxu0 %v3181
    %3760 = vmatpush1.bf16.msra.mxu0 %v3180
    %3761 = vmatprep.subr.bf16.mxu0 %v3189
    %3762 = vmatpush1.bf16.msra.mxu0 %v3188
    %3763 = vmatprep.subr.bf16.mxu0 %v3197
    %3764 = vmatpush1.bf16.msra.mxu0 %v3196
    %3765 = vmatprep.subr.bf16.mxu0 %v3205
    %3766 = vmatpush1.bf16.msra.mxu0 %v3204
    %3767 = vmatprep.subr.bf16.mxu0 %v3213
    %3768 = vmatpush1.bf16.msra.mxu0 %v3212
    %3769 = vmatprep.subr.bf16.mxu0 %v3221
    %3770 = vmatpush1.bf16.msra.mxu0 %v3220
    %3771 = vmatprep.subr.bf16.mxu0 %v3229
    %3772 = vmatpush1.bf16.msra.mxu0 %v3228
    %3773 = vmatprep.subr.bf16.mxu0 %v3237
    %3774 = vmatpush1.bf16.msra.mxu0 %v3236
    %3775 = vmatprep.subr.bf16.mxu0 %v3245
    %3776 = vmatpush1.bf16.msra.mxu0 %v3244
    %3777 = vmatprep.subr.bf16.mxu0 %v3253
    %3778 = vmatpush1.bf16.msra.mxu0 %v3252
    %3779 = vmatprep.subr.bf16.mxu0 %v3261
    %3780 = vmatpush1.bf16.msra.mxu0 %v3260
    %3781 = vmatprep.subr.bf16.mxu0 %v3269
    %3782 = vmatpush1.bf16.msra.mxu0 %v3268
    %3783 = vmatprep.subr.bf16.mxu0 %v3277
    %3784 = vmatpush1.bf16.msra.mxu0 %v3276
    %3785 = vmatprep.subr.bf16.mxu0 %v3285
    %3786 = vmatpush1.bf16.msra.mxu0 %v3284
    %3787 = vmatprep.subr.bf16.mxu0 %v3293
    %3788 = vmatpush1.bf16.msra.mxu0 %v3292
    %3789 = vmatprep.mubr.bf16.mxu0 %v1973
    %3790 = vmatmul.mubr.bf16.gmra.mrb[0].mxu0 %v1972
    %v3791 = vpop.f32.mrb[0].mxu0
    %v3792 = vadd.f32 %v3751, %v3791
    %v3793 = vpop.f32.mrb[0].mxu0
    %v3794 = vadd.f32 %v3753, %v3793
    %v3795 = vpop.f32.mrb[0].mxu0
    %v3796 = vpop.f32.mrb[0].mxu0
    %3797 = vdwg.mxu0
    %3798 = vmatprep.subr.bf16.mxu0 %v3047
    %3799 = vmatpush1.bf16.msra.mxu0 %v3046
    %3800 = vmatprep.subr.bf16.mxu0 %v3055
    %3801 = vmatpush1.bf16.msra.mxu0 %v3054
    %3802 = vmatprep.subr.bf16.mxu0 %v3063
    %3803 = vmatpush1.bf16.msra.mxu0 %v3062
    %3804 = vmatprep.subr.bf16.mxu0 %v3071
    %3805 = vmatpush1.bf16.msra.mxu0 %v3070
    %3806 = vmatprep.subr.bf16.mxu0 %v3079
    %3807 = vmatpush1.bf16.msra.mxu0 %v3078
    %3808 = vmatprep.subr.bf16.mxu0 %v3087
    %3809 = vmatpush1.bf16.msra.mxu0 %v3086
    %3810 = vmatprep.subr.bf16.mxu0 %v3095
    %3811 = vmatpush1.bf16.msra.mxu0 %v3094
    %3812 = vmatprep.subr.bf16.mxu0 %v3103
    %3813 = vmatpush1.bf16.msra.mxu0 %v3102
    %3814 = vmatprep.subr.bf16.mxu0 %v3111
    %3815 = vmatpush1.bf16.msra.mxu0 %v3110
    %3816 = vmatprep.subr.bf16.mxu0 %v3119
    %3817 = vmatpush1.bf16.msra.mxu0 %v3118
    %3818 = vmatprep.subr.bf16.mxu0 %v3127
    %3819 = vmatpush1.bf16.msra.mxu0 %v3126
    %3820 = vmatprep.subr.bf16.mxu0 %v3135
    %3821 = vmatpush1.bf16.msra.mxu0 %v3134
    %3822 = vmatprep.subr.bf16.mxu0 %v3143
    %3823 = vmatpush1.bf16.msra.mxu0 %v3142
    %3824 = vmatprep.subr.bf16.mxu0 %v3151
    %3825 = vmatpush1.bf16.msra.mxu0 %v3150
    %3826 = vmatprep.subr.bf16.mxu0 %v3159
    %3827 = vmatpush1.bf16.msra.mxu0 %v3158
    %3828 = vmatprep.subr.bf16.mxu0 %v3167
    %3829 = vmatpush1.bf16.msra.mxu0 %v3166
    %3830 = vmatprep.mubr.bf16.mxu0 %v1971
    %3831 = vmatmul.mubr.bf16.gmra.mrb[0].mxu0 %v1970
    %v3832 = vpop.f32.mrb[0].mxu0
    %v3833 = vadd.f32 %v2259, %v3832
    %v3834 = vpop.f32.mrb[0].mxu0
    %v3835 = vadd.f32 %v2263, %v3834
    %v3836 = vpop.f32.mrb[0].mxu0
    %v3837 = vpop.f32.mrb[0].mxu0
    %3838 = vdwg.mxu0
    %3839 = vmatprep.subr.bf16.mxu0 %v3175
    %3840 = vmatpush1.bf16.msra.mxu0 %v3174
    %3841 = vmatprep.subr.bf16.mxu0 %v3183
    %3842 = vmatpush1.bf16.msra.mxu0 %v3182
    %3843 = vmatprep.subr.bf16.mxu0 %v3191
    %3844 = vmatpush1.bf16.msra.mxu0 %v3190
    %3845 = vmatprep.subr.bf16.mxu0 %v3199
    %3846 = vmatpush1.bf16.msra.mxu0 %v3198
    %3847 = vmatprep.subr.bf16.mxu0 %v3207
    %3848 = vmatpush1.bf16.msra.mxu0 %v3206
    %3849 = vmatprep.subr.bf16.mxu0 %v3215
    %3850 = vmatpush1.bf16.msra.mxu0 %v3214
    %3851 = vmatprep.subr.bf16.mxu0 %v3223
    %3852 = vmatpush1.bf16.msra.mxu0 %v3222
    %3853 = vmatprep.subr.bf16.mxu0 %v3231
    %3854 = vmatpush1.bf16.msra.mxu0 %v3230
    %3855 = vmatprep.subr.bf16.mxu0 %v3239
    %3856 = vmatpush1.bf16.msra.mxu0 %v3238
    %3857 = vmatprep.subr.bf16.mxu0 %v3247
    %3858 = vmatpush1.bf16.msra.mxu0 %v3246
    %3859 = vmatprep.subr.bf16.mxu0 %v3255
    %3860 = vmatpush1.bf16.msra.mxu0 %v3254
    %3861 = vmatprep.subr.bf16.mxu0 %v3263
    %3862 = vmatpush1.bf16.msra.mxu0 %v3262
    %3863 = vmatprep.subr.bf16.mxu0 %v3271
    %3864 = vmatpush1.bf16.msra.mxu0 %v3270
    %3865 = vmatprep.subr.bf16.mxu0 %v3279
    %3866 = vmatpush1.bf16.msra.mxu0 %v3278
    %3867 = vmatprep.subr.bf16.mxu0 %v3287
    %3868 = vmatpush1.bf16.msra.mxu0 %v3286
    %3869 = vmatprep.subr.bf16.mxu0 %v3295
    %3870 = vmatpush1.bf16.msra.mxu0 %v3294
    %3871 = vmatprep.mubr.bf16.mxu0 %v1973
    %3872 = vmatmul.mubr.bf16.gmra.mrb[0].mxu0 %v1972
    %v3873 = vpop.f32.mrb[0].mxu0
    %v3874 = vadd.f32 %v3833, %v3873
    %v3875 = vpop.f32.mrb[0].mxu0
    %v3876 = vadd.f32 %v3835, %v3875
    %v3877 = vpop.f32.mrb[0].mxu0
    %v3878 = vpop.f32.mrb[0].mxu0
    %3879 = vdwg.mxu0
    %3880 = vst [vmem:[#allocation8] sm:$0xff] %v3628
    %3881 = vst [vmem:[#allocation8 + $0x8] sm:$0xff] %v3630
    %3882 = vst [vmem:[#allocation8 + $0x10] sm:$0xff] %v3710
    %3883 = vst [vmem:[#allocation8 + $0x18] sm:$0xff] %v3712
    %3884 = vst [vmem:[#allocation8 + $0x20] sm:$0xff] %v3792
    %3885 = vst [vmem:[#allocation8 + $0x28] sm:$0xff] %v3794
    %3886 = vst [vmem:[#allocation8 + $0x30] sm:$0xff] %v3874
    %3887 = vst [vmem:[#allocation8 + $0x38] sm:$0xff] %v3876
    // Predicated region
    $region34: #{tpu_custom_call.1} parent=1 // pred_check
      _
    $region35: #{tpu_custom_call.1} parent=1 // pred_check_branch
      %3889 = sbr.rel (0) target = $region37
    $region36: #{tpu_custom_call.1} parent=1 // pred_region
      %s3891 = ssub.s32 1024, 1024
      %3892 = vsyncadd [#allocation4], %s3891
      %s3894 = sshll.u32 [#allocation8], 4
      %s3895 = int_to_ptr.vmem [resolvable:$true] %s3894
      %3897 = dma.vmem_to_hbm [thread:$0]  %s3895, 1024, %s5, [#allocation4]
    $region37: #{tpu_custom_call.1} parent=1 // pred_fallthru
      _
    // Predicated region
    $region38: #{tpu_custom_call.1} parent=1 // pred_check
      _
    $region39: #{tpu_custom_call.1} parent=1 // pred_check_branch
      %3899 = sbr.rel (0) target = $region41
    $region40: #{tpu_custom_call.1} parent=1 // pred_region
      %3900 = dma.done [#allocation4], 1024
    $region41: #{tpu_custom_call.1} parent=1 // pred_fallthru
      _
    %3901 = vsyncpa [#allocation3], 1
    %3902 = vsyncpa [#allocation6], 1
    %3903 = vsyncpa [#allocation4], 1

</llo_original>
